<compile_context>
chip_gen: v7x
topology: tpu7x:2x2x1
jax: 0.10.0
libtpu: 0.0.40
codegen_flags: <defaults>
</compile_context>

<pallas_src>
import functools

import jax
import jax.numpy as jnp
from jax import lax
from jax.experimental import pallas as pl
from jax.experimental.pallas import tpu as pltpu


# ---------------------------------------------------------------------------
# Pallas matmul kernels (hot path for all large conv matmuls)
# ---------------------------------------------------------------------------
def _matmul_kernel(a_ref, b_ref, o_ref):
    # Single K tile: whole reduction in one MXU pass, straight assignment.
    o_ref[...] = jnp.dot(a_ref[...], b_ref[...],
                         preferred_element_type=jnp.float32)


def _matmul_kernel_ksplit(a_ref, b_ref, o_ref):
    # Multi-K fallback: assign on k==0 (no zero-init pass), accumulate after.
    prod = jnp.dot(a_ref[...], b_ref[...], preferred_element_type=jnp.float32)
    k = pl.program_id(2)

    @pl.when(k == 0)
    def _():
        o_ref[...] = prod

    @pl.when(k > 0)
    def _():
        o_ref[...] += prod


def _round_up(x, m):
    return (x + m - 1) // m * m


@functools.lru_cache(maxsize=None)
def _tensorcores_per_chip():
    # Only v7x exposes 2 TensorCores to a single Pallas call (sharded over
    # "parallel" grid axes); v5e/v6e have 1 -> splitting tiles there is a loss.
    try:
        kind = jax.devices()[0].device_kind.lower()
    except Exception:
        return 1
    return 2 if "v7" in kind else 1


def _use_pallas(m, k, n):
    # Tiny matmuls (batch-2 MLP, fusion head, collapsed-spatial convs) are not
    # worth kernel-launch + pad/slice overhead.
    return m >= 128 and k >= 128 and n >= 64


_MAX_TK = 2048  # 256x2048 bf16 tile is ~1 MiB: far below VMEM on every chip


def pallas_matmul(a, b):
    """a: (M, K), b: (K, N) -> (M, N) f32.  bf16 operands, f32 MXU accumulation."""
    M, K = a.shape
    K2, N = b.shape
    assert K == K2

    # --- K: pad only to the 128-lane minimum, take the whole reduction in one
    #        tile if it fits the tile budget (it always does for this model).
    Kp = _round_up(K, 128)
    if Kp <= _MAX_TK:
        tk = Kp
    else:
        tk = 128
        for cand in range(_MAX_TK, 127, -128):
            if Kp % cand == 0:
                tk = cand
                break

    # --- M: bf16 sublane packing wants multiples of 16.
    tm = _round_up(M, 16) if M <= 256 else 256
    Mp = _round_up(M, tm)

    # --- N: lane-dense output, but never pad small N (a full-dim block is
    #        legal and avoids doubling the f32 writeback, e.g. stem N=64).
    if N < 128:
        tn, Np = N, N
    else:
        tn = 256 if N % 256 == 0 else 128
        Np = _round_up(N, tn)

    # Feed both TensorCores (v7x only) when the (M, N) parallel grid is 1x1.
    if (_tensorcores_per_chip() >= 2 and Mp // tm == 1 and Np // tn == 1
            and tm % 32 == 0):
        tm //= 2

    a = a.astype(jnp.bfloat16)
    b = b.astype(jnp.bfloat16)
    if (Mp, Kp) != (M, K):
        a = jnp.pad(a, ((0, Mp - M), (0, Kp - K)))
    if (Kp, Np) != (K, N):
        b = jnp.pad(b, ((0, Kp - K), (0, Np - N)))

    gm, gn, gk = Mp // tm, Np // tn, Kp // tk

    # VMEM sized to reality: double-buffered A/B tiles + output tile + headroom.
    a_bytes, b_bytes, o_bytes = tm * tk * 2, tk * tn * 2, tm * tn * 4
    vmem_limit = int(2 * (a_bytes + b_bytes + o_bytes) + (4 << 20))

    cost = pl.CostEstimate(
        flops=2 * Mp * Np * Kp,
        transcendentals=0,
        # include grid re-reads: A is read once per N tile, B once per M tile
        bytes_accessed=Mp * Kp * 2 * gn + Kp * Np * 2 * gm + Mp * Np * 4)

    if gk == 1:
        out = pl.pallas_call(
            _matmul_kernel,
            out_shape=jax.ShapeDtypeStruct((Mp, Np), jnp.float32),
            grid_spec=pltpu.PrefetchScalarGridSpec(
                num_scalar_prefetch=0,
                grid=(gm, gn),
                in_specs=[pl.BlockSpec((tm, tk), lambda i, j: (i, 0)),
                          pl.BlockSpec((tk, tn), lambda i, j: (0, j))],
                out_specs=pl.BlockSpec((tm, tn), lambda i, j: (i, j))),
            compiler_params=pltpu.CompilerParams(
                dimension_semantics=("parallel", "parallel"),
                vmem_limit_bytes=vmem_limit),
            cost_estimate=cost,
        )(a, b)
    else:
        out = pl.pallas_call(
            _matmul_kernel_ksplit,
            out_shape=jax.ShapeDtypeStruct((Mp, Np), jnp.float32),
            grid_spec=pltpu.PrefetchScalarGridSpec(
                num_scalar_prefetch=0,
                grid=(gm, gn, gk),                       # reduction axis last
                in_specs=[pl.BlockSpec((tm, tk), lambda i, j, k: (i, k)),
                          pl.BlockSpec((tk, tn), lambda i, j, k: (k, j))],
                out_specs=pl.BlockSpec((tm, tn), lambda i, j, k: (i, j))),
            compiler_params=pltpu.CompilerParams(
                dimension_semantics=("parallel", "parallel", "arbitrary"),
                vmem_limit_bytes=vmem_limit),
            cost_estimate=cost,
        )(a, b)

    if (Mp, Np) != (M, N):
        out = out[:M, :N]
    return out


def matmul(a, b):
    """Dispatch: real conv matmuls -> Pallas MXU kernel; tiny matmuls -> jnp.dot."""
    M, K = a.shape
    N = b.shape[1]
    if _use_pallas(M, K, N):
        return pallas_matmul(a, b)
    return jnp.dot(a, b, preferred_element_type=jnp.float32)


# ---------------------------------------------------------------------------
# Layer helpers (glue around the Pallas matmul), NDHWC activation layout
# ---------------------------------------------------------------------------
def relu(x):
    return jnp.maximum(x, 0)


def linear(x, w, b=None):
    """x: (B, in), w: (out, in) (PyTorch layout), optional bias (out,)."""
    y = matmul(x, w.T)
    if b is not None:
        y = y + b[None, :]
    return y


def conv3d(x, w, stride=1, padding=0):
    """Bias-free Conv3d.  x: (N, D, H, W, Ci) channel-last, w: (Co, Ci, kd, kh, kw)
    (PyTorch layout).  Returns (N, Do, Ho, Wo, Co) in f32."""
    N, D, H, W, Ci = x.shape
    Co, _, kd, kh, kw = w.shape
    s, p = stride, padding

    x = x.astype(jnp.bfloat16)               # halve HBM traffic of im2col
    w = w.astype(jnp.bfloat16)

    # -------- 1x1x1 fast path: pure channel mixing, no im2col ---------------
    if kd == 1 and kh == 1 and kw == 1 and p == 0:
        if s != 1:
            x = x[:, ::s, ::s, ::s, :]
        Nb, Do, Ho, Wo, _ = x.shape
        col = x.reshape(Nb * Do * Ho * Wo, Ci)              # free in NDHWC
        out = matmul(col, w.reshape(Co, Ci).T)               # (M, Co) f32
        return out.reshape(Nb, Do, Ho, Wo, Co)

    # -------- general kxkxk conv via channel-last im2col --------------------
    Do = (D + 2 * p - kd) // s + 1
    Ho = (H + 2 * p - kh) // s + 1
    Wo = (W + 2 * p - kw) // s + 1
    xp = jnp.pad(x, ((0, 0), (p, p), (p, p), (p, p), (0, 0))) if p else x

    patches = []
    for i in range(kd):
        for j in range(kh):
            for k in range(kw):
                patches.append(
                    xp[:, i:i + s * Do:s, j:j + s * Ho:s, k:k + s * Wo:s, :])

    K = kd * kh * kw * Ci
    M = N * Do * Ho * Wo
    # weight K-order must match the (kd, kh, kw, Ci) patch concatenation order
    wm = w.transpose(2, 3, 4, 1, 0).reshape(K, Co)

    # Fold the 128-lane K pad into the im2col concatenate (zero patch) so the
    # Pallas wrapper never re-reads A just to pad it.
    if _use_pallas(M, K, Co):
        Kp = _round_up(K, 128)
        if Kp != K:
            patches.append(jnp.zeros((N, Do, Ho, Wo, Kp - K), jnp.bfloat16))
            wm = jnp.pad(wm, ((0, Kp - K), (0, 0)))
            K = Kp

    col = jnp.concatenate(patches, axis=-1)       # (N, Do, Ho, Wo, K)
    col = col.reshape(M, K)
    out = matmul(col, wm)                          # (M, Co) f32  -- hot path
    return out.reshape(N, Do, Ho, Wo, Co)


def batchnorm(x, eps=1e-5):
    # nn.BatchNorm3d, training mode with weight=1 / bias=0 (as in the PyTorch
    # module init): normalize with (biased) batch statistics.  Stats in f32,
    # activations handed back in bf16 (halves inter-layer HBM traffic).
    xf = x.astype(jnp.float32)
    mean = jnp.mean(xf, axis=(0, 1, 2, 3), keepdims=True)
    var = jnp.mean(jnp.square(xf - mean), axis=(0, 1, 2, 3), keepdims=True)
    y = (xf - mean) * lax.rsqrt(var + eps)
    return y.astype(jnp.bfloat16)
    # TODO(synk): eval-mode running-stat BN and BN-scale/ReLU fusion into the
    # matmul epilogue are not implemented (batch stats need the full conv out).


def maxpool3d(x, k=3, s=2, p=1):
    return lax.reduce_window(
        x, jnp.array(-jnp.inf, dtype=x.dtype), lax.max,
        window_dimensions=(1, k, k, k, 1),
        window_strides=(1, s, s, s, 1),
        padding=((0, 0), (p, p), (p, p), (p, p), (0, 0)))


# ---------------------------------------------------------------------------
# Model definition (ResNet26-3D + SEQ mlp + fusion)
# ---------------------------------------------------------------------------
LAYER_CFG = [(64, 1, 1), (128, 2, 2), (256, 4, 2), (512, 1, 2)]  # resnet26
EXPANSION = 4


def bottleneck_forward(x, p, stride):
    if 'down' in p:
        shortcut = batchnorm(conv3d(x, p['down'], stride=stride))
    else:
        shortcut = x
    out = relu(batchnorm(conv3d(x, p['w1'])))
    out = relu(batchnorm(conv3d(out, p['w2'], stride=stride, padding=1)))
    out = batchnorm(conv3d(out, p['w3']))
    return relu(out + shortcut)


def resnet_forward(p, vox):
    x = vox.transpose(0, 2, 3, 4, 1)            # NCDHW -> NDHWC, once
    out = conv3d(x, p['stem'], stride=2, padding=3)
    out = relu(batchnorm(out))
    out = maxpool3d(out)
    bi = 0
    for _, n_blocks, stride in LAYER_CFG:
        for j in range(n_blocks):
            s = stride if j == 0 else 1
            out = bottleneck_forward(out, p['blocks'][bi], s)
            bi += 1
    # AdaptiveAvgPool3d(1) + flatten  -> (B, 2048)
    return out.mean(axis=(1, 2, 3)).astype(jnp.float32)


def seq_mlp_forward(p, seq):
    x = seq[:, 0, :]                       # squeeze(1): (B, 1, 50) -> (B, 50)
    x = relu(linear(x, p['w0']))           # Linear(50, 50, bias=False) + ReLU
    x = relu(linear(x, p['w1'], p['b1']))  # Linear(50, 1024) + ReLU
    x = linear(x, p['w2'], p['b2'])        # Linear(1024, 256)
    return x


def mmpeptide_forward(params, vox, seq):
    vox_emb = resnet_forward(params['resnet'], vox)        # (B, 2048)
    seq_emb = seq_mlp_forward(params['seq'], seq)          # (B, 256)
    fused = jnp.concatenate([seq_emb, vox_emb], axis=1)    # (B, 2304)
    w, b = params['fusion']
    return linear(fused, w, b)                             # (B, classes)


# ---------------------------------------------------------------------------
# Deterministic parameter initialization (shapes match the PyTorch __init__)
# ---------------------------------------------------------------------------
def _kaiming_conv(key, co, ci, k):
    fan_out = co * k * k * k
    std = (2.0 / fan_out) ** 0.5
    return jax.random.normal(key, (co, ci, k, k, k), jnp.float32) * std


def _linear_init(key, out_f, in_f, bias=True):
    k1, k2 = jax.random.split(key)
    bound = 1.0 / (in_f ** 0.5)
    w = jax.random.uniform(k1, (out_f, in_f), jnp.float32, -bound, bound)
    if not bias:
        return w, None
    b = jax.random.uniform(k2, (out_f,), jnp.float32, -bound, bound)
    return w, b


def init_params(key, classes=6):
    keys = iter(jax.random.split(key, 64))
    resnet = {'stem': _kaiming_conv(next(keys), 64, 3, 7), 'blocks': []}
    in_ch = 64
    for ch, n_blocks, stride in LAYER_CFG:
        for j in range(n_blocks):
            s = stride if j == 0 else 1
            blk = {
                'w1': _kaiming_conv(next(keys), ch, in_ch, 1),
                'w2': _kaiming_conv(next(keys), ch, ch, 3),
                'w3': _kaiming_conv(next(keys), ch * EXPANSION, ch, 1),
            }
            if s != 1 or in_ch != ch * EXPANSION:
                blk['down'] = _kaiming_conv(next(keys), ch * EXPANSION, in_ch, 1)
            resnet['blocks'].append(blk)
            in_ch = ch * EXPANSION

    hidden_dim, out_dim = 256, 256
    w0, _ = _linear_init(next(keys), 50, 50, bias=False)
    w1, b1 = _linear_init(next(keys), hidden_dim * 4, 50)
    w2, b2 = _linear_init(next(keys), out_dim, hidden_dim * 4)
    seq_p = {'w0': w0, 'w1': w1, 'b1': b1, 'w2': w2, 'b2': b2}

    fusion = _linear_init(next(keys), classes, 512 * 4 + 256)
    return {'resnet': resnet, 'seq': seq_p, 'fusion': fusion}


# ---------------------------------------------------------------------------
if __name__ == "__main__":
    key = jax.random.PRNGKey(0)
    kp, kv, ks = jax.random.split(key, 3)
    params = init_params(kp, classes=6)

    # x = (vox, seq); vox is NCDHW for the 3D-ResNet, seq is (B, 1, 50) for mlp.
    vox = jax.random.normal(kv, (2, 3, 16, 16, 16), jnp.float32)
    seq = jax.random.normal(ks, (2, 1, 50), jnp.float32)

    fwd = jax.jit(mmpeptide_forward)
    pred = fwd(params, vox, seq)
    pred = jax.block_until_ready(pred)
    assert pred.shape == (2, 6) and pred.dtype == jnp.float32
    assert bool(jnp.all(jnp.isfinite(pred)))
    print("KERNEL_OK")
</pallas_src>

<mosaic_0001>
module attributes {stable_mosaic.version = 11 : i64} {
  func.func @_matmul_kernel(%arg0: i32, %arg1: i32, %arg2: memref<256x1152xbf16, #tpu.memory_space<vmem>>, %arg3: memref<1152x64xbf16, #tpu.memory_space<vmem>>, %arg4: memref<256x64xf32, #tpu.memory_space<vmem>>) attributes {dimension_semantics = [#tpu.dimension_semantics<parallel>, #tpu.dimension_semantics<parallel>], iteration_bounds = array<i64: 4, 1>, scalar_prefetch = 0 : i64, scratch_operands = 0 : i64, tpu.core_type = #tpu.core_type<tc>, window_params = [{transform_indices = @transform_0, window_bounds = array<i64: 256, 1152>}, {transform_indices = @transform_1, window_bounds = array<i64: 1152, 64>}, {transform_indices = @transform_2, window_bounds = array<i64: 256, 64>}]} {
    %c0 = arith.constant 0 : index
    %c0_0 = arith.constant 0 : index
    %0 = vector.load %arg2[%c0, %c0_0] : memref<256x1152xbf16, #tpu.memory_space<vmem>>, vector<256x1152xbf16>
    %c0_1 = arith.constant 0 : index
    %c0_2 = arith.constant 0 : index
    %1 = vector.load %arg3[%c0_1, %c0_2] : memref<1152x64xbf16, #tpu.memory_space<vmem>>, vector<1152x64xbf16>
    %cst = arith.constant dense<0.000000e+00> : vector<256x64xf32>
    %2 = tpu.matmul %0, %1, %cst {dimension_numbers = #tpu.dot_dimension_numbers<[1], [0], [0], [1], [0, 0, 1, 1], [], []>} : vector<256x1152xbf16>, vector<1152x64xbf16>, vector<256x64xf32> -> vector<256x64xf32>
    %c0_3 = arith.constant 0 : index
    %c0_4 = arith.constant 0 : index
    %3 = vector.load %arg4[%c0_3, %c0_4] : memref<256x64xf32, #tpu.memory_space<vmem>>, vector<256x64xf32>
    tpu.vector_store %arg4[%c0_3, %c0_4], %2 {strides = array<i32>} : memref<256x64xf32, #tpu.memory_space<vmem>>, vector<256x64xf32>,
    return
  }
  func.func @transform_0(%arg0: i32, %arg1: i32) -> (i32, i32) {
    %c0_i32 = arith.constant 0 : i32
    %c0_i32_0 = arith.constant 0 : i32
    return %arg0, %c0_i32 : i32, i32
  }
  func.func @transform_1(%arg0: i32, %arg1: i32) -> (i32, i32) {
    %c0_i32 = arith.constant 0 : i32
    %c0_i32_0 = arith.constant 0 : i32
    return %c0_i32, %arg1 : i32, i32
  }
  func.func @transform_2(%arg0: i32, %arg1: i32) -> (i32, i32) {
    %c0_i32 = arith.constant 0 : i32
    return %arg0, %arg1 : i32, i32
  }
}

module attributes {stable_mosaic.version = 11 : i64} {
  func.func @_matmul_kernel(%arg0: i32, %arg1: i32, %arg2: memref<128x1792xbf16, #tpu.memory_space<vmem>>, %arg3: memref<1792x64xbf16, #tpu.memory_space<vmem>>, %arg4: memref<128x64xf32, #tpu.memory_space<vmem>>) attributes {dimension_semantics = [#tpu.dimension_semantics<parallel>, #tpu.dimension_semantics<parallel>], iteration_bounds = array<i64: 1, 1>, scalar_prefetch = 0 : i64, scratch_operands = 0 : i64, tpu.core_type = #tpu.core_type<tc>, window_params = [{transform_indices = @transform_0, window_bounds = array<i64: 128, 1792>}, {transform_indices = @transform_1, window_bounds = array<i64: 1792, 64>}, {transform_indices = @transform_2, window_bounds = array<i64: 128, 64>}]} {
    %c0 = arith.constant 0 : index
    %c0_0 = arith.constant 0 : index
    %0 = vector.load %arg2[%c0, %c0_0] : memref<128x1792xbf16, #tpu.memory_space<vmem>>, vector<128x1792xbf16>
    %c0_1 = arith.constant 0 : index
    %c0_2 = arith.constant 0 : index
    %1 = vector.load %arg3[%c0_1, %c0_2] : memref<1792x64xbf16, #tpu.memory_space<vmem>>, vector<1792x64xbf16>
    %cst = arith.constant dense<0.000000e+00> : vector<128x64xf32>
    %2 = tpu.matmul %0, %1, %cst {dimension_numbers = #tpu.dot_dimension_numbers<[1], [0], [0], [1], [0, 0, 1, 1], [], []>} : vector<128x1792xbf16>, vector<1792x64xbf16>, vector<128x64xf32> -> vector<128x64xf32>
    %c0_3 = arith.constant 0 : index
    %c0_4 = arith.constant 0 : index
    %3 = vector.load %arg4[%c0_3, %c0_4] : memref<128x64xf32, #tpu.memory_space<vmem>>, vector<128x64xf32>
    tpu.vector_store %arg4[%c0_3, %c0_4], %2 {strides = array<i32>} : memref<128x64xf32, #tpu.memory_space<vmem>>, vector<128x64xf32>,
    return
  }
  func.func @transform_0(%arg0: i32, %arg1: i32) -> (i32, i32) {
    %c0_i32 = arith.constant 0 : i32
    %c0_i32_0 = arith.constant 0 : i32
    return %arg0, %c0_i32 : i32, i32
  }
  func.func @transform_1(%arg0: i32, %arg1: i32) -> (i32, i32) {
    %c0_i32 = arith.constant 0 : i32
    %c0_i32_0 = arith.constant 0 : i32
    return %c0_i32, %arg1 : i32, i32
  }
  func.func @transform_2(%arg0: i32, %arg1: i32) -> (i32, i32) {
    %c0_i32 = arith.constant 0 : i32
    return %arg0, %arg1 : i32, i32
  }
}

module attributes {stable_mosaic.version = 11 : i64} {
  func.func @_matmul_kernel(%arg0: i32, %arg1: i32, %arg2: memref<128x256xbf16, #tpu.memory_space<vmem>>, %arg3: memref<256x128xbf16, #tpu.memory_space<vmem>>, %arg4: memref<128x128xf32, #tpu.memory_space<vmem>>) attributes {dimension_semantics = [#tpu.dimension_semantics<parallel>, #tpu.dimension_semantics<parallel>], iteration_bounds = array<i64: 1, 1>, scalar_prefetch = 0 : i64, scratch_operands = 0 : i64, tpu.core_type = #tpu.core_type<tc>, window_params = [{transform_indices = @transform_0, window_bounds = array<i64: 128, 256>}, {transform_indices = @transform_1, window_bounds = array<i64: 256, 128>}, {transform_indices = @transform_2, window_bounds = array<i64: 128, 128>}]} {
    %c0 = arith.constant 0 : index
    %c0_0 = arith.constant 0 : index
    %0 = vector.load %arg2[%c0, %c0_0] : memref<128x256xbf16, #tpu.memory_space<vmem>>, vector<128x256xbf16>
    %c0_1 = arith.constant 0 : index
    %c0_2 = arith.constant 0 : index
    %1 = vector.load %arg3[%c0_1, %c0_2] : memref<256x128xbf16, #tpu.memory_space<vmem>>, vector<256x128xbf16>
    %cst = arith.constant dense<0.000000e+00> : vector<128x128xf32>
    %2 = tpu.matmul %0, %1, %cst {dimension_numbers = #tpu.dot_dimension_numbers<[1], [0], [0], [1], [0, 0, 1, 1], [], []>} : vector<128x256xbf16>, vector<256x128xbf16>, vector<128x128xf32> -> vector<128x128xf32>
    %c0_3 = arith.constant 0 : index
    %c0_4 = arith.constant 0 : index
    %3 = vector.load %arg4[%c0_3, %c0_4] : memref<128x128xf32, #tpu.memory_space<vmem>>, vector<128x128xf32>
    tpu.vector_store %arg4[%c0_3, %c0_4], %2 {strides = array<i32>} : memref<128x128xf32, #tpu.memory_space<vmem>>, vector<128x128xf32>,
    return
  }
  func.func @transform_0(%arg0: i32, %arg1: i32) -> (i32, i32) {
    %c0_i32 = arith.constant 0 : i32
    %c0_i32_0 = arith.constant 0 : i32
    return %arg0, %c0_i32 : i32, i32
  }
  func.func @transform_1(%arg0: i32, %arg1: i32) -> (i32, i32) {
    %c0_i32 = arith.constant 0 : i32
    %c0_i32_0 = arith.constant 0 : i32
    return %c0_i32, %arg1 : i32, i32
  }
  func.func @transform_2(%arg0: i32, %arg1: i32) -> (i32, i32) {
    %c0_i32 = arith.constant 0 : i32
    return %arg0, %arg1 : i32, i32
  }
}

</mosaic_0001>

<llo_original>
// kernel: mmpeptide_forward.3
$region0: #{mmpeptide_forward.3}
  #allocation0 [shape = 'u32[]', space=smem, size = 0x4, offset = 0x4, fixed_abs, tag = 'smem constant byte address 0x4 - core index']
  #allocation1 [shape = 'u32[144,128]{1,0:T(1,128)}', space=vmem, size = 0x12000, scoped, tag = 'internal scratch']
  %s0 = inlined_call_operand.vmem [shape: bf16[1024,1152], index: 0, kind: input, shape index: {}]
  %s1 = inlined_call_operand.vmem [shape: bf16[1152,64], index: 1, kind: input, shape index: {}]
  %s2 = inlined_call_operand.vmem [shape: f32[1024,64], index: 2, kind: output, shape index: {}]
  %s3 = sld [smem:[#allocation0]]
  $region41: #{mmpeptide_forward.3} parent=0
    _
  %s5 = ssub.s32 1, %s3
  %s6 = scalar_select 0, %s5, %s3
  loop: start=0, step=1, limit=6
  $region2: #{mmpeptide_forward.3} parent=0 // loop_pre_header
    _
  $region3: #{mmpeptide_forward.3} parent=0 // loop_header
    %s8 = sphi 0, %s12
    %p9 = scmp.ge.s32.totalorder %s8, 6
    %s15 = sphi 0, %s27
    %s16 = sphi 0, %s23
    %s17 = sphi 0, %s15
    %s18 = sphi 0, %s16
    %s19 = sphi 0, %s17
    %s20 = sphi 0, %s18
    %s30 = sphi 0, %s32
    %s33 = sphi 0, %s30
    %s34 = sphi 0, %s33
    %s50 = sphi 0, %s34
    %s56 = sphi 0, %s58
    %s59 = sphi 0, %s56
    %s60 = sphi 0, %s59
    %s76 = sphi 0, %s60
    %s84 = sphi 0, %s86
    %s87 = sphi 0, %s84
    %s88 = sphi 0, %s87
    %s104 = sphi 0, %s88
  $region4: #{mmpeptide_forward.3} parent=0 // loop_header_branch
    %11 = sbr.rel (%p9) target = $region8
  $region5: #{mmpeptide_forward.3} parent=0 // loop_body
    %s13 = ssub.s32 %s8, 1
    %s14 = ssub.s32 %s8, 2
    %s21 = sadd.s32 1, %s16
    %p22 = scmp.ge.s32.totalorder %s21, 1
    %s23 = scalar_select %p22, 0, %s21
    %s24 = sadd.s32 1, %s15
    %s25 = scalar_select %p22, %s24, %s15
    %p26 = scmp.ge.s32.totalorder %s25, 4
    %s27 = scalar_select %p26, 0, %s25
    %s28 = ssub.s32 %s15, %s27
    %p29 = scmp.eq.s32.totalorder %s28, 0
    %s31 = sadd.s32 %s30, 1
    %s32 = scalar_select %p29, %s30, %s31
    %p35 = pneg %p29
    %p36 = scmp.eq.s32.totalorder %s8, 3
    %p37 = por %p35, %p36
    %p38 = scmp.ne.s32.totalorder %s30, %s33
    %p39 = scmp.eq.s32.totalorder %s8, 0
    %p40 = por %p38, %p39
    %p41 = scmp.ne.s32.totalorder %s30, %s33
    %p42 = scmp.eq.s32.totalorder %s13, 3
    %p43 = por %p41, %p42
    %p44 = scmp.ne.s32.totalorder %s33, %s34
    %p45 = scmp.eq.s32.totalorder %s13, 0
    %p46 = por %p44, %p45
    %p47 = scmp.ne.s32.totalorder %s33, %s34
    %p48 = scmp.eq.s32.totalorder %s14, 3
    %p49 = por %p47, %p48
    %p51 = scmp.ne.s32.totalorder %s34, %s50
    %p52 = scmp.eq.s32.totalorder %s14, 0
    %p53 = por %p51, %p52
    %s54 = ssub.s32 %s16, %s23
    %p55 = scmp.eq.s32.totalorder %s54, 0
    %s57 = sadd.s32 %s56, 1
    %s58 = scalar_select %p55, %s56, %s57
    %p61 = pneg %p55
    %p62 = scmp.eq.s32.totalorder %s8, 3
    %p63 = por %p61, %p62
    %p64 = scmp.ne.s32.totalorder %s56, %s59
    %p65 = scmp.eq.s32.totalorder %s8, 0
    %p66 = por %p64, %p65
    %p67 = scmp.ne.s32.totalorder %s56, %s59
    %p68 = scmp.eq.s32.totalorder %s13, 3
    %p69 = por %p67, %p68
    %p70 = scmp.ne.s32.totalorder %s59, %s60
    %p71 = scmp.eq.s32.totalorder %s13, 0
    %p72 = por %p70, %p71
    %p73 = scmp.ne.s32.totalorder %s59, %s60
    %p74 = scmp.eq.s32.totalorder %s14, 3
    %p75 = por %p73, %p74
    %p77 = scmp.ne.s32.totalorder %s60, %s76
    %p78 = scmp.eq.s32.totalorder %s14, 0
    %p79 = por %p77, %p78
    %s80 = ssub.s32 %s15, %s27
    %s81 = ssub.s32 %s16, %s23
    %s82 = sor.u32 %s80, %s81
    %p83 = scmp.eq.s32.totalorder %s82, 0
    %s85 = sadd.s32 %s84, 1
    %s86 = scalar_select %p83, %s84, %s85
    %p89 = pneg %p83
    %p90 = scmp.eq.s32.totalorder %s8, 3
    %p91 = por %p89, %p90
    %p92 = scmp.ne.s32.totalorder %s84, %s87
    %p93 = scmp.eq.s32.totalorder %s8, 0
    %p94 = por %p92, %p93
    %p95 = scmp.ne.s32.totalorder %s84, %s87
    %p96 = scmp.eq.s32.totalorder %s13, 3
    %p97 = por %p95, %p96
    %p98 = scmp.ne.s32.totalorder %s87, %s88
    %p99 = scmp.eq.s32.totalorder %s13, 0
    %p100 = por %p98, %p99
    %p101 = scmp.ne.s32.totalorder %s87, %s88
    %p102 = scmp.eq.s32.totalorder %s14, 3
    %p103 = por %p101, %p102
    %p105 = scmp.ne.s32.totalorder %s88, %s104
    %p106 = scmp.eq.s32.totalorder %s14, 0
    %p107 = por %p105, %p106
    %p108 = scmp.le.s32.totalorder 1, %s8
    %p109 = scmp.lt.s32.totalorder %s8, 5
    %p110 = pnand %p108, %p109
    %p111 = pneg %p110
    // Predicated region
    $region9: #{mmpeptide_forward.3} parent=5 // pred_check
      _
    $region10: #{mmpeptide_forward.3} parent=5 // pred_check_branch
      %113 = sbr.rel (%p110) target = $region12
    $region11: #{mmpeptide_forward.3} parent=5 // pred_region
      %s114 = ssub.s32 %s8, 1
      // Predicated region
      $region13: #{mmpeptide_forward.3} parent=11 // pred_check
        %p115 = pneg %p72
      $region14: #{mmpeptide_forward.3} parent=11 // pred_check_branch
        %117 = sbr.rel (%p115) target = $region16
      $region15: #{mmpeptide_forward.3} parent=11 // pred_region
        %p118 = scmp.lt.s32.totalorder %s18, 0
        %s119 = scalar_select %p118, %s18, 0
        %s120 = smul.addr %s119, 4
        %s121 = scalar_lea.vmem %s1, %s120
      $region16: #{mmpeptide_forward.3} parent=11 // pred_fallthru
        _
    $region12: #{mmpeptide_forward.3} parent=5 // pred_fallthru
      _
    %p122 = scmp.lt.s32.totalorder %s8, 4
    // Predicated region
    $region17: #{mmpeptide_forward.3} parent=5 // pred_check
      %p123 = pneg %p122
    $region18: #{mmpeptide_forward.3} parent=5 // pred_check_branch
      %125 = sbr.rel (%p123) target = $region20
    $region19: #{mmpeptide_forward.3} parent=5 // pred_region
      // Predicated region
      $region21: #{mmpeptide_forward.3} parent=19 // pred_check
        %p126 = pneg %p40
      $region22: #{mmpeptide_forward.3} parent=19 // pred_check_branch
        %128 = sbr.rel (%p126) target = $region24
      $region23: #{mmpeptide_forward.3} parent=19 // pred_region
        %s129 = smul.u32 32, %s15
        %p130 = scmp.lt.s32.totalorder %s129, 127
        %s131 = scalar_select %p130, %s129, 127
        %s132 = smul.addr %s131, 9
        %s133 = smul.addr %s132, 4
        %s134 = scalar_lea.vmem %s0, %s133
        %s135 = smul.u32 32, %s15
      $region24: #{mmpeptide_forward.3} parent=19 // pred_fallthru
        _
    $region20: #{mmpeptide_forward.3} parent=5 // pred_fallthru
      _
    %p136 = scmp.le.s32.totalorder 1, %s8
    %p137 = scmp.lt.s32.totalorder %s8, 5
    %p138 = pnand %p136, %p137
    %p139 = pneg %p138
    // Predicated region
    $region25: #{mmpeptide_forward.3} parent=5 // pred_check
      _
    $region26: #{mmpeptide_forward.3} parent=5 // pred_check_branch
      %141 = sbr.rel (%p138) target = $region28
    $region27: #{mmpeptide_forward.3} parent=5 // pred_region
      %s142 = ssub.s32 %s8, 1
      %s143 = smul.u32 32, %s17
      %p144 = scmp.lt.s32.totalorder %s143, 127
      %s145 = scalar_select %p144, %s143, 127
      %s146 = smul.addr %s145, 9
      %s147 = smul.addr %s146, 4
      %s148 = scalar_lea.vmem %s0, %s147
      %p149 = pneg %p46
      %p150 = pneg %p43
      %p151 = scmp.lt.s32.totalorder %s18, 0
      %s152 = scalar_select %p151, %s18, 0
      %s153 = smul.addr %s152, 4
      %s154 = scalar_lea.vmem %s1, %s153
      %p155 = pneg %p72
      %p156 = pneg %p69
      %p157 = pneg %p100
      %p158 = pneg %p97
      %s159 = smul.u32 32, %s17
      %p160 = scmp.lt.s32.totalorder %s159, 127
      %s161 = scalar_select %p160, %s159, 127
      %p162 = scmp.lt.s32.totalorder %s18, 0
      %s163 = scalar_select %p162, %s18, 0
      %s164 = sadd.s32 %s163, %s161
      %s165 = smul.addr %s164, 8
      %s166 = scalar_lea.vmem %s2, %s165
      %s167 = smul.u32 32, %s17
      %p168 = scmp.lt.s32.totalorder %s167, 127
      %s169 = scalar_select %p168, %s167, 127
      %s170 = smul.addr %s169, 9
      %s171 = smul.addr %s170, 4
      %s172 = scalar_lea.vmem %s0, %s171
      %s173 = smul.u32 32, %s17
      %p174 = scmp.lt.s32.totalorder %s18, 0
      %s175 = scalar_select %p174, %s18, 0
      %s176 = smul.addr %s175, 4
      %s177 = scalar_lea.vmem %s1, %s176
      %s178 = smul.u32 32, %s17
      %p179 = scmp.lt.s32.totalorder %s178, 127
      %s180 = scalar_select %p179, %s178, 127
      %p181 = scmp.lt.s32.totalorder %s18, 0
      %s182 = scalar_select %p181, %s18, 0
      %s183 = sadd.s32 %s182, %s180
      %s184 = smul.addr %s183, 8
      %s185 = scalar_lea.vmem %s2, %s184
      %s186 = smul.u32 32, %s17
      %v188 = vld [vmem:[%s172] sm:$0xff]
      %v189 = vld [vmem:[%s172 + $0x8] sm:$0xff]
      %v190 = vld [vmem:[%s172 + $0x10] sm:$0xff]
      %v191 = vld [vmem:[%s172 + $0x18] sm:$0xff]
      %v192 = vld [vmem:[%s172 + $0x20] sm:$0xf]
      %v193 = vld [vmem:[%s172 + $0x24] sm:$0xff]
      %v194 = vld [vmem:[%s172 + $0x2c] sm:$0xff]
      %v195 = vld [vmem:[%s172 + $0x34] sm:$0xff]
      %v196 = vld [vmem:[%s172 + $0x3c] sm:$0xff]
      %v197 = vld [vmem:[%s172 + $0x44] sm:$0xf]
      %v198 = vld [vmem:[%s172 + $0x48] sm:$0xff]
      %v199 = vld [vmem:[%s172 + $0x50] sm:$0xff]
      %v200 = vld [vmem:[%s172 + $0x58] sm:$0xff]
      %v201 = vld [vmem:[%s172 + $0x60] sm:$0xff]
      %v202 = vld [vmem:[%s172 + $0x68] sm:$0xf]
      %v203 = vld [vmem:[%s172 + $0x6c] sm:$0xff]
      %v204 = vld [vmem:[%s172 + $0x74] sm:$0xff]
      %v205 = vld [vmem:[%s172 + $0x7c] sm:$0xff]
      %v206 = vld [vmem:[%s172 + $0x84] sm:$0xff]
      %v207 = vld [vmem:[%s172 + $0x8c] sm:$0xf]
      %v208 = vld [vmem:[%s172 + $0x90] sm:$0xff]
      %v209 = vld [vmem:[%s172 + $0x98] sm:$0xff]
      %v210 = vld [vmem:[%s172 + $0xa0] sm:$0xff]
      %v211 = vld [vmem:[%s172 + $0xa8] sm:$0xff]
      %v212 = vld [vmem:[%s172 + $0xb0] sm:$0xf]
      %v213 = vld [vmem:[%s172 + $0xb4] sm:$0xff]
      %v214 = vld [vmem:[%s172 + $0xbc] sm:$0xff]
      %v215 = vld [vmem:[%s172 + $0xc4] sm:$0xff]
      %v216 = vld [vmem:[%s172 + $0xcc] sm:$0xff]
      %v217 = vld [vmem:[%s172 + $0xd4] sm:$0xf]
      %v218 = vld [vmem:[%s172 + $0xd8] sm:$0xff]
      %v219 = vld [vmem:[%s172 + $0xe0] sm:$0xff]
      %v220 = vld [vmem:[%s172 + $0xe8] sm:$0xff]
      %v221 = vld [vmem:[%s172 + $0xf0] sm:$0xff]
      %v222 = vld [vmem:[%s172 + $0xf8] sm:$0xf]
      %v223 = vld [vmem:[%s172 + $0xfc] sm:$0xff]
      %v224 = vld [vmem:[%s172 + $0x104] sm:$0xff]
      %v225 = vld [vmem:[%s172 + $0x10c] sm:$0xff]
      %v226 = vld [vmem:[%s172 + $0x114] sm:$0xff]
      %v227 = vld [vmem:[%s172 + $0x11c] sm:$0xf]
      %v228 = vld [vmem:[%s172 + $0x120] sm:$0xff]
      %v229 = vld [vmem:[%s172 + $0x128] sm:$0xff]
      %v230 = vld [vmem:[%s172 + $0x130] sm:$0xff]
      %v231 = vld [vmem:[%s172 + $0x138] sm:$0xff]
      %v232 = vld [vmem:[%s172 + $0x140] sm:$0xf]
      %v233 = vld [vmem:[%s172 + $0x144] sm:$0xff]
      %v234 = vld [vmem:[%s172 + $0x14c] sm:$0xff]
      %v235 = vld [vmem:[%s172 + $0x154] sm:$0xff]
      %v236 = vld [vmem:[%s172 + $0x15c] sm:$0xff]
      %v237 = vld [vmem:[%s172 + $0x164] sm:$0xf]
      %v238 = vld [vmem:[%s172 + $0x168] sm:$0xff]
      %v239 = vld [vmem:[%s172 + $0x170] sm:$0xff]
      %v240 = vld [vmem:[%s172 + $0x178] sm:$0xff]
      %v241 = vld [vmem:[%s172 + $0x180] sm:$0xff]
      %v242 = vld [vmem:[%s172 + $0x188] sm:$0xf]
      %v243 = vld [vmem:[%s172 + $0x18c] sm:$0xff]
      %v244 = vld [vmem:[%s172 + $0x194] sm:$0xff]
      %v245 = vld [vmem:[%s172 + $0x19c] sm:$0xff]
      %v246 = vld [vmem:[%s172 + $0x1a4] sm:$0xff]
      %v247 = vld [vmem:[%s172 + $0x1ac] sm:$0xf]
      %v248 = vld [vmem:[%s172 + $0x1b0] sm:$0xff]
      %v249 = vld [vmem:[%s172 + $0x1b8] sm:$0xff]
      %v250 = vld [vmem:[%s172 + $0x1c0] sm:$0xff]
      %v251 = vld [vmem:[%s172 + $0x1c8] sm:$0xff]
      %v252 = vld [vmem:[%s172 + $0x1d0] sm:$0xf]
      %v253 = vld [vmem:[%s172 + $0x1d4] sm:$0xff]
      %v254 = vld [vmem:[%s172 + $0x1dc] sm:$0xff]
      %v255 = vld [vmem:[%s172 + $0x1e4] sm:$0xff]
      %v256 = vld [vmem:[%s172 + $0x1ec] sm:$0xff]
      %v257 = vld [vmem:[%s172 + $0x1f4] sm:$0xf]
      %v258 = vld [vmem:[%s172 + $0x1f8] sm:$0xff]
      %v259 = vld [vmem:[%s172 + $0x200] sm:$0xff]
      %v260 = vld [vmem:[%s172 + $0x208] sm:$0xff]
      %v261 = vld [vmem:[%s172 + $0x210] sm:$0xff]
      %v262 = vld [vmem:[%s172 + $0x218] sm:$0xf]
      %v263 = vld [vmem:[%s172 + $0x21c] sm:$0xff]
      %v264 = vld [vmem:[%s172 + $0x224] sm:$0xff]
      %v265 = vld [vmem:[%s172 + $0x22c] sm:$0xff]
      %v266 = vld [vmem:[%s172 + $0x234] sm:$0xff]
      %v267 = vld [vmem:[%s172 + $0x23c] sm:$0xf]
      %v268 = vld [vmem:[%s172 + $0x240] sm:$0xff]
      %v269 = vld [vmem:[%s172 + $0x248] sm:$0xff]
      %v270 = vld [vmem:[%s172 + $0x250] sm:$0xff]
      %v271 = vld [vmem:[%s172 + $0x258] sm:$0xff]
      %v272 = vld [vmem:[%s172 + $0x260] sm:$0xf]
      %v273 = vld [vmem:[%s172 + $0x264] sm:$0xff]
      %v274 = vld [vmem:[%s172 + $0x26c] sm:$0xff]
      %v275 = vld [vmem:[%s172 + $0x274] sm:$0xff]
      %v276 = vld [vmem:[%s172 + $0x27c] sm:$0xff]
      %v277 = vld [vmem:[%s172 + $0x284] sm:$0xf]
      %v278 = vld [vmem:[%s172 + $0x288] sm:$0xff]
      %v279 = vld [vmem:[%s172 + $0x290] sm:$0xff]
      %v280 = vld [vmem:[%s172 + $0x298] sm:$0xff]
      %v281 = vld [vmem:[%s172 + $0x2a0] sm:$0xff]
      %v282 = vld [vmem:[%s172 + $0x2a8] sm:$0xf]
      %v283 = vld [vmem:[%s172 + $0x2ac] sm:$0xff]
      %v284 = vld [vmem:[%s172 + $0x2b4] sm:$0xff]
      %v285 = vld [vmem:[%s172 + $0x2bc] sm:$0xff]
      %v286 = vld [vmem:[%s172 + $0x2c4] sm:$0xff]
      %v287 = vld [vmem:[%s172 + $0x2cc] sm:$0xf]
      %v288 = vld [vmem:[%s172 + $0x2d0] sm:$0xff]
      %v289 = vld [vmem:[%s172 + $0x2d8] sm:$0xff]
      %v290 = vld [vmem:[%s172 + $0x2e0] sm:$0xff]
      %v291 = vld [vmem:[%s172 + $0x2e8] sm:$0xff]
      %v292 = vld [vmem:[%s172 + $0x2f0] sm:$0xf]
      %v293 = vld [vmem:[%s172 + $0x2f4] sm:$0xff]
      %v294 = vld [vmem:[%s172 + $0x2fc] sm:$0xff]
      %v295 = vld [vmem:[%s172 + $0x304] sm:$0xff]
      %v296 = vld [vmem:[%s172 + $0x30c] sm:$0xff]
      %v297 = vld [vmem:[%s172 + $0x314] sm:$0xf]
      %v298 = vld [vmem:[%s172 + $0x318] sm:$0xff]
      %v299 = vld [vmem:[%s172 + $0x320] sm:$0xff]
      %v300 = vld [vmem:[%s172 + $0x328] sm:$0xff]
      %v301 = vld [vmem:[%s172 + $0x330] sm:$0xff]
      %v302 = vld [vmem:[%s172 + $0x338] sm:$0xf]
      %v303 = vld [vmem:[%s172 + $0x33c] sm:$0xff]
      %v304 = vld [vmem:[%s172 + $0x344] sm:$0xff]
      %v305 = vld [vmem:[%s172 + $0x34c] sm:$0xff]
      %v306 = vld [vmem:[%s172 + $0x354] sm:$0xff]
      %v307 = vld [vmem:[%s172 + $0x35c] sm:$0xf]
      %v308 = vld [vmem:[%s172 + $0x360] sm:$0xff]
      %v309 = vld [vmem:[%s172 + $0x368] sm:$0xff]
      %v310 = vld [vmem:[%s172 + $0x370] sm:$0xff]
      %v311 = vld [vmem:[%s172 + $0x378] sm:$0xff]
      %v312 = vld [vmem:[%s172 + $0x380] sm:$0xf]
      %v313 = vld [vmem:[%s172 + $0x384] sm:$0xff]
      %v314 = vld [vmem:[%s172 + $0x38c] sm:$0xff]
      %v315 = vld [vmem:[%s172 + $0x394] sm:$0xff]
      %v316 = vld [vmem:[%s172 + $0x39c] sm:$0xff]
      %v317 = vld [vmem:[%s172 + $0x3a4] sm:$0xf]
      %v318 = vld [vmem:[%s172 + $0x3a8] sm:$0xff]
      %v319 = vld [vmem:[%s172 + $0x3b0] sm:$0xff]
      %v320 = vld [vmem:[%s172 + $0x3b8] sm:$0xff]
      %v321 = vld [vmem:[%s172 + $0x3c0] sm:$0xff]
      %v322 = vld [vmem:[%s172 + $0x3c8] sm:$0xf]
      %v323 = vld [vmem:[%s172 + $0x3cc] sm:$0xff]
      %v324 = vld [vmem:[%s172 + $0x3d4] sm:$0xff]
      %v325 = vld [vmem:[%s172 + $0x3dc] sm:$0xff]
      %v326 = vld [vmem:[%s172 + $0x3e4] sm:$0xff]
      %v327 = vld [vmem:[%s172 + $0x3ec] sm:$0xf]
      %v328 = vld [vmem:[%s172 + $0x3f0] sm:$0xff]
      %v329 = vld [vmem:[%s172 + $0x3f8] sm:$0xff]
      %v330 = vld [vmem:[%s172 + $0x400] sm:$0xff]
      %v331 = vld [vmem:[%s172 + $0x408] sm:$0xff]
      %v332 = vld [vmem:[%s172 + $0x410] sm:$0xf]
      %v333 = vld [vmem:[%s172 + $0x414] sm:$0xff]
      %v334 = vld [vmem:[%s172 + $0x41c] sm:$0xff]
      %v335 = vld [vmem:[%s172 + $0x424] sm:$0xff]
      %v336 = vld [vmem:[%s172 + $0x42c] sm:$0xff]
      %v337 = vld [vmem:[%s172 + $0x434] sm:$0xf]
      %v338 = vld [vmem:[%s172 + $0x438] sm:$0xff]
      %v339 = vld [vmem:[%s172 + $0x440] sm:$0xff]
      %v340 = vld [vmem:[%s172 + $0x448] sm:$0xff]
      %v341 = vld [vmem:[%s172 + $0x450] sm:$0xff]
      %v342 = vld [vmem:[%s172 + $0x458] sm:$0xf]
      %v343 = vld [vmem:[%s172 + $0x45c] sm:$0xff]
      %v344 = vld [vmem:[%s172 + $0x464] sm:$0xff]
      %v345 = vld [vmem:[%s172 + $0x46c] sm:$0xff]
      %v346 = vld [vmem:[%s172 + $0x474] sm:$0xff]
      %v347 = vld [vmem:[%s172 + $0x47c] sm:$0xf]
      %v348 = vld [vmem:[%s177] sm:$0xf]
      %v349 = vld [vmem:[%s177 + $0x4] sm:$0xf]
      %v350 = vld [vmem:[%s177 + $0x8] sm:$0xf]
      %v351 = vld [vmem:[%s177 + $0xc] sm:$0xf]
      %v352 = vld [vmem:[%s177 + $0x10] sm:$0xf]
      %v353 = vld [vmem:[%s177 + $0x14] sm:$0xf]
      %v354 = vld [vmem:[%s177 + $0x18] sm:$0xf]
      %v355 = vld [vmem:[%s177 + $0x1c] sm:$0xf]
      %v356 = vld [vmem:[%s177 + $0x20] sm:$0xf]
      %v357 = vld [vmem:[%s177 + $0x24] sm:$0xf]
      %v358 = vld [vmem:[%s177 + $0x28] sm:$0xf]
      %v359 = vld [vmem:[%s177 + $0x2c] sm:$0xf]
      %v360 = vld [vmem:[%s177 + $0x30] sm:$0xf]
      %v361 = vld [vmem:[%s177 + $0x34] sm:$0xf]
      %v362 = vld [vmem:[%s177 + $0x38] sm:$0xf]
      %v363 = vld [vmem:[%s177 + $0x3c] sm:$0xf]
      %v364 = vld [vmem:[%s177 + $0x40] sm:$0xf]
      %v365 = vld [vmem:[%s177 + $0x44] sm:$0xf]
      %v366 = vld [vmem:[%s177 + $0x48] sm:$0xf]
      %v367 = vld [vmem:[%s177 + $0x4c] sm:$0xf]
      %v368 = vld [vmem:[%s177 + $0x50] sm:$0xf]
      %v369 = vld [vmem:[%s177 + $0x54] sm:$0xf]
      %v370 = vld [vmem:[%s177 + $0x58] sm:$0xf]
      %v371 = vld [vmem:[%s177 + $0x5c] sm:$0xf]
      %v372 = vld [vmem:[%s177 + $0x60] sm:$0xf]
      %v373 = vld [vmem:[%s177 + $0x64] sm:$0xf]
      %v374 = vld [vmem:[%s177 + $0x68] sm:$0xf]
      %v375 = vld [vmem:[%s177 + $0x6c] sm:$0xf]
      %v376 = vld [vmem:[%s177 + $0x70] sm:$0xf]
      %v377 = vld [vmem:[%s177 + $0x74] sm:$0xf]
      %v378 = vld [vmem:[%s177 + $0x78] sm:$0xf]
      %v379 = vld [vmem:[%s177 + $0x7c] sm:$0xf]
      %v380 = vld [vmem:[%s177 + $0x80] sm:$0xf]
      %v381 = vld [vmem:[%s177 + $0x84] sm:$0xf]
      %v382 = vld [vmem:[%s177 + $0x88] sm:$0xf]
      %v383 = vld [vmem:[%s177 + $0x8c] sm:$0xf]
      %v384 = vld [vmem:[%s177 + $0x90] sm:$0xf]
      %v385 = vld [vmem:[%s177 + $0x94] sm:$0xf]
      %v386 = vld [vmem:[%s177 + $0x98] sm:$0xf]
      %v387 = vld [vmem:[%s177 + $0x9c] sm:$0xf]
      %v388 = vld [vmem:[%s177 + $0xa0] sm:$0xf]
      %v389 = vld [vmem:[%s177 + $0xa4] sm:$0xf]
      %v390 = vld [vmem:[%s177 + $0xa8] sm:$0xf]
      %v391 = vld [vmem:[%s177 + $0xac] sm:$0xf]
      %v392 = vld [vmem:[%s177 + $0xb0] sm:$0xf]
      %v393 = vld [vmem:[%s177 + $0xb4] sm:$0xf]
      %v394 = vld [vmem:[%s177 + $0xb8] sm:$0xf]
      %v395 = vld [vmem:[%s177 + $0xbc] sm:$0xf]
      %v396 = vld [vmem:[%s177 + $0xc0] sm:$0xf]
      %v397 = vld [vmem:[%s177 + $0xc4] sm:$0xf]
      %v398 = vld [vmem:[%s177 + $0xc8] sm:$0xf]
      %v399 = vld [vmem:[%s177 + $0xcc] sm:$0xf]
      %v400 = vld [vmem:[%s177 + $0xd0] sm:$0xf]
      %v401 = vld [vmem:[%s177 + $0xd4] sm:$0xf]
      %v402 = vld [vmem:[%s177 + $0xd8] sm:$0xf]
      %v403 = vld [vmem:[%s177 + $0xdc] sm:$0xf]
      %v404 = vld [vmem:[%s177 + $0xe0] sm:$0xf]
      %v405 = vld [vmem:[%s177 + $0xe4] sm:$0xf]
      %v406 = vld [vmem:[%s177 + $0xe8] sm:$0xf]
      %v407 = vld [vmem:[%s177 + $0xec] sm:$0xf]
      %v408 = vld [vmem:[%s177 + $0xf0] sm:$0xf]
      %v409 = vld [vmem:[%s177 + $0xf4] sm:$0xf]
      %v410 = vld [vmem:[%s177 + $0xf8] sm:$0xf]
      %v411 = vld [vmem:[%s177 + $0xfc] sm:$0xf]
      %v412 = vld [vmem:[%s177 + $0x100] sm:$0xf]
      %v413 = vld [vmem:[%s177 + $0x104] sm:$0xf]
      %v414 = vld [vmem:[%s177 + $0x108] sm:$0xf]
      %v415 = vld [vmem:[%s177 + $0x10c] sm:$0xf]
      %v416 = vld [vmem:[%s177 + $0x110] sm:$0xf]
      %v417 = vld [vmem:[%s177 + $0x114] sm:$0xf]
      %v418 = vld [vmem:[%s177 + $0x118] sm:$0xf]
      %v419 = vld [vmem:[%s177 + $0x11c] sm:$0xf]
      %v420 = vld [vmem:[%s177 + $0x120] sm:$0xf]
      %v421 = vld [vmem:[%s177 + $0x124] sm:$0xf]
      %v422 = vld [vmem:[%s177 + $0x128] sm:$0xf]
      %v423 = vld [vmem:[%s177 + $0x12c] sm:$0xf]
      %v424 = vld [vmem:[%s177 + $0x130] sm:$0xf]
      %v425 = vld [vmem:[%s177 + $0x134] sm:$0xf]
      %v426 = vld [vmem:[%s177 + $0x138] sm:$0xf]
      %v427 = vld [vmem:[%s177 + $0x13c] sm:$0xf]
      %v428 = vld [vmem:[%s177 + $0x140] sm:$0xf]
      %v429 = vld [vmem:[%s177 + $0x144] sm:$0xf]
      %v430 = vld [vmem:[%s177 + $0x148] sm:$0xf]
      %v431 = vld [vmem:[%s177 + $0x14c] sm:$0xf]
      %v432 = vld [vmem:[%s177 + $0x150] sm:$0xf]
      %v433 = vld [vmem:[%s177 + $0x154] sm:$0xf]
      %v434 = vld [vmem:[%s177 + $0x158] sm:$0xf]
      %v435 = vld [vmem:[%s177 + $0x15c] sm:$0xf]
      %v436 = vld [vmem:[%s177 + $0x160] sm:$0xf]
      %v437 = vld [vmem:[%s177 + $0x164] sm:$0xf]
      %v438 = vld [vmem:[%s177 + $0x168] sm:$0xf]
      %v439 = vld [vmem:[%s177 + $0x16c] sm:$0xf]
      %v440 = vld [vmem:[%s177 + $0x170] sm:$0xf]
      %v441 = vld [vmem:[%s177 + $0x174] sm:$0xf]
      %v442 = vld [vmem:[%s177 + $0x178] sm:$0xf]
      %v443 = vld [vmem:[%s177 + $0x17c] sm:$0xf]
      %v444 = vld [vmem:[%s177 + $0x180] sm:$0xf]
      %v445 = vld [vmem:[%s177 + $0x184] sm:$0xf]
      %v446 = vld [vmem:[%s177 + $0x188] sm:$0xf]
      %v447 = vld [vmem:[%s177 + $0x18c] sm:$0xf]
      %v448 = vld [vmem:[%s177 + $0x190] sm:$0xf]
      %v449 = vld [vmem:[%s177 + $0x194] sm:$0xf]
      %v450 = vld [vmem:[%s177 + $0x198] sm:$0xf]
      %v451 = vld [vmem:[%s177 + $0x19c] sm:$0xf]
      %v452 = vld [vmem:[%s177 + $0x1a0] sm:$0xf]
      %v453 = vld [vmem:[%s177 + $0x1a4] sm:$0xf]
      %v454 = vld [vmem:[%s177 + $0x1a8] sm:$0xf]
      %v455 = vld [vmem:[%s177 + $0x1ac] sm:$0xf]
      %v456 = vld [vmem:[%s177 + $0x1b0] sm:$0xf]
      %v457 = vld [vmem:[%s177 + $0x1b4] sm:$0xf]
      %v458 = vld [vmem:[%s177 + $0x1b8] sm:$0xf]
      %v459 = vld [vmem:[%s177 + $0x1bc] sm:$0xf]
      %v460 = vld [vmem:[%s177 + $0x1c0] sm:$0xf]
      %v461 = vld [vmem:[%s177 + $0x1c4] sm:$0xf]
      %v462 = vld [vmem:[%s177 + $0x1c8] sm:$0xf]
      %v463 = vld [vmem:[%s177 + $0x1cc] sm:$0xf]
      %v464 = vld [vmem:[%s177 + $0x1d0] sm:$0xf]
      %v465 = vld [vmem:[%s177 + $0x1d4] sm:$0xf]
      %v466 = vld [vmem:[%s177 + $0x1d8] sm:$0xf]
      %v467 = vld [vmem:[%s177 + $0x1dc] sm:$0xf]
      %v468 = vld [vmem:[%s177 + $0x1e0] sm:$0xf]
      %v469 = vld [vmem:[%s177 + $0x1e4] sm:$0xf]
      %v470 = vld [vmem:[%s177 + $0x1e8] sm:$0xf]
      %v471 = vld [vmem:[%s177 + $0x1ec] sm:$0xf]
      %v472 = vld [vmem:[%s177 + $0x1f0] sm:$0xf]
      %v473 = vld [vmem:[%s177 + $0x1f4] sm:$0xf]
      %v474 = vld [vmem:[%s177 + $0x1f8] sm:$0xf]
      %v475 = vld [vmem:[%s177 + $0x1fc] sm:$0xf]
      %v476 = vld [vmem:[%s177 + $0x200] sm:$0xf]
      %v477 = vld [vmem:[%s177 + $0x204] sm:$0xf]
      %v478 = vld [vmem:[%s177 + $0x208] sm:$0xf]
      %v479 = vld [vmem:[%s177 + $0x20c] sm:$0xf]
      %v480 = vld [vmem:[%s177 + $0x210] sm:$0xf]
      %v481 = vld [vmem:[%s177 + $0x214] sm:$0xf]
      %v482 = vld [vmem:[%s177 + $0x218] sm:$0xf]
      %v483 = vld [vmem:[%s177 + $0x21c] sm:$0xf]
      %v484 = vld [vmem:[%s177 + $0x220] sm:$0xf]
      %v485 = vld [vmem:[%s177 + $0x224] sm:$0xf]
      %v486 = vld [vmem:[%s177 + $0x228] sm:$0xf]
      %v487 = vld [vmem:[%s177 + $0x22c] sm:$0xf]
      %v488 = vld [vmem:[%s177 + $0x230] sm:$0xf]
      %v489 = vld [vmem:[%s177 + $0x234] sm:$0xf]
      %v490 = vld [vmem:[%s177 + $0x238] sm:$0xf]
      %v491 = vld [vmem:[%s177 + $0x23c] sm:$0xf]
      %v652 = vunpack.c.l.b16 %v188
      %v653 = vunpack.c.h.b16 %v188
      %v654 = vunpack.c.l.b16 %v189
      %v655 = vunpack.c.h.b16 %v189
      %v656 = vunpack.c.l.b16 %v190
      %v657 = vunpack.c.h.b16 %v190
      %v658 = vunpack.c.l.b16 %v191
      %v659 = vunpack.c.h.b16 %v191
      %v660 = vunpack.c.l.b16 %v192
      %v661 = vunpack.c.l.b16 %v193
      %v662 = vunpack.c.h.b16 %v193
      %v663 = vunpack.c.l.b16 %v194
      %v664 = vunpack.c.h.b16 %v194
      %v665 = vunpack.c.l.b16 %v195
      %v666 = vunpack.c.h.b16 %v195
      %v667 = vunpack.c.l.b16 %v196
      %v668 = vunpack.c.h.b16 %v196
      %v669 = vunpack.c.l.b16 %v197
      %v670 = vunpack.c.l.b16 %v198
      %v671 = vunpack.c.h.b16 %v198
      %v672 = vunpack.c.l.b16 %v199
      %v673 = vunpack.c.h.b16 %v199
      %v674 = vunpack.c.l.b16 %v200
      %v675 = vunpack.c.h.b16 %v200
      %v676 = vunpack.c.l.b16 %v201
      %v677 = vunpack.c.h.b16 %v201
      %v678 = vunpack.c.l.b16 %v202
      %v679 = vunpack.c.l.b16 %v203
      %v680 = vunpack.c.h.b16 %v203
      %v681 = vunpack.c.l.b16 %v204
      %v682 = vunpack.c.h.b16 %v204
      %v683 = vunpack.c.l.b16 %v205
      %v684 = vunpack.c.h.b16 %v205
      %v685 = vunpack.c.l.b16 %v206
      %v686 = vunpack.c.h.b16 %v206
      %v687 = vunpack.c.l.b16 %v207
      %v688 = vunpack.c.l.b16 %v208
      %v689 = vunpack.c.h.b16 %v208
      %v690 = vunpack.c.l.b16 %v209
      %v691 = vunpack.c.h.b16 %v209
      %v692 = vunpack.c.l.b16 %v210
      %v693 = vunpack.c.h.b16 %v210
      %v694 = vunpack.c.l.b16 %v211
      %v695 = vunpack.c.h.b16 %v211
      %v696 = vunpack.c.l.b16 %v212
      %v697 = vunpack.c.l.b16 %v213
      %v698 = vunpack.c.h.b16 %v213
      %v699 = vunpack.c.l.b16 %v214
      %v700 = vunpack.c.h.b16 %v214
      %v701 = vunpack.c.l.b16 %v215
      %v702 = vunpack.c.h.b16 %v215
      %v703 = vunpack.c.l.b16 %v216
      %v704 = vunpack.c.h.b16 %v216
      %v705 = vunpack.c.l.b16 %v217
      %v706 = vunpack.c.l.b16 %v218
      %v707 = vunpack.c.h.b16 %v218
      %v708 = vunpack.c.l.b16 %v219
      %v709 = vunpack.c.h.b16 %v219
      %v710 = vunpack.c.l.b16 %v220
      %v711 = vunpack.c.h.b16 %v220
      %v712 = vunpack.c.l.b16 %v221
      %v713 = vunpack.c.h.b16 %v221
      %v714 = vunpack.c.l.b16 %v222
      %v715 = vunpack.c.l.b16 %v223
      %v716 = vunpack.c.h.b16 %v223
      %v717 = vunpack.c.l.b16 %v224
      %v718 = vunpack.c.h.b16 %v224
      %v719 = vunpack.c.l.b16 %v225
      %v720 = vunpack.c.h.b16 %v225
      %v721 = vunpack.c.l.b16 %v226
      %v722 = vunpack.c.h.b16 %v226
      %v723 = vunpack.c.l.b16 %v227
      %v724 = vunpack.c.l.b16 %v228
      %v725 = vunpack.c.h.b16 %v228
      %v726 = vunpack.c.l.b16 %v229
      %v727 = vunpack.c.h.b16 %v229
      %v728 = vunpack.c.l.b16 %v230
      %v729 = vunpack.c.h.b16 %v230
      %v730 = vunpack.c.l.b16 %v231
      %v731 = vunpack.c.h.b16 %v231
      %v732 = vunpack.c.l.b16 %v232
      %v733 = vunpack.c.l.b16 %v233
      %v734 = vunpack.c.h.b16 %v233
      %v735 = vunpack.c.l.b16 %v234
      %v736 = vunpack.c.h.b16 %v234
      %v737 = vunpack.c.l.b16 %v235
      %v738 = vunpack.c.h.b16 %v235
      %v739 = vunpack.c.l.b16 %v236
      %v740 = vunpack.c.h.b16 %v236
      %v741 = vunpack.c.l.b16 %v237
      %v742 = vunpack.c.l.b16 %v238
      %v743 = vunpack.c.h.b16 %v238
      %v744 = vunpack.c.l.b16 %v239
      %v745 = vunpack.c.h.b16 %v239
      %v746 = vunpack.c.l.b16 %v240
      %v747 = vunpack.c.h.b16 %v240
      %v748 = vunpack.c.l.b16 %v241
      %v749 = vunpack.c.h.b16 %v241
      %v750 = vunpack.c.l.b16 %v242
      %v751 = vunpack.c.l.b16 %v243
      %v752 = vunpack.c.h.b16 %v243
      %v753 = vunpack.c.l.b16 %v244
      %v754 = vunpack.c.h.b16 %v244
      %v755 = vunpack.c.l.b16 %v245
      %v756 = vunpack.c.h.b16 %v245
      %v757 = vunpack.c.l.b16 %v246
      %v758 = vunpack.c.h.b16 %v246
      %v759 = vunpack.c.l.b16 %v247
      %v760 = vunpack.c.l.b16 %v248
      %v761 = vunpack.c.h.b16 %v248
      %v762 = vunpack.c.l.b16 %v249
      %v763 = vunpack.c.h.b16 %v249
      %v764 = vunpack.c.l.b16 %v250
      %v765 = vunpack.c.h.b16 %v250
      %v766 = vunpack.c.l.b16 %v251
      %v767 = vunpack.c.h.b16 %v251
      %v768 = vunpack.c.l.b16 %v252
      %v769 = vunpack.c.l.b16 %v253
      %v770 = vunpack.c.h.b16 %v253
      %v771 = vunpack.c.l.b16 %v254
      %v772 = vunpack.c.h.b16 %v254
      %v773 = vunpack.c.l.b16 %v255
      %v774 = vunpack.c.h.b16 %v255
      %v775 = vunpack.c.l.b16 %v256
      %v776 = vunpack.c.h.b16 %v256
      %v777 = vunpack.c.l.b16 %v257
      %v778 = vunpack.c.l.b16 %v258
      %v779 = vunpack.c.h.b16 %v258
      %v780 = vunpack.c.l.b16 %v259
      %v781 = vunpack.c.h.b16 %v259
      %v782 = vunpack.c.l.b16 %v260
      %v783 = vunpack.c.h.b16 %v260
      %v784 = vunpack.c.l.b16 %v261
      %v785 = vunpack.c.h.b16 %v261
      %v786 = vunpack.c.l.b16 %v262
      %v787 = vunpack.c.l.b16 %v263
      %v788 = vunpack.c.h.b16 %v263
      %v789 = vunpack.c.l.b16 %v264
      %v790 = vunpack.c.h.b16 %v264
      %v791 = vunpack.c.l.b16 %v265
      %v792 = vunpack.c.h.b16 %v265
      %v793 = vunpack.c.l.b16 %v266
      %v794 = vunpack.c.h.b16 %v266
      %v795 = vunpack.c.l.b16 %v267
      %v796 = vunpack.c.l.b16 %v268
      %v797 = vunpack.c.h.b16 %v268
      %v798 = vunpack.c.l.b16 %v269
      %v799 = vunpack.c.h.b16 %v269
      %v800 = vunpack.c.l.b16 %v270
      %v801 = vunpack.c.h.b16 %v270
      %v802 = vunpack.c.l.b16 %v271
      %v803 = vunpack.c.h.b16 %v271
      %v804 = vunpack.c.l.b16 %v272
      %v805 = vunpack.c.l.b16 %v273
      %v806 = vunpack.c.h.b16 %v273
      %v807 = vunpack.c.l.b16 %v274
      %v808 = vunpack.c.h.b16 %v274
      %v809 = vunpack.c.l.b16 %v275
      %v810 = vunpack.c.h.b16 %v275
      %v811 = vunpack.c.l.b16 %v276
      %v812 = vunpack.c.h.b16 %v276
      %v813 = vunpack.c.l.b16 %v277
      %v814 = vunpack.c.l.b16 %v278
      %v815 = vunpack.c.h.b16 %v278
      %v816 = vunpack.c.l.b16 %v279
      %v817 = vunpack.c.h.b16 %v279
      %v818 = vunpack.c.l.b16 %v280
      %v819 = vunpack.c.h.b16 %v280
      %v820 = vunpack.c.l.b16 %v281
      %v821 = vunpack.c.h.b16 %v281
      %v822 = vunpack.c.l.b16 %v282
      %v823 = vunpack.c.l.b16 %v283
      %v824 = vunpack.c.h.b16 %v283
      %v825 = vunpack.c.l.b16 %v284
      %v826 = vunpack.c.h.b16 %v284
      %v827 = vunpack.c.l.b16 %v285
      %v828 = vunpack.c.h.b16 %v285
      %v829 = vunpack.c.l.b16 %v286
      %v830 = vunpack.c.h.b16 %v286
      %v831 = vunpack.c.l.b16 %v287
      %v832 = vunpack.c.l.b16 %v288
      %v833 = vunpack.c.h.b16 %v288
      %v834 = vunpack.c.l.b16 %v289
      %v835 = vunpack.c.h.b16 %v289
      %v836 = vunpack.c.l.b16 %v290
      %v837 = vunpack.c.h.b16 %v290
      %v838 = vunpack.c.l.b16 %v291
      %v839 = vunpack.c.h.b16 %v291
      %v840 = vunpack.c.l.b16 %v292
      %v841 = vunpack.c.l.b16 %v293
      %v842 = vunpack.c.h.b16 %v293
      %v843 = vunpack.c.l.b16 %v294
      %v844 = vunpack.c.h.b16 %v294
      %v845 = vunpack.c.l.b16 %v295
      %v846 = vunpack.c.h.b16 %v295
      %v847 = vunpack.c.l.b16 %v296
      %v848 = vunpack.c.h.b16 %v296
      %v849 = vunpack.c.l.b16 %v297
      %v850 = vunpack.c.l.b16 %v298
      %v851 = vunpack.c.h.b16 %v298
      %v852 = vunpack.c.l.b16 %v299
      %v853 = vunpack.c.h.b16 %v299
      %v854 = vunpack.c.l.b16 %v300
      %v855 = vunpack.c.h.b16 %v300
      %v856 = vunpack.c.l.b16 %v301
      %v857 = vunpack.c.h.b16 %v301
      %v858 = vunpack.c.l.b16 %v302
      %v859 = vunpack.c.l.b16 %v303
      %v860 = vunpack.c.h.b16 %v303
      %v861 = vunpack.c.l.b16 %v304
      %v862 = vunpack.c.h.b16 %v304
      %v863 = vunpack.c.l.b16 %v305
      %v864 = vunpack.c.h.b16 %v305
      %v865 = vunpack.c.l.b16 %v306
      %v866 = vunpack.c.h.b16 %v306
      %v867 = vunpack.c.l.b16 %v307
      %v868 = vunpack.c.l.b16 %v308
      %v869 = vunpack.c.h.b16 %v308
      %v870 = vunpack.c.l.b16 %v309
      %v871 = vunpack.c.h.b16 %v309
      %v872 = vunpack.c.l.b16 %v310
      %v873 = vunpack.c.h.b16 %v310
      %v874 = vunpack.c.l.b16 %v311
      %v875 = vunpack.c.h.b16 %v311
      %v876 = vunpack.c.l.b16 %v312
      %v877 = vunpack.c.l.b16 %v313
      %v878 = vunpack.c.h.b16 %v313
      %v879 = vunpack.c.l.b16 %v314
      %v880 = vunpack.c.h.b16 %v314
      %v881 = vunpack.c.l.b16 %v315
      %v882 = vunpack.c.h.b16 %v315
      %v883 = vunpack.c.l.b16 %v316
      %v884 = vunpack.c.h.b16 %v316
      %v885 = vunpack.c.l.b16 %v317
      %v886 = vunpack.c.l.b16 %v318
      %v887 = vunpack.c.h.b16 %v318
      %v888 = vunpack.c.l.b16 %v319
      %v889 = vunpack.c.h.b16 %v319
      %v890 = vunpack.c.l.b16 %v320
      %v891 = vunpack.c.h.b16 %v320
      %v892 = vunpack.c.l.b16 %v321
      %v893 = vunpack.c.h.b16 %v321
      %v894 = vunpack.c.l.b16 %v322
      %v895 = vunpack.c.l.b16 %v323
      %v896 = vunpack.c.h.b16 %v323
      %v897 = vunpack.c.l.b16 %v324
      %v898 = vunpack.c.h.b16 %v324
      %v899 = vunpack.c.l.b16 %v325
      %v900 = vunpack.c.h.b16 %v325
      %v901 = vunpack.c.l.b16 %v326
      %v902 = vunpack.c.h.b16 %v326
      %v903 = vunpack.c.l.b16 %v327
      %v904 = vunpack.c.l.b16 %v328
      %v905 = vunpack.c.h.b16 %v328
      %v906 = vunpack.c.l.b16 %v329
      %v907 = vunpack.c.h.b16 %v329
      %v908 = vunpack.c.l.b16 %v330
      %v909 = vunpack.c.h.b16 %v330
      %v910 = vunpack.c.l.b16 %v331
      %v911 = vunpack.c.h.b16 %v331
      %v912 = vunpack.c.l.b16 %v332
      %v913 = vunpack.c.l.b16 %v333
      %v914 = vunpack.c.h.b16 %v333
      %v915 = vunpack.c.l.b16 %v334
      %v916 = vunpack.c.h.b16 %v334
      %v917 = vunpack.c.l.b16 %v335
      %v918 = vunpack.c.h.b16 %v335
      %v919 = vunpack.c.l.b16 %v336
      %v920 = vunpack.c.h.b16 %v336
      %v921 = vunpack.c.l.b16 %v337
      %v922 = vunpack.c.l.b16 %v338
      %v923 = vunpack.c.h.b16 %v338
      %v924 = vunpack.c.l.b16 %v339
      %v925 = vunpack.c.h.b16 %v339
      %v926 = vunpack.c.l.b16 %v340
      %v927 = vunpack.c.h.b16 %v340
      %v928 = vunpack.c.l.b16 %v341
      %v929 = vunpack.c.h.b16 %v341
      %v930 = vunpack.c.l.b16 %v342
      %v931 = vunpack.c.l.b16 %v343
      %v932 = vunpack.c.h.b16 %v343
      %v933 = vunpack.c.l.b16 %v344
      %v934 = vunpack.c.h.b16 %v344
      %v935 = vunpack.c.l.b16 %v345
      %v936 = vunpack.c.h.b16 %v345
      %v937 = vunpack.c.l.b16 %v346
      %v938 = vunpack.c.h.b16 %v346
      %v939 = vunpack.c.l.b16 %v347
      %v940 = vpack.c.b16 %v661, %v652
      %v941 = vpack.c.b16 %v662, %v653
      %v942 = vpack.c.b16 %v663, %v654
      %v943 = vpack.c.b16 %v664, %v655
      %v944 = vpack.c.b16 %v665, %v656
      %v945 = vpack.c.b16 %v666, %v657
      %v946 = vpack.c.b16 %v667, %v658
      %v947 = vpack.c.b16 %v668, %v659
      %v948 = vpack.c.b16 %v669, %v660
      %v949 = vpack.c.b16 %v679, %v670
      %v950 = vpack.c.b16 %v680, %v671
      %v951 = vpack.c.b16 %v681, %v672
      %v952 = vpack.c.b16 %v682, %v673
      %v953 = vpack.c.b16 %v683, %v674
      %v954 = vpack.c.b16 %v684, %v675
      %v955 = vpack.c.b16 %v685, %v676
      %v956 = vpack.c.b16 %v686, %v677
      %v957 = vpack.c.b16 %v687, %v678
      %v958 = vpack.c.b16 %v697, %v688
      %v959 = vpack.c.b16 %v698, %v689
      %v960 = vpack.c.b16 %v699, %v690
      %v961 = vpack.c.b16 %v700, %v691
      %v962 = vpack.c.b16 %v701, %v692
      %v963 = vpack.c.b16 %v702, %v693
      %v964 = vpack.c.b16 %v703, %v694
      %v965 = vpack.c.b16 %v704, %v695
      %v966 = vpack.c.b16 %v705, %v696
      %v967 = vpack.c.b16 %v715, %v706
      %v968 = vpack.c.b16 %v716, %v707
      %v969 = vpack.c.b16 %v717, %v708
      %v970 = vpack.c.b16 %v718, %v709
      %v971 = vpack.c.b16 %v719, %v710
      %v972 = vpack.c.b16 %v720, %v711
      %v973 = vpack.c.b16 %v721, %v712
      %v974 = vpack.c.b16 %v722, %v713
      %v975 = vpack.c.b16 %v723, %v714
      %v976 = vpack.c.b16 %v733, %v724
      %v977 = vpack.c.b16 %v734, %v725
      %v978 = vpack.c.b16 %v735, %v726
      %v979 = vpack.c.b16 %v736, %v727
      %v980 = vpack.c.b16 %v737, %v728
      %v981 = vpack.c.b16 %v738, %v729
      %v982 = vpack.c.b16 %v739, %v730
      %v983 = vpack.c.b16 %v740, %v731
      %v984 = vpack.c.b16 %v741, %v732
      %v985 = vpack.c.b16 %v751, %v742
      %v986 = vpack.c.b16 %v752, %v743
      %v987 = vpack.c.b16 %v753, %v744
      %v988 = vpack.c.b16 %v754, %v745
      %v989 = vpack.c.b16 %v755, %v746
      %v990 = vpack.c.b16 %v756, %v747
      %v991 = vpack.c.b16 %v757, %v748
      %v992 = vpack.c.b16 %v758, %v749
      %v993 = vpack.c.b16 %v759, %v750
      %v994 = vpack.c.b16 %v769, %v760
      %v995 = vpack.c.b16 %v770, %v761
      %v996 = vpack.c.b16 %v771, %v762
      %v997 = vpack.c.b16 %v772, %v763
      %v998 = vpack.c.b16 %v773, %v764
      %v999 = vpack.c.b16 %v774, %v765
      %v1000 = vpack.c.b16 %v775, %v766
      %v1001 = vpack.c.b16 %v776, %v767
      %v1002 = vpack.c.b16 %v777, %v768
      %v1003 = vpack.c.b16 %v787, %v778
      %v1004 = vpack.c.b16 %v788, %v779
      %v1005 = vpack.c.b16 %v789, %v780
      %v1006 = vpack.c.b16 %v790, %v781
      %v1007 = vpack.c.b16 %v791, %v782
      %v1008 = vpack.c.b16 %v792, %v783
      %v1009 = vpack.c.b16 %v793, %v784
      %v1010 = vpack.c.b16 %v794, %v785
      %v1011 = vpack.c.b16 %v795, %v786
      %v1012 = vpack.c.b16 %v805, %v796
      %v1013 = vpack.c.b16 %v806, %v797
      %v1014 = vpack.c.b16 %v807, %v798
      %v1015 = vpack.c.b16 %v808, %v799
      %v1016 = vpack.c.b16 %v809, %v800
      %v1017 = vpack.c.b16 %v810, %v801
      %v1018 = vpack.c.b16 %v811, %v802
      %v1019 = vpack.c.b16 %v812, %v803
      %v1020 = vpack.c.b16 %v813, %v804
      %v1021 = vpack.c.b16 %v823, %v814
      %v1022 = vpack.c.b16 %v824, %v815
      %v1023 = vpack.c.b16 %v825, %v816
      %v1024 = vpack.c.b16 %v826, %v817
      %v1025 = vpack.c.b16 %v827, %v818
      %v1026 = vpack.c.b16 %v828, %v819
      %v1027 = vpack.c.b16 %v829, %v820
      %v1028 = vpack.c.b16 %v830, %v821
      %v1029 = vpack.c.b16 %v831, %v822
      %v1030 = vpack.c.b16 %v841, %v832
      %v1031 = vpack.c.b16 %v842, %v833
      %v1032 = vpack.c.b16 %v843, %v834
      %v1033 = vpack.c.b16 %v844, %v835
      %v1034 = vpack.c.b16 %v845, %v836
      %v1035 = vpack.c.b16 %v846, %v837
      %v1036 = vpack.c.b16 %v847, %v838
      %v1037 = vpack.c.b16 %v848, %v839
      %v1038 = vpack.c.b16 %v849, %v840
      %v1039 = vpack.c.b16 %v859, %v850
      %v1040 = vpack.c.b16 %v860, %v851
      %v1041 = vpack.c.b16 %v861, %v852
      %v1042 = vpack.c.b16 %v862, %v853
      %v1043 = vpack.c.b16 %v863, %v854
      %v1044 = vpack.c.b16 %v864, %v855
      %v1045 = vpack.c.b16 %v865, %v856
      %v1046 = vpack.c.b16 %v866, %v857
      %v1047 = vpack.c.b16 %v867, %v858
      %v1048 = vpack.c.b16 %v877, %v868
      %v1049 = vpack.c.b16 %v878, %v869
      %v1050 = vpack.c.b16 %v879, %v870
      %v1051 = vpack.c.b16 %v880, %v871
      %v1052 = vpack.c.b16 %v881, %v872
      %v1053 = vpack.c.b16 %v882, %v873
      %v1054 = vpack.c.b16 %v883, %v874
      %v1055 = vpack.c.b16 %v884, %v875
      %v1056 = vpack.c.b16 %v885, %v876
      %v1057 = vpack.c.b16 %v895, %v886
      %v1058 = vpack.c.b16 %v896, %v887
      %v1059 = vpack.c.b16 %v897, %v888
      %v1060 = vpack.c.b16 %v898, %v889
      %v1061 = vpack.c.b16 %v899, %v890
      %v1062 = vpack.c.b16 %v900, %v891
      %v1063 = vpack.c.b16 %v901, %v892
      %v1064 = vpack.c.b16 %v902, %v893
      %v1065 = vpack.c.b16 %v903, %v894
      %v1066 = vpack.c.b16 %v913, %v904
      %v1067 = vpack.c.b16 %v914, %v905
      %v1068 = vpack.c.b16 %v915, %v906
      %v1069 = vpack.c.b16 %v916, %v907
      %v1070 = vpack.c.b16 %v917, %v908
      %v1071 = vpack.c.b16 %v918, %v909
      %v1072 = vpack.c.b16 %v919, %v910
      %v1073 = vpack.c.b16 %v920, %v911
      %v1074 = vpack.c.b16 %v921, %v912
      %v1075 = vpack.c.b16 %v931, %v922
      %v1076 = vpack.c.b16 %v932, %v923
      %v1077 = vpack.c.b16 %v933, %v924
      %v1078 = vpack.c.b16 %v934, %v925
      %v1079 = vpack.c.b16 %v935, %v926
      %v1080 = vpack.c.b16 %v936, %v927
      %v1081 = vpack.c.b16 %v937, %v928
      %v1082 = vpack.c.b16 %v938, %v929
      %v1083 = vpack.c.b16 %v939, %v930
      %v1372 = vunpack.c.l.b16 %v348
      %v1373 = vunpack.c.l.b16 %v349
      %v1374 = vunpack.c.l.b16 %v350
      %v1375 = vunpack.c.l.b16 %v351
      %v1376 = vunpack.c.l.b16 %v352
      %v1377 = vunpack.c.l.b16 %v353
      %v1378 = vunpack.c.l.b16 %v354
      %v1379 = vunpack.c.l.b16 %v355
      %v1380 = vunpack.c.l.b16 %v356
      %v1381 = vunpack.c.l.b16 %v357
      %v1382 = vunpack.c.l.b16 %v358
      %v1383 = vunpack.c.l.b16 %v359
      %v1384 = vunpack.c.l.b16 %v360
      %v1385 = vunpack.c.l.b16 %v361
      %v1386 = vunpack.c.l.b16 %v362
      %v1387 = vunpack.c.l.b16 %v363
      %v1388 = vunpack.c.l.b16 %v364
      %v1389 = vunpack.c.l.b16 %v365
      %v1390 = vunpack.c.l.b16 %v366
      %v1391 = vunpack.c.l.b16 %v367
      %v1392 = vunpack.c.l.b16 %v368
      %v1393 = vunpack.c.l.b16 %v369
      %v1394 = vunpack.c.l.b16 %v370
      %v1395 = vunpack.c.l.b16 %v371
      %v1396 = vunpack.c.l.b16 %v372
      %v1397 = vunpack.c.l.b16 %v373
      %v1398 = vunpack.c.l.b16 %v374
      %v1399 = vunpack.c.l.b16 %v375
      %v1400 = vunpack.c.l.b16 %v376
      %v1401 = vunpack.c.l.b16 %v377
      %v1402 = vunpack.c.l.b16 %v378
      %v1403 = vunpack.c.l.b16 %v379
      %v1404 = vunpack.c.l.b16 %v380
      %v1405 = vunpack.c.l.b16 %v381
      %v1406 = vunpack.c.l.b16 %v382
      %v1407 = vunpack.c.l.b16 %v383
      %v1408 = vunpack.c.l.b16 %v384
      %v1409 = vunpack.c.l.b16 %v385
      %v1410 = vunpack.c.l.b16 %v386
      %v1411 = vunpack.c.l.b16 %v387
      %v1412 = vunpack.c.l.b16 %v388
      %v1413 = vunpack.c.l.b16 %v389
      %v1414 = vunpack.c.l.b16 %v390
      %v1415 = vunpack.c.l.b16 %v391
      %v1416 = vunpack.c.l.b16 %v392
      %v1417 = vunpack.c.l.b16 %v393
      %v1418 = vunpack.c.l.b16 %v394
      %v1419 = vunpack.c.l.b16 %v395
      %v1420 = vunpack.c.l.b16 %v396
      %v1421 = vunpack.c.l.b16 %v397
      %v1422 = vunpack.c.l.b16 %v398
      %v1423 = vunpack.c.l.b16 %v399
      %v1424 = vunpack.c.l.b16 %v400
      %v1425 = vunpack.c.l.b16 %v401
      %v1426 = vunpack.c.l.b16 %v402
      %v1427 = vunpack.c.l.b16 %v403
      %v1428 = vunpack.c.l.b16 %v404
      %v1429 = vunpack.c.l.b16 %v405
      %v1430 = vunpack.c.l.b16 %v406
      %v1431 = vunpack.c.l.b16 %v407
      %v1432 = vunpack.c.l.b16 %v408
      %v1433 = vunpack.c.l.b16 %v409
      %v1434 = vunpack.c.l.b16 %v410
      %v1435 = vunpack.c.l.b16 %v411
      %v1436 = vunpack.c.l.b16 %v412
      %v1437 = vunpack.c.l.b16 %v413
      %v1438 = vunpack.c.l.b16 %v414
      %v1439 = vunpack.c.l.b16 %v415
      %v1440 = vunpack.c.l.b16 %v416
      %v1441 = vunpack.c.l.b16 %v417
      %v1442 = vunpack.c.l.b16 %v418
      %v1443 = vunpack.c.l.b16 %v419
      %v1444 = vunpack.c.l.b16 %v420
      %v1445 = vunpack.c.l.b16 %v421
      %v1446 = vunpack.c.l.b16 %v422
      %v1447 = vunpack.c.l.b16 %v423
      %v1448 = vunpack.c.l.b16 %v424
      %v1449 = vunpack.c.l.b16 %v425
      %v1450 = vunpack.c.l.b16 %v426
      %v1451 = vunpack.c.l.b16 %v427
      %v1452 = vunpack.c.l.b16 %v428
      %v1453 = vunpack.c.l.b16 %v429
      %v1454 = vunpack.c.l.b16 %v430
      %v1455 = vunpack.c.l.b16 %v431
      %v1456 = vunpack.c.l.b16 %v432
      %v1457 = vunpack.c.l.b16 %v433
      %v1458 = vunpack.c.l.b16 %v434
      %v1459 = vunpack.c.l.b16 %v435
      %v1460 = vunpack.c.l.b16 %v436
      %v1461 = vunpack.c.l.b16 %v437
      %v1462 = vunpack.c.l.b16 %v438
      %v1463 = vunpack.c.l.b16 %v439
      %v1464 = vunpack.c.l.b16 %v440
      %v1465 = vunpack.c.l.b16 %v441
      %v1466 = vunpack.c.l.b16 %v442
      %v1467 = vunpack.c.l.b16 %v443
      %v1468 = vunpack.c.l.b16 %v444
      %v1469 = vunpack.c.l.b16 %v445
      %v1470 = vunpack.c.l.b16 %v446
      %v1471 = vunpack.c.l.b16 %v447
      %v1472 = vunpack.c.l.b16 %v448
      %v1473 = vunpack.c.l.b16 %v449
      %v1474 = vunpack.c.l.b16 %v450
      %v1475 = vunpack.c.l.b16 %v451
      %v1476 = vunpack.c.l.b16 %v452
      %v1477 = vunpack.c.l.b16 %v453
      %v1478 = vunpack.c.l.b16 %v454
      %v1479 = vunpack.c.l.b16 %v455
      %v1480 = vunpack.c.l.b16 %v456
      %v1481 = vunpack.c.l.b16 %v457
      %v1482 = vunpack.c.l.b16 %v458
      %v1483 = vunpack.c.l.b16 %v459
      %v1484 = vunpack.c.l.b16 %v460
      %v1485 = vunpack.c.l.b16 %v461
      %v1486 = vunpack.c.l.b16 %v462
      %v1487 = vunpack.c.l.b16 %v463
      %v1488 = vunpack.c.l.b16 %v464
      %v1489 = vunpack.c.l.b16 %v465
      %v1490 = vunpack.c.l.b16 %v466
      %v1491 = vunpack.c.l.b16 %v467
      %v1492 = vunpack.c.l.b16 %v468
      %v1493 = vunpack.c.l.b16 %v469
      %v1494 = vunpack.c.l.b16 %v470
      %v1495 = vunpack.c.l.b16 %v471
      %v1496 = vunpack.c.l.b16 %v472
      %v1497 = vunpack.c.l.b16 %v473
      %v1498 = vunpack.c.l.b16 %v474
      %v1499 = vunpack.c.l.b16 %v475
      %v1500 = vunpack.c.l.b16 %v476
      %v1501 = vunpack.c.l.b16 %v477
      %v1502 = vunpack.c.l.b16 %v478
      %v1503 = vunpack.c.l.b16 %v479
      %v1504 = vunpack.c.l.b16 %v480
      %v1505 = vunpack.c.l.b16 %v481
      %v1506 = vunpack.c.l.b16 %v482
      %v1507 = vunpack.c.l.b16 %v483
      %v1508 = vunpack.c.l.b16 %v484
      %v1509 = vunpack.c.l.b16 %v485
      %v1510 = vunpack.c.l.b16 %v486
      %v1511 = vunpack.c.l.b16 %v487
      %v1512 = vunpack.c.l.b16 %v488
      %v1513 = vunpack.c.l.b16 %v489
      %v1514 = vunpack.c.l.b16 %v490
      %v1515 = vunpack.c.l.b16 %v491
      %v1516 = vpack.c.b16 %v1373, %v1372
      %v1517 = vpack.c.b16 %v1375, %v1374
      %v1518 = vpack.c.b16 %v1377, %v1376
      %v1519 = vpack.c.b16 %v1379, %v1378
      %v1520 = vpack.c.b16 %v1381, %v1380
      %v1521 = vpack.c.b16 %v1383, %v1382
      %v1522 = vpack.c.b16 %v1385, %v1384
      %v1523 = vpack.c.b16 %v1387, %v1386
      %v1524 = vpack.c.b16 %v1389, %v1388
      %v1525 = vpack.c.b16 %v1391, %v1390
      %v1526 = vpack.c.b16 %v1393, %v1392
      %v1527 = vpack.c.b16 %v1395, %v1394
      %v1528 = vpack.c.b16 %v1397, %v1396
      %v1529 = vpack.c.b16 %v1399, %v1398
      %v1530 = vpack.c.b16 %v1401, %v1400
      %v1531 = vpack.c.b16 %v1403, %v1402
      %v1532 = vpack.c.b16 %v1405, %v1404
      %v1533 = vpack.c.b16 %v1407, %v1406
      %v1534 = vpack.c.b16 %v1409, %v1408
      %v1535 = vpack.c.b16 %v1411, %v1410
      %v1536 = vpack.c.b16 %v1413, %v1412
      %v1537 = vpack.c.b16 %v1415, %v1414
      %v1538 = vpack.c.b16 %v1417, %v1416
      %v1539 = vpack.c.b16 %v1419, %v1418
      %v1540 = vpack.c.b16 %v1421, %v1420
      %v1541 = vpack.c.b16 %v1423, %v1422
      %v1542 = vpack.c.b16 %v1425, %v1424
      %v1543 = vpack.c.b16 %v1427, %v1426
      %v1544 = vpack.c.b16 %v1429, %v1428
      %v1545 = vpack.c.b16 %v1431, %v1430
      %v1546 = vpack.c.b16 %v1433, %v1432
      %v1547 = vpack.c.b16 %v1435, %v1434
      %v1548 = vpack.c.b16 %v1437, %v1436
      %v1549 = vpack.c.b16 %v1439, %v1438
      %v1550 = vpack.c.b16 %v1441, %v1440
      %v1551 = vpack.c.b16 %v1443, %v1442
      %v1552 = vpack.c.b16 %v1445, %v1444
      %v1553 = vpack.c.b16 %v1447, %v1446
      %v1554 = vpack.c.b16 %v1449, %v1448
      %v1555 = vpack.c.b16 %v1451, %v1450
      %v1556 = vpack.c.b16 %v1453, %v1452
      %v1557 = vpack.c.b16 %v1455, %v1454
      %v1558 = vpack.c.b16 %v1457, %v1456
      %v1559 = vpack.c.b16 %v1459, %v1458
      %v1560 = vpack.c.b16 %v1461, %v1460
      %v1561 = vpack.c.b16 %v1463, %v1462
      %v1562 = vpack.c.b16 %v1465, %v1464
      %v1563 = vpack.c.b16 %v1467, %v1466
      %v1564 = vpack.c.b16 %v1469, %v1468
      %v1565 = vpack.c.b16 %v1471, %v1470
      %v1566 = vpack.c.b16 %v1473, %v1472
      %v1567 = vpack.c.b16 %v1475, %v1474
      %v1568 = vpack.c.b16 %v1477, %v1476
      %v1569 = vpack.c.b16 %v1479, %v1478
      %v1570 = vpack.c.b16 %v1481, %v1480
      %v1571 = vpack.c.b16 %v1483, %v1482
      %v1572 = vpack.c.b16 %v1485, %v1484
      %v1573 = vpack.c.b16 %v1487, %v1486
      %v1574 = vpack.c.b16 %v1489, %v1488
      %v1575 = vpack.c.b16 %v1491, %v1490
      %v1576 = vpack.c.b16 %v1493, %v1492
      %v1577 = vpack.c.b16 %v1495, %v1494
      %v1578 = vpack.c.b16 %v1497, %v1496
      %v1579 = vpack.c.b16 %v1499, %v1498
      %v1580 = vpack.c.b16 %v1501, %v1500
      %v1581 = vpack.c.b16 %v1503, %v1502
      %v1582 = vpack.c.b16 %v1505, %v1504
      %v1583 = vpack.c.b16 %v1507, %v1506
      %v1584 = vpack.c.b16 %v1509, %v1508
      %v1585 = vpack.c.b16 %v1511, %v1510
      %v1586 = vpack.c.b16 %v1513, %v1512
      %v1587 = vpack.c.b16 %v1515, %v1514
      %1660 = vmatprep.subr.bf16.mxu0 0
      %1661 = vmatpush1.bf16.msra.mxu0 %v1516
      %1662 = vmatprep.subr.bf16.mxu0 0
      %1663 = vmatpush1.bf16.msra.mxu0 %v1517
      %1664 = vmatprep.subr.bf16.mxu0 0
      %1665 = vmatpush1.bf16.msra.mxu0 %v1518
      %1666 = vmatprep.subr.bf16.mxu0 0
      %1667 = vmatpush1.bf16.msra.mxu0 %v1519
      %1668 = vmatprep.subr.bf16.mxu0 0
      %1669 = vmatpush1.bf16.msra.mxu0 %v1520
      %1670 = vmatprep.subr.bf16.mxu0 0
      %1671 = vmatpush1.bf16.msra.mxu0 %v1521
      %1672 = vmatprep.subr.bf16.mxu0 0
      %1673 = vmatpush1.bf16.msra.mxu0 %v1522
      %1674 = vmatprep.subr.bf16.mxu0 0
      %1675 = vmatpush1.bf16.msra.mxu0 %v1523
      %1676 = vmatprep.subr.bf16.mxu0 0
      %1677 = vmatpush1.bf16.msra.mxu0 %v1524
      %1678 = vmatprep.subr.bf16.mxu0 0
      %1679 = vmatpush1.bf16.msra.mxu0 %v1525
      %1680 = vmatprep.subr.bf16.mxu0 0
      %1681 = vmatpush1.bf16.msra.mxu0 %v1526
      %1682 = vmatprep.subr.bf16.mxu0 0
      %1683 = vmatpush1.bf16.msra.mxu0 %v1527
      %1684 = vmatprep.subr.bf16.mxu0 0
      %1685 = vmatpush1.bf16.msra.mxu0 %v1528
      %1686 = vmatprep.subr.bf16.mxu0 0
      %1687 = vmatpush1.bf16.msra.mxu0 %v1529
      %1688 = vmatprep.subr.bf16.mxu0 0
      %1689 = vmatpush1.bf16.msra.mxu0 %v1530
      %1690 = vmatprep.subr.bf16.mxu0 0
      %1691 = vmatpush1.bf16.msra.mxu0 %v1531
      %1692 = vmatprep.mubr.bf16.mxu0 %v941
      %1693 = vmatmul.mubr.bf16.gmra.mrb[0].mxu0 %v940
      %v1694 = vpop.f32.mrb[0].mxu0
      %v1695 = vadd.f32 0.0, %v1694
      %v1696 = vpop.f32.mrb[0].mxu0
      %v1697 = vpop.f32.mrb[0].mxu0
      %v1698 = vadd.f32 0.0, %v1697
      %v1699 = vpop.f32.mrb[0].mxu0
      %1700 = vmatprep.mubr.bf16.mxu0 %v950
      %1701 = vmatmul.mubr.bf16.gmra.mrb[0].mxu0 %v949
      %v1702 = vpop.f32.mrb[0].mxu0
      %v1703 = vadd.f32 0.0, %v1702
      %v1704 = vpop.f32.mrb[0].mxu0
      %v1705 = vpop.f32.mrb[0].mxu0
      %v1706 = vadd.f32 0.0, %v1705
      %v1707 = vpop.f32.mrb[0].mxu0
      %1708 = vmatprep.mubr.bf16.mxu0 %v959
      %1709 = vmatmul.mubr.bf16.gmra.mrb[0].mxu0 %v958
      %v1710 = vpop.f32.mrb[0].mxu0
      %v1711 = vadd.f32 0.0, %v1710
      %v1712 = vpop.f32.mrb[0].mxu0
      %v1713 = vpop.f32.mrb[0].mxu0
      %v1714 = vadd.f32 0.0, %v1713
      %v1715 = vpop.f32.mrb[0].mxu0
      %1716 = vmatprep.mubr.bf16.mxu0 %v968
      %1717 = vmatmul.mubr.bf16.gmra.mrb[0].mxu0 %v967
      %v1718 = vpop.f32.mrb[0].mxu0
      %v1719 = vadd.f32 0.0, %v1718
      %v1720 = vpop.f32.mrb[0].mxu0
      %v1721 = vpop.f32.mrb[0].mxu0
      %v1722 = vadd.f32 0.0, %v1721
      %v1723 = vpop.f32.mrb[0].mxu0
      %1724 = vmatprep.mubr.bf16.mxu0 %v977
      %1725 = vmatmul.mubr.bf16.gmra.mrb[0].mxu0 %v976
      %v1726 = vpop.f32.mrb[0].mxu0
      %v1727 = vadd.f32 0.0, %v1726
      %v1728 = vpop.f32.mrb[0].mxu0
      %v1729 = vpop.f32.mrb[0].mxu0
      %v1730 = vadd.f32 0.0, %v1729
      %v1731 = vpop.f32.mrb[0].mxu0
      %1732 = vmatprep.mubr.bf16.mxu0 %v986
      %1733 = vmatmul.mubr.bf16.gmra.mrb[0].mxu0 %v985
      %v1734 = vpop.f32.mrb[0].mxu0
      %v1735 = vadd.f32 0.0, %v1734
      %v1736 = vpop.f32.mrb[0].mxu0
      %v1737 = vpop.f32.mrb[0].mxu0
      %v1738 = vadd.f32 0.0, %v1737
      %v1739 = vpop.f32.mrb[0].mxu0
      %1740 = vmatprep.mubr.bf16.mxu0 %v995
      %1741 = vmatmul.mubr.bf16.gmra.mrb[0].mxu0 %v994
      %v1742 = vpop.f32.mrb[0].mxu0
      %v1743 = vadd.f32 0.0, %v1742
      %v1744 = vpop.f32.mrb[0].mxu0
      %v1745 = vpop.f32.mrb[0].mxu0
      %v1746 = vadd.f32 0.0, %v1745
      %v1747 = vpop.f32.mrb[0].mxu0
      %1748 = vmatprep.mubr.bf16.mxu0 %v1004
      %1749 = vmatmul.mubr.bf16.gmra.mrb[0].mxu0 %v1003
      %v1750 = vpop.f32.mrb[0].mxu0
      %v1751 = vadd.f32 0.0, %v1750
      %v1752 = vpop.f32.mrb[0].mxu0
      %v1753 = vpop.f32.mrb[0].mxu0
      %v1754 = vadd.f32 0.0, %v1753
      %v1755 = vpop.f32.mrb[0].mxu0
      %1756 = vmatprep.mubr.bf16.mxu0 %v1013
      %1757 = vmatmul.mubr.bf16.gmra.mrb[0].mxu0 %v1012
      %v1758 = vpop.f32.mrb[0].mxu0
      %v1759 = vadd.f32 0.0, %v1758
      %v1760 = vpop.f32.mrb[0].mxu0
      %v1761 = vpop.f32.mrb[0].mxu0
      %v1762 = vadd.f32 0.0, %v1761
      %v1763 = vpop.f32.mrb[0].mxu0
      %1764 = vmatprep.mubr.bf16.mxu0 %v1022
      %1765 = vmatmul.mubr.bf16.gmra.mrb[0].mxu0 %v1021
      %v1766 = vpop.f32.mrb[0].mxu0
      %v1767 = vadd.f32 0.0, %v1766
      %v1768 = vpop.f32.mrb[0].mxu0
      %v1769 = vpop.f32.mrb[0].mxu0
      %v1770 = vadd.f32 0.0, %v1769
      %v1771 = vpop.f32.mrb[0].mxu0
      %1772 = vmatprep.mubr.bf16.mxu0 %v1031
      %1773 = vmatmul.mubr.bf16.gmra.mrb[0].mxu0 %v1030
      %v1774 = vpop.f32.mrb[0].mxu0
      %v1775 = vadd.f32 0.0, %v1774
      %v1776 = vpop.f32.mrb[0].mxu0
      %v1777 = vpop.f32.mrb[0].mxu0
      %v1778 = vadd.f32 0.0, %v1777
      %v1779 = vpop.f32.mrb[0].mxu0
      %1780 = vmatprep.mubr.bf16.mxu0 %v1040
      %1781 = vmatmul.mubr.bf16.gmra.mrb[0].mxu0 %v1039
      %v1782 = vpop.f32.mrb[0].mxu0
      %v1783 = vadd.f32 0.0, %v1782
      %v1784 = vpop.f32.mrb[0].mxu0
      %v1785 = vpop.f32.mrb[0].mxu0
      %v1786 = vadd.f32 0.0, %v1785
      %v1787 = vpop.f32.mrb[0].mxu0
      %1788 = vmatprep.mubr.bf16.mxu0 %v1049
      %1789 = vmatmul.mubr.bf16.gmra.mrb[0].mxu0 %v1048
      %v1790 = vpop.f32.mrb[0].mxu0
      %v1791 = vadd.f32 0.0, %v1790
      %v1792 = vpop.f32.mrb[0].mxu0
      %v1793 = vpop.f32.mrb[0].mxu0
      %v1794 = vadd.f32 0.0, %v1793
      %v1795 = vpop.f32.mrb[0].mxu0
      %1796 = vmatprep.mubr.bf16.mxu0 %v1058
      %1797 = vmatmul.mubr.bf16.gmra.mrb[0].mxu0 %v1057
      %v1798 = vpop.f32.mrb[0].mxu0
      %v1799 = vadd.f32 0.0, %v1798
      %v1800 = vpop.f32.mrb[0].mxu0
      %v1801 = vpop.f32.mrb[0].mxu0
      %v1802 = vadd.f32 0.0, %v1801
      %v1803 = vpop.f32.mrb[0].mxu0
      %1804 = vmatprep.mubr.bf16.mxu0 %v1067
      %1805 = vmatmul.mubr.bf16.gmra.mrb[0].mxu0 %v1066
      %v1806 = vpop.f32.mrb[0].mxu0
      %v1807 = vadd.f32 0.0, %v1806
      %v1808 = vpop.f32.mrb[0].mxu0
      %v1809 = vpop.f32.mrb[0].mxu0
      %v1810 = vadd.f32 0.0, %v1809
      %v1811 = vpop.f32.mrb[0].mxu0
      %1812 = vmatprep.mubr.bf16.mxu0 %v1076
      %1813 = vmatmul.mubr.bf16.gmra.mrb[0].mxu0 %v1075
      %v1814 = vpop.f32.mrb[0].mxu0
      %v1815 = vadd.f32 0.0, %v1814
      %v1816 = vpop.f32.mrb[0].mxu0
      %v1817 = vpop.f32.mrb[0].mxu0
      %v1818 = vadd.f32 0.0, %v1817
      %v1819 = vpop.f32.mrb[0].mxu0
      %1820 = vdwg.mxu0
      %1821 = vmatprep.subr.bf16.mxu0 0
      %1822 = vmatpush1.bf16.msra.mxu0 %v1532
      %1823 = vmatprep.subr.bf16.mxu0 0
      %1824 = vmatpush1.bf16.msra.mxu0 %v1533
      %1825 = vmatprep.subr.bf16.mxu0 0
      %1826 = vmatpush1.bf16.msra.mxu0 %v1534
      %1827 = vmatprep.subr.bf16.mxu0 0
      %1828 = vmatpush1.bf16.msra.mxu0 %v1535
      %1829 = vmatprep.subr.bf16.mxu0 0
      %1830 = vmatpush1.bf16.msra.mxu0 %v1536
      %1831 = vmatprep.subr.bf16.mxu0 0
      %1832 = vmatpush1.bf16.msra.mxu0 %v1537
      %1833 = vmatprep.subr.bf16.mxu0 0
      %1834 = vmatpush1.bf16.msra.mxu0 %v1538
      %1835 = vmatprep.subr.bf16.mxu0 0
      %1836 = vmatpush1.bf16.msra.mxu0 %v1539
      %1837 = vmatprep.subr.bf16.mxu0 0
      %1838 = vmatpush1.bf16.msra.mxu0 %v1540
      %1839 = vmatprep.subr.bf16.mxu0 0
      %1840 = vmatpush1.bf16.msra.mxu0 %v1541
      %1841 = vmatprep.subr.bf16.mxu0 0
      %1842 = vmatpush1.bf16.msra.mxu0 %v1542
      %1843 = vmatprep.subr.bf16.mxu0 0
      %1844 = vmatpush1.bf16.msra.mxu0 %v1543
      %1845 = vmatprep.subr.bf16.mxu0 0
      %1846 = vmatpush1.bf16.msra.mxu0 %v1544
      %1847 = vmatprep.subr.bf16.mxu0 0
      %1848 = vmatpush1.bf16.msra.mxu0 %v1545
      %1849 = vmatprep.subr.bf16.mxu0 0
      %1850 = vmatpush1.bf16.msra.mxu0 %v1546
      %1851 = vmatprep.subr.bf16.mxu0 0
      %1852 = vmatpush1.bf16.msra.mxu0 %v1547
      %1853 = vmatprep.mubr.bf16.mxu0 %v943
      %1854 = vmatmul.mubr.bf16.gmra.mrb[0].mxu0 %v942
      %v1855 = vpop.f32.mrb[0].mxu0
      %v1856 = vadd.f32 %v1695, %v1855
      %v1857 = vpop.f32.mrb[0].mxu0
      %v1858 = vpop.f32.mrb[0].mxu0
      %v1859 = vadd.f32 %v1698, %v1858
      %v1860 = vpop.f32.mrb[0].mxu0
      %1861 = vmatprep.mubr.bf16.mxu0 %v952
      %1862 = vmatmul.mubr.bf16.gmra.mrb[0].mxu0 %v951
      %v1863 = vpop.f32.mrb[0].mxu0
      %v1864 = vadd.f32 %v1703, %v1863
      %v1865 = vpop.f32.mrb[0].mxu0
      %v1866 = vpop.f32.mrb[0].mxu0
      %v1867 = vadd.f32 %v1706, %v1866
      %v1868 = vpop.f32.mrb[0].mxu0
      %1869 = vmatprep.mubr.bf16.mxu0 %v961
      %1870 = vmatmul.mubr.bf16.gmra.mrb[0].mxu0 %v960
      %v1871 = vpop.f32.mrb[0].mxu0
      %v1872 = vadd.f32 %v1711, %v1871
      %v1873 = vpop.f32.mrb[0].mxu0
      %v1874 = vpop.f32.mrb[0].mxu0
      %v1875 = vadd.f32 %v1714, %v1874
      %v1876 = vpop.f32.mrb[0].mxu0
      %1877 = vmatprep.mubr.bf16.mxu0 %v970
      %1878 = vmatmul.mubr.bf16.gmra.mrb[0].mxu0 %v969
      %v1879 = vpop.f32.mrb[0].mxu0
      %v1880 = vadd.f32 %v1719, %v1879
      %v1881 = vpop.f32.mrb[0].mxu0
      %v1882 = vpop.f32.mrb[0].mxu0
      %v1883 = vadd.f32 %v1722, %v1882
      %v1884 = vpop.f32.mrb[0].mxu0
      %1885 = vmatprep.mubr.bf16.mxu0 %v979
      %1886 = vmatmul.mubr.bf16.gmra.mrb[0].mxu0 %v978
      %v1887 = vpop.f32.mrb[0].mxu0
      %v1888 = vadd.f32 %v1727, %v1887
      %v1889 = vpop.f32.mrb[0].mxu0
      %v1890 = vpop.f32.mrb[0].mxu0
      %v1891 = vadd.f32 %v1730, %v1890
      %v1892 = vpop.f32.mrb[0].mxu0
      %1893 = vmatprep.mubr.bf16.mxu0 %v988
      %1894 = vmatmul.mubr.bf16.gmra.mrb[0].mxu0 %v987
      %v1895 = vpop.f32.mrb[0].mxu0
      %v1896 = vadd.f32 %v1735, %v1895
      %v1897 = vpop.f32.mrb[0].mxu0
      %v1898 = vpop.f32.mrb[0].mxu0
      %v1899 = vadd.f32 %v1738, %v1898
      %v1900 = vpop.f32.mrb[0].mxu0
      %1901 = vmatprep.mubr.bf16.mxu0 %v997
      %1902 = vmatmul.mubr.bf16.gmra.mrb[0].mxu0 %v996
      %v1903 = vpop.f32.mrb[0].mxu0
      %v1904 = vadd.f32 %v1743, %v1903
      %v1905 = vpop.f32.mrb[0].mxu0
      %v1906 = vpop.f32.mrb[0].mxu0
      %v1907 = vadd.f32 %v1746, %v1906
      %v1908 = vpop.f32.mrb[0].mxu0
      %1909 = vmatprep.mubr.bf16.mxu0 %v1006
      %1910 = vmatmul.mubr.bf16.gmra.mrb[0].mxu0 %v1005
      %v1911 = vpop.f32.mrb[0].mxu0
      %v1912 = vadd.f32 %v1751, %v1911
      %v1913 = vpop.f32.mrb[0].mxu0
      %v1914 = vpop.f32.mrb[0].mxu0
      %v1915 = vadd.f32 %v1754, %v1914
      %v1916 = vpop.f32.mrb[0].mxu0
      %1917 = vmatprep.mubr.bf16.mxu0 %v1015
      %1918 = vmatmul.mubr.bf16.gmra.mrb[0].mxu0 %v1014
      %v1919 = vpop.f32.mrb[0].mxu0
      %v1920 = vadd.f32 %v1759, %v1919
      %v1921 = vpop.f32.mrb[0].mxu0
      %v1922 = vpop.f32.mrb[0].mxu0
      %v1923 = vadd.f32 %v1762, %v1922
      %v1924 = vpop.f32.mrb[0].mxu0
      %1925 = vmatprep.mubr.bf16.mxu0 %v1024
      %1926 = vmatmul.mubr.bf16.gmra.mrb[0].mxu0 %v1023
      %v1927 = vpop.f32.mrb[0].mxu0
      %v1928 = vadd.f32 %v1767, %v1927
      %v1929 = vpop.f32.mrb[0].mxu0
      %v1930 = vpop.f32.mrb[0].mxu0
      %v1931 = vadd.f32 %v1770, %v1930
      %v1932 = vpop.f32.mrb[0].mxu0
      %1933 = vmatprep.mubr.bf16.mxu0 %v1033
      %1934 = vmatmul.mubr.bf16.gmra.mrb[0].mxu0 %v1032
      %v1935 = vpop.f32.mrb[0].mxu0
      %v1936 = vadd.f32 %v1775, %v1935
      %v1937 = vpop.f32.mrb[0].mxu0
      %v1938 = vpop.f32.mrb[0].mxu0
      %v1939 = vadd.f32 %v1778, %v1938
      %v1940 = vpop.f32.mrb[0].mxu0
      %1941 = vmatprep.mubr.bf16.mxu0 %v1042
      %1942 = vmatmul.mubr.bf16.gmra.mrb[0].mxu0 %v1041
      %v1943 = vpop.f32.mrb[0].mxu0
      %v1944 = vadd.f32 %v1783, %v1943
      %v1945 = vpop.f32.mrb[0].mxu0
      %v1946 = vpop.f32.mrb[0].mxu0
      %v1947 = vadd.f32 %v1786, %v1946
      %v1948 = vpop.f32.mrb[0].mxu0
      %1949 = vmatprep.mubr.bf16.mxu0 %v1051
      %1950 = vmatmul.mubr.bf16.gmra.mrb[0].mxu0 %v1050
      %v1951 = vpop.f32.mrb[0].mxu0
      %v1952 = vadd.f32 %v1791, %v1951
      %v1953 = vpop.f32.mrb[0].mxu0
      %v1954 = vpop.f32.mrb[0].mxu0
      %v1955 = vadd.f32 %v1794, %v1954
      %v1956 = vpop.f32.mrb[0].mxu0
      %1957 = vmatprep.mubr.bf16.mxu0 %v1060
      %1958 = vmatmul.mubr.bf16.gmra.mrb[0].mxu0 %v1059
      %v1959 = vpop.f32.mrb[0].mxu0
      %v1960 = vadd.f32 %v1799, %v1959
      %v1961 = vpop.f32.mrb[0].mxu0
      %v1962 = vpop.f32.mrb[0].mxu0
      %v1963 = vadd.f32 %v1802, %v1962
      %v1964 = vpop.f32.mrb[0].mxu0
      %1965 = vmatprep.mubr.bf16.mxu0 %v1069
      %1966 = vmatmul.mubr.bf16.gmra.mrb[0].mxu0 %v1068
      %v1967 = vpop.f32.mrb[0].mxu0
      %v1968 = vadd.f32 %v1807, %v1967
      %v1969 = vpop.f32.mrb[0].mxu0
      %v1970 = vpop.f32.mrb[0].mxu0
      %v1971 = vadd.f32 %v1810, %v1970
      %v1972 = vpop.f32.mrb[0].mxu0
      %1973 = vmatprep.mubr.bf16.mxu0 %v1078
      %1974 = vmatmul.mubr.bf16.gmra.mrb[0].mxu0 %v1077
      %v1975 = vpop.f32.mrb[0].mxu0
      %v1976 = vadd.f32 %v1815, %v1975
      %v1977 = vpop.f32.mrb[0].mxu0
      %v1978 = vpop.f32.mrb[0].mxu0
      %v1979 = vadd.f32 %v1818, %v1978
      %v1980 = vpop.f32.mrb[0].mxu0
      %1981 = vdwg.mxu0
      %1982 = vmatprep.subr.bf16.mxu0 0
      %1983 = vmatpush1.bf16.msra.mxu0 %v1548
      %1984 = vmatprep.subr.bf16.mxu0 0
      %1985 = vmatpush1.bf16.msra.mxu0 %v1549
      %1986 = vmatprep.subr.bf16.mxu0 0
      %1987 = vmatpush1.bf16.msra.mxu0 %v1550
      %1988 = vmatprep.subr.bf16.mxu0 0
      %1989 = vmatpush1.bf16.msra.mxu0 %v1551
      %1990 = vmatprep.subr.bf16.mxu0 0
      %1991 = vmatpush1.bf16.msra.mxu0 %v1552
      %1992 = vmatprep.subr.bf16.mxu0 0
      %1993 = vmatpush1.bf16.msra.mxu0 %v1553
      %1994 = vmatprep.subr.bf16.mxu0 0
      %1995 = vmatpush1.bf16.msra.mxu0 %v1554
      %1996 = vmatprep.subr.bf16.mxu0 0
      %1997 = vmatpush1.bf16.msra.mxu0 %v1555
      %1998 = vmatprep.subr.bf16.mxu0 0
      %1999 = vmatpush1.bf16.msra.mxu0 %v1556
      %2000 = vmatprep.subr.bf16.mxu0 0
      %2001 = vmatpush1.bf16.msra.mxu0 %v1557
      %2002 = vmatprep.subr.bf16.mxu0 0
      %2003 = vmatpush1.bf16.msra.mxu0 %v1558
      %2004 = vmatprep.subr.bf16.mxu0 0
      %2005 = vmatpush1.bf16.msra.mxu0 %v1559
      %2006 = vmatprep.subr.bf16.mxu0 0
      %2007 = vmatpush1.bf16.msra.mxu0 %v1560
      %2008 = vmatprep.subr.bf16.mxu0 0
      %2009 = vmatpush1.bf16.msra.mxu0 %v1561
      %2010 = vmatprep.subr.bf16.mxu0 0
      %2011 = vmatpush1.bf16.msra.mxu0 %v1562
      %2012 = vmatprep.subr.bf16.mxu0 0
      %2013 = vmatpush1.bf16.msra.mxu0 %v1563
      %2014 = vmatprep.mubr.bf16.mxu0 %v945
      %2015 = vmatmul.mubr.bf16.gmra.mrb[0].mxu0 %v944
      %v2016 = vpop.f32.mrb[0].mxu0
      %v2017 = vadd.f32 %v1856, %v2016
      %v2018 = vpop.f32.mrb[0].mxu0
      %v2019 = vpop.f32.mrb[0].mxu0
      %v2020 = vadd.f32 %v1859, %v2019
      %v2021 = vpop.f32.mrb[0].mxu0
      %2022 = vmatprep.mubr.bf16.mxu0 %v954
      %2023 = vmatmul.mubr.bf16.gmra.mrb[0].mxu0 %v953
      %v2024 = vpop.f32.mrb[0].mxu0
      %v2025 = vadd.f32 %v1864, %v2024
      %v2026 = vpop.f32.mrb[0].mxu0
      %v2027 = vpop.f32.mrb[0].mxu0
      %v2028 = vadd.f32 %v1867, %v2027
      %v2029 = vpop.f32.mrb[0].mxu0
      %2030 = vmatprep.mubr.bf16.mxu0 %v963
      %2031 = vmatmul.mubr.bf16.gmra.mrb[0].mxu0 %v962
      %v2032 = vpop.f32.mrb[0].mxu0
      %v2033 = vadd.f32 %v1872, %v2032
      %v2034 = vpop.f32.mrb[0].mxu0
      %v2035 = vpop.f32.mrb[0].mxu0
      %v2036 = vadd.f32 %v1875, %v2035
      %v2037 = vpop.f32.mrb[0].mxu0
      %2038 = vmatprep.mubr.bf16.mxu0 %v972
      %2039 = vmatmul.mubr.bf16.gmra.mrb[0].mxu0 %v971
      %v2040 = vpop.f32.mrb[0].mxu0
      %v2041 = vadd.f32 %v1880, %v2040
      %v2042 = vpop.f32.mrb[0].mxu0
      %v2043 = vpop.f32.mrb[0].mxu0
      %v2044 = vadd.f32 %v1883, %v2043
      %v2045 = vpop.f32.mrb[0].mxu0
      %2046 = vmatprep.mubr.bf16.mxu0 %v981
      %2047 = vmatmul.mubr.bf16.gmra.mrb[0].mxu0 %v980
      %v2048 = vpop.f32.mrb[0].mxu0
      %v2049 = vadd.f32 %v1888, %v2048
      %v2050 = vpop.f32.mrb[0].mxu0
      %v2051 = vpop.f32.mrb[0].mxu0
      %v2052 = vadd.f32 %v1891, %v2051
      %v2053 = vpop.f32.mrb[0].mxu0
      %2054 = vmatprep.mubr.bf16.mxu0 %v990
      %2055 = vmatmul.mubr.bf16.gmra.mrb[0].mxu0 %v989
      %v2056 = vpop.f32.mrb[0].mxu0
      %v2057 = vadd.f32 %v1896, %v2056
      %v2058 = vpop.f32.mrb[0].mxu0
      %v2059 = vpop.f32.mrb[0].mxu0
      %v2060 = vadd.f32 %v1899, %v2059
      %v2061 = vpop.f32.mrb[0].mxu0
      %2062 = vmatprep.mubr.bf16.mxu0 %v999
      %2063 = vmatmul.mubr.bf16.gmra.mrb[0].mxu0 %v998
      %v2064 = vpop.f32.mrb[0].mxu0
      %v2065 = vadd.f32 %v1904, %v2064
      %v2066 = vpop.f32.mrb[0].mxu0
      %v2067 = vpop.f32.mrb[0].mxu0
      %v2068 = vadd.f32 %v1907, %v2067
      %v2069 = vpop.f32.mrb[0].mxu0
      %2070 = vmatprep.mubr.bf16.mxu0 %v1008
      %2071 = vmatmul.mubr.bf16.gmra.mrb[0].mxu0 %v1007
      %v2072 = vpop.f32.mrb[0].mxu0
      %v2073 = vadd.f32 %v1912, %v2072
      %v2074 = vpop.f32.mrb[0].mxu0
      %v2075 = vpop.f32.mrb[0].mxu0
      %v2076 = vadd.f32 %v1915, %v2075
      %v2077 = vpop.f32.mrb[0].mxu0
      %2078 = vmatprep.mubr.bf16.mxu0 %v1017
      %2079 = vmatmul.mubr.bf16.gmra.mrb[0].mxu0 %v1016
      %v2080 = vpop.f32.mrb[0].mxu0
      %v2081 = vadd.f32 %v1920, %v2080
      %v2082 = vpop.f32.mrb[0].mxu0
      %v2083 = vpop.f32.mrb[0].mxu0
      %v2084 = vadd.f32 %v1923, %v2083
      %v2085 = vpop.f32.mrb[0].mxu0
      %2086 = vmatprep.mubr.bf16.mxu0 %v1026
      %2087 = vmatmul.mubr.bf16.gmra.mrb[0].mxu0 %v1025
      %v2088 = vpop.f32.mrb[0].mxu0
      %v2089 = vadd.f32 %v1928, %v2088
      %v2090 = vpop.f32.mrb[0].mxu0
      %v2091 = vpop.f32.mrb[0].mxu0
      %v2092 = vadd.f32 %v1931, %v2091
      %v2093 = vpop.f32.mrb[0].mxu0
      %2094 = vmatprep.mubr.bf16.mxu0 %v1035
      %2095 = vmatmul.mubr.bf16.gmra.mrb[0].mxu0 %v1034
      %v2096 = vpop.f32.mrb[0].mxu0
      %v2097 = vadd.f32 %v1936, %v2096
      %v2098 = vpop.f32.mrb[0].mxu0
      %v2099 = vpop.f32.mrb[0].mxu0
      %v2100 = vadd.f32 %v1939, %v2099
      %v2101 = vpop.f32.mrb[0].mxu0
      %2102 = vmatprep.mubr.bf16.mxu0 %v1044
      %2103 = vmatmul.mubr.bf16.gmra.mrb[0].mxu0 %v1043
      %v2104 = vpop.f32.mrb[0].mxu0
      %v2105 = vadd.f32 %v1944, %v2104
      %v2106 = vpop.f32.mrb[0].mxu0
      %v2107 = vpop.f32.mrb[0].mxu0
      %v2108 = vadd.f32 %v1947, %v2107
      %v2109 = vpop.f32.mrb[0].mxu0
      %2110 = vmatprep.mubr.bf16.mxu0 %v1053
      %2111 = vmatmul.mubr.bf16.gmra.mrb[0].mxu0 %v1052
      %v2112 = vpop.f32.mrb[0].mxu0
      %v2113 = vadd.f32 %v1952, %v2112
      %v2114 = vpop.f32.mrb[0].mxu0
      %v2115 = vpop.f32.mrb[0].mxu0
      %v2116 = vadd.f32 %v1955, %v2115
      %v2117 = vpop.f32.mrb[0].mxu0
      %2118 = vmatprep.mubr.bf16.mxu0 %v1062
      %2119 = vmatmul.mubr.bf16.gmra.mrb[0].mxu0 %v1061
      %v2120 = vpop.f32.mrb[0].mxu0
      %v2121 = vadd.f32 %v1960, %v2120
      %v2122 = vpop.f32.mrb[0].mxu0
      %v2123 = vpop.f32.mrb[0].mxu0
      %v2124 = vadd.f32 %v1963, %v2123
      %v2125 = vpop.f32.mrb[0].mxu0
      %2126 = vmatprep.mubr.bf16.mxu0 %v1071
      %2127 = vmatmul.mubr.bf16.gmra.mrb[0].mxu0 %v1070
      %v2128 = vpop.f32.mrb[0].mxu0
      %v2129 = vadd.f32 %v1968, %v2128
      %v2130 = vpop.f32.mrb[0].mxu0
      %v2131 = vpop.f32.mrb[0].mxu0
      %v2132 = vadd.f32 %v1971, %v2131
      %v2133 = vpop.f32.mrb[0].mxu0
      %2134 = vmatprep.mubr.bf16.mxu0 %v1080
      %2135 = vmatmul.mubr.bf16.gmra.mrb[0].mxu0 %v1079
      %v2136 = vpop.f32.mrb[0].mxu0
      %v2137 = vadd.f32 %v1976, %v2136
      %v2138 = vpop.f32.mrb[0].mxu0
      %v2139 = vpop.f32.mrb[0].mxu0
      %v2140 = vadd.f32 %v1979, %v2139
      %v2141 = vpop.f32.mrb[0].mxu0
      %2142 = vdwg.mxu0
      %2143 = vmatprep.subr.bf16.mxu0 0
      %2144 = vmatpush1.bf16.msra.mxu0 %v1564
      %2145 = vmatprep.subr.bf16.mxu0 0
      %2146 = vmatpush1.bf16.msra.mxu0 %v1565
      %2147 = vmatprep.subr.bf16.mxu0 0
      %2148 = vmatpush1.bf16.msra.mxu0 %v1566
      %2149 = vmatprep.subr.bf16.mxu0 0
      %2150 = vmatpush1.bf16.msra.mxu0 %v1567
      %2151 = vmatprep.subr.bf16.mxu0 0
      %2152 = vmatpush1.bf16.msra.mxu0 %v1568
      %2153 = vmatprep.subr.bf16.mxu0 0
      %2154 = vmatpush1.bf16.msra.mxu0 %v1569
      %2155 = vmatprep.subr.bf16.mxu0 0
      %2156 = vmatpush1.bf16.msra.mxu0 %v1570
      %2157 = vmatprep.subr.bf16.mxu0 0
      %2158 = vmatpush1.bf16.msra.mxu0 %v1571
      %2159 = vmatprep.subr.bf16.mxu0 0
      %2160 = vmatpush1.bf16.msra.mxu0 %v1572
      %2161 = vmatprep.subr.bf16.mxu0 0
      %2162 = vmatpush1.bf16.msra.mxu0 %v1573
      %2163 = vmatprep.subr.bf16.mxu0 0
      %2164 = vmatpush1.bf16.msra.mxu0 %v1574
      %2165 = vmatprep.subr.bf16.mxu0 0
      %2166 = vmatpush1.bf16.msra.mxu0 %v1575
      %2167 = vmatprep.subr.bf16.mxu0 0
      %2168 = vmatpush1.bf16.msra.mxu0 %v1576
      %2169 = vmatprep.subr.bf16.mxu0 0
      %2170 = vmatpush1.bf16.msra.mxu0 %v1577
      %2171 = vmatprep.subr.bf16.mxu0 0
      %2172 = vmatpush1.bf16.msra.mxu0 %v1578
      %2173 = vmatprep.subr.bf16.mxu0 0
      %2174 = vmatpush1.bf16.msra.mxu0 %v1579
      %2175 = vmatprep.mubr.bf16.mxu0 %v947
      %2176 = vmatmul.mubr.bf16.gmra.mrb[0].mxu0 %v946
      %v2177 = vpop.f32.mrb[0].mxu0
      %v2178 = vadd.f32 %v2017, %v2177
      %v2179 = vpop.f32.mrb[0].mxu0
      %v2180 = vpop.f32.mrb[0].mxu0
      %v2181 = vadd.f32 %v2020, %v2180
      %v2182 = vpop.f32.mrb[0].mxu0
      %2183 = vmatprep.mubr.bf16.mxu0 %v956
      %2184 = vmatmul.mubr.bf16.gmra.mrb[0].mxu0 %v955
      %v2185 = vpop.f32.mrb[0].mxu0
      %v2186 = vadd.f32 %v2025, %v2185
      %v2187 = vpop.f32.mrb[0].mxu0
      %v2188 = vpop.f32.mrb[0].mxu0
      %v2189 = vadd.f32 %v2028, %v2188
      %v2190 = vpop.f32.mrb[0].mxu0
      %2191 = vmatprep.mubr.bf16.mxu0 %v965
      %2192 = vmatmul.mubr.bf16.gmra.mrb[0].mxu0 %v964
      %v2193 = vpop.f32.mrb[0].mxu0
      %v2194 = vadd.f32 %v2033, %v2193
      %v2195 = vpop.f32.mrb[0].mxu0
      %v2196 = vpop.f32.mrb[0].mxu0
      %v2197 = vadd.f32 %v2036, %v2196
      %v2198 = vpop.f32.mrb[0].mxu0
      %2199 = vmatprep.mubr.bf16.mxu0 %v974
      %2200 = vmatmul.mubr.bf16.gmra.mrb[0].mxu0 %v973
      %v2201 = vpop.f32.mrb[0].mxu0
      %v2202 = vadd.f32 %v2041, %v2201
      %v2203 = vpop.f32.mrb[0].mxu0
      %v2204 = vpop.f32.mrb[0].mxu0
      %v2205 = vadd.f32 %v2044, %v2204
      %v2206 = vpop.f32.mrb[0].mxu0
      %2207 = vmatprep.mubr.bf16.mxu0 %v983
      %2208 = vmatmul.mubr.bf16.gmra.mrb[0].mxu0 %v982
      %v2209 = vpop.f32.mrb[0].mxu0
      %v2210 = vadd.f32 %v2049, %v2209
      %v2211 = vpop.f32.mrb[0].mxu0
      %v2212 = vpop.f32.mrb[0].mxu0
      %v2213 = vadd.f32 %v2052, %v2212
      %v2214 = vpop.f32.mrb[0].mxu0
      %2215 = vmatprep.mubr.bf16.mxu0 %v992
      %2216 = vmatmul.mubr.bf16.gmra.mrb[0].mxu0 %v991
      %v2217 = vpop.f32.mrb[0].mxu0
      %v2218 = vadd.f32 %v2057, %v2217
      %v2219 = vpop.f32.mrb[0].mxu0
      %v2220 = vpop.f32.mrb[0].mxu0
      %v2221 = vadd.f32 %v2060, %v2220
      %v2222 = vpop.f32.mrb[0].mxu0
      %2223 = vmatprep.mubr.bf16.mxu0 %v1001
      %2224 = vmatmul.mubr.bf16.gmra.mrb[0].mxu0 %v1000
      %v2225 = vpop.f32.mrb[0].mxu0
      %v2226 = vadd.f32 %v2065, %v2225
      %v2227 = vpop.f32.mrb[0].mxu0
      %v2228 = vpop.f32.mrb[0].mxu0
      %v2229 = vadd.f32 %v2068, %v2228
      %v2230 = vpop.f32.mrb[0].mxu0
      %2231 = vmatprep.mubr.bf16.mxu0 %v1010
      %2232 = vmatmul.mubr.bf16.gmra.mrb[0].mxu0 %v1009
      %v2233 = vpop.f32.mrb[0].mxu0
      %v2234 = vadd.f32 %v2073, %v2233
      %v2235 = vpop.f32.mrb[0].mxu0
      %v2236 = vpop.f32.mrb[0].mxu0
      %v2237 = vadd.f32 %v2076, %v2236
      %v2238 = vpop.f32.mrb[0].mxu0
      %2239 = vmatprep.mubr.bf16.mxu0 %v1019
      %2240 = vmatmul.mubr.bf16.gmra.mrb[0].mxu0 %v1018
      %v2241 = vpop.f32.mrb[0].mxu0
      %v2242 = vadd.f32 %v2081, %v2241
      %v2243 = vpop.f32.mrb[0].mxu0
      %v2244 = vpop.f32.mrb[0].mxu0
      %v2245 = vadd.f32 %v2084, %v2244
      %v2246 = vpop.f32.mrb[0].mxu0
      %2247 = vmatprep.mubr.bf16.mxu0 %v1028
      %2248 = vmatmul.mubr.bf16.gmra.mrb[0].mxu0 %v1027
      %v2249 = vpop.f32.mrb[0].mxu0
      %v2250 = vadd.f32 %v2089, %v2249
      %v2251 = vpop.f32.mrb[0].mxu0
      %v2252 = vpop.f32.mrb[0].mxu0
      %v2253 = vadd.f32 %v2092, %v2252
      %v2254 = vpop.f32.mrb[0].mxu0
      %2255 = vmatprep.mubr.bf16.mxu0 %v1037
      %2256 = vmatmul.mubr.bf16.gmra.mrb[0].mxu0 %v1036
      %v2257 = vpop.f32.mrb[0].mxu0
      %v2258 = vadd.f32 %v2097, %v2257
      %v2259 = vpop.f32.mrb[0].mxu0
      %v2260 = vpop.f32.mrb[0].mxu0
      %v2261 = vadd.f32 %v2100, %v2260
      %v2262 = vpop.f32.mrb[0].mxu0
      %2263 = vmatprep.mubr.bf16.mxu0 %v1046
      %2264 = vmatmul.mubr.bf16.gmra.mrb[0].mxu0 %v1045
      %v2265 = vpop.f32.mrb[0].mxu0
      %v2266 = vadd.f32 %v2105, %v2265
      %v2267 = vpop.f32.mrb[0].mxu0
      %v2268 = vpop.f32.mrb[0].mxu0
      %v2269 = vadd.f32 %v2108, %v2268
      %v2270 = vpop.f32.mrb[0].mxu0
      %2271 = vmatprep.mubr.bf16.mxu0 %v1055
      %2272 = vmatmul.mubr.bf16.gmra.mrb[0].mxu0 %v1054
      %v2273 = vpop.f32.mrb[0].mxu0
      %v2274 = vadd.f32 %v2113, %v2273
      %v2275 = vpop.f32.mrb[0].mxu0
      %v2276 = vpop.f32.mrb[0].mxu0
      %v2277 = vadd.f32 %v2116, %v2276
      %v2278 = vpop.f32.mrb[0].mxu0
      %2279 = vmatprep.mubr.bf16.mxu0 %v1064
      %2280 = vmatmul.mubr.bf16.gmra.mrb[0].mxu0 %v1063
      %v2281 = vpop.f32.mrb[0].mxu0
      %v2282 = vadd.f32 %v2121, %v2281
      %v2283 = vpop.f32.mrb[0].mxu0
      %v2284 = vpop.f32.mrb[0].mxu0
      %v2285 = vadd.f32 %v2124, %v2284
      %v2286 = vpop.f32.mrb[0].mxu0
      %2287 = vmatprep.mubr.bf16.mxu0 %v1073
      %2288 = vmatmul.mubr.bf16.gmra.mrb[0].mxu0 %v1072
      %v2289 = vpop.f32.mrb[0].mxu0
      %v2290 = vadd.f32 %v2129, %v2289
      %v2291 = vpop.f32.mrb[0].mxu0
      %v2292 = vpop.f32.mrb[0].mxu0
      %v2293 = vadd.f32 %v2132, %v2292
      %v2294 = vpop.f32.mrb[0].mxu0
      %2295 = vmatprep.mubr.bf16.mxu0 %v1082
      %2296 = vmatmul.mubr.bf16.gmra.mrb[0].mxu0 %v1081
      %v2297 = vpop.f32.mrb[0].mxu0
      %v2298 = vadd.f32 %v2137, %v2297
      %v2299 = vpop.f32.mrb[0].mxu0
      %v2300 = vpop.f32.mrb[0].mxu0
      %v2301 = vadd.f32 %v2140, %v2300
      %v2302 = vpop.f32.mrb[0].mxu0
      %2303 = vdwg.mxu0
      %2304 = vmatprep.subr.bf16.mxu0 0
      %2305 = vmatpush1.bf16.msra.mxu0 %v1580
      %2306 = vmatprep.subr.bf16.mxu0 0
      %2307 = vmatpush1.bf16.msra.mxu0 %v1581
      %2308 = vmatprep.subr.bf16.mxu0 0
      %2309 = vmatpush1.bf16.msra.mxu0 %v1582
      %2310 = vmatprep.subr.bf16.mxu0 0
      %2311 = vmatpush1.bf16.msra.mxu0 %v1583
      %2312 = vmatprep.subr.bf16.mxu0 0
      %2313 = vmatpush1.bf16.msra.mxu0 %v1584
      %2314 = vmatprep.subr.bf16.mxu0 0
      %2315 = vmatpush1.bf16.msra.mxu0 %v1585
      %2316 = vmatprep.subr.bf16.mxu0 0
      %2317 = vmatpush1.bf16.msra.mxu0 %v1586
      %2318 = vmatprep.subr.bf16.mxu0 0
      %2319 = vmatpush1.bf16.msra.mxu0 %v1587
      %2320 = vmatprep.subr.bf16.mxu0 0
      %2321 = vmatpush1.bf16.msra.mxu0 0
      %2322 = vmatprep.subr.bf16.mxu0 0
      %2323 = vmatpush1.bf16.msra.mxu0 0
      %2324 = vmatprep.subr.bf16.mxu0 0
      %2325 = vmatpush1.bf16.msra.mxu0 0
      %2326 = vmatprep.subr.bf16.mxu0 0
      %2327 = vmatpush1.bf16.msra.mxu0 0
      %2328 = vmatprep.subr.bf16.mxu0 0
      %2329 = vmatpush1.bf16.msra.mxu0 0
      %2330 = vmatprep.subr.bf16.mxu0 0
      %2331 = vmatpush1.bf16.msra.mxu0 0
      %2332 = vmatprep.subr.bf16.mxu0 0
      %2333 = vmatpush1.bf16.msra.mxu0 0
      %2334 = vmatprep.subr.bf16.mxu0 0
      %2335 = vmatpush1.bf16.msra.mxu0 0
      %2336 = vmatprep.mubr.bf16.mxu0 0
      %2337 = vmatmul.mubr.bf16.gmra.mrb[0].mxu0 %v948
      %v2338 = vpop.f32.mrb[0].mxu0
      %v2339 = vadd.f32 %v2178, %v2338
      %v2340 = vpop.f32.mrb[0].mxu0
      %v2341 = vpop.f32.mrb[0].mxu0
      %v2342 = vadd.f32 %v2181, %v2341
      %v2343 = vpop.f32.mrb[0].mxu0
      %2344 = vmatprep.mubr.bf16.mxu0 0
      %2345 = vmatmul.mubr.bf16.gmra.mrb[0].mxu0 %v957
      %v2346 = vpop.f32.mrb[0].mxu0
      %v2347 = vadd.f32 %v2186, %v2346
      %v2348 = vpop.f32.mrb[0].mxu0
      %v2349 = vpop.f32.mrb[0].mxu0
      %v2350 = vadd.f32 %v2189, %v2349
      %v2351 = vpop.f32.mrb[0].mxu0
      %2352 = vmatprep.mubr.bf16.mxu0 0
      %2353 = vmatmul.mubr.bf16.gmra.mrb[0].mxu0 %v966
      %v2354 = vpop.f32.mrb[0].mxu0
      %v2355 = vadd.f32 %v2194, %v2354
      %v2356 = vpop.f32.mrb[0].mxu0
      %v2357 = vpop.f32.mrb[0].mxu0
      %v2358 = vadd.f32 %v2197, %v2357
      %v2359 = vpop.f32.mrb[0].mxu0
      %2360 = vmatprep.mubr.bf16.mxu0 0
      %2361 = vmatmul.mubr.bf16.gmra.mrb[0].mxu0 %v975
      %v2362 = vpop.f32.mrb[0].mxu0
      %v2363 = vadd.f32 %v2202, %v2362
      %v2364 = vpop.f32.mrb[0].mxu0
      %v2365 = vpop.f32.mrb[0].mxu0
      %v2366 = vadd.f32 %v2205, %v2365
      %v2367 = vpop.f32.mrb[0].mxu0
      %2368 = vmatprep.mubr.bf16.mxu0 0
      %2369 = vmatmul.mubr.bf16.gmra.mrb[0].mxu0 %v984
      %v2370 = vpop.f32.mrb[0].mxu0
      %v2371 = vadd.f32 %v2210, %v2370
      %v2372 = vpop.f32.mrb[0].mxu0
      %v2373 = vpop.f32.mrb[0].mxu0
      %v2374 = vadd.f32 %v2213, %v2373
      %v2375 = vpop.f32.mrb[0].mxu0
      %2376 = vmatprep.mubr.bf16.mxu0 0
      %2377 = vmatmul.mubr.bf16.gmra.mrb[0].mxu0 %v993
      %v2378 = vpop.f32.mrb[0].mxu0
      %v2379 = vadd.f32 %v2218, %v2378
      %v2380 = vpop.f32.mrb[0].mxu0
      %v2381 = vpop.f32.mrb[0].mxu0
      %v2382 = vadd.f32 %v2221, %v2381
      %v2383 = vpop.f32.mrb[0].mxu0
      %2384 = vmatprep.mubr.bf16.mxu0 0
      %2385 = vmatmul.mubr.bf16.gmra.mrb[0].mxu0 %v1002
      %v2386 = vpop.f32.mrb[0].mxu0
      %v2387 = vadd.f32 %v2226, %v2386
      %v2388 = vpop.f32.mrb[0].mxu0
      %v2389 = vpop.f32.mrb[0].mxu0
      %v2390 = vadd.f32 %v2229, %v2389
      %v2391 = vpop.f32.mrb[0].mxu0
      %2392 = vmatprep.mubr.bf16.mxu0 0
      %2393 = vmatmul.mubr.bf16.gmra.mrb[0].mxu0 %v1011
      %v2394 = vpop.f32.mrb[0].mxu0
      %v2395 = vadd.f32 %v2234, %v2394
      %v2396 = vpop.f32.mrb[0].mxu0
      %v2397 = vpop.f32.mrb[0].mxu0
      %v2398 = vadd.f32 %v2237, %v2397
      %v2399 = vpop.f32.mrb[0].mxu0
      %2400 = vmatprep.mubr.bf16.mxu0 0
      %2401 = vmatmul.mubr.bf16.gmra.mrb[0].mxu0 %v1020
      %v2402 = vpop.f32.mrb[0].mxu0
      %v2403 = vadd.f32 %v2242, %v2402
      %v2404 = vpop.f32.mrb[0].mxu0
      %v2405 = vpop.f32.mrb[0].mxu0
      %v2406 = vadd.f32 %v2245, %v2405
      %v2407 = vpop.f32.mrb[0].mxu0
      %2408 = vmatprep.mubr.bf16.mxu0 0
      %2409 = vmatmul.mubr.bf16.gmra.mrb[0].mxu0 %v1029
      %v2410 = vpop.f32.mrb[0].mxu0
      %v2411 = vadd.f32 %v2250, %v2410
      %v2412 = vpop.f32.mrb[0].mxu0
      %v2413 = vpop.f32.mrb[0].mxu0
      %v2414 = vadd.f32 %v2253, %v2413
      %v2415 = vpop.f32.mrb[0].mxu0
      %2416 = vmatprep.mubr.bf16.mxu0 0
      %2417 = vmatmul.mubr.bf16.gmra.mrb[0].mxu0 %v1038
      %v2418 = vpop.f32.mrb[0].mxu0
      %v2419 = vadd.f32 %v2258, %v2418
      %v2420 = vpop.f32.mrb[0].mxu0
      %v2421 = vpop.f32.mrb[0].mxu0
      %v2422 = vadd.f32 %v2261, %v2421
      %v2423 = vpop.f32.mrb[0].mxu0
      %2424 = vmatprep.mubr.bf16.mxu0 0
      %2425 = vmatmul.mubr.bf16.gmra.mrb[0].mxu0 %v1047
      %v2426 = vpop.f32.mrb[0].mxu0
      %v2427 = vadd.f32 %v2266, %v2426
      %v2428 = vpop.f32.mrb[0].mxu0
      %v2429 = vpop.f32.mrb[0].mxu0
      %v2430 = vadd.f32 %v2269, %v2429
      %v2431 = vpop.f32.mrb[0].mxu0
      %2432 = vmatprep.mubr.bf16.mxu0 0
      %2433 = vmatmul.mubr.bf16.gmra.mrb[0].mxu0 %v1056
      %v2434 = vpop.f32.mrb[0].mxu0
      %v2435 = vadd.f32 %v2274, %v2434
      %v2436 = vpop.f32.mrb[0].mxu0
      %v2437 = vpop.f32.mrb[0].mxu0
      %v2438 = vadd.f32 %v2277, %v2437
      %v2439 = vpop.f32.mrb[0].mxu0
      %2440 = vmatprep.mubr.bf16.mxu0 0
      %2441 = vmatmul.mubr.bf16.gmra.mrb[0].mxu0 %v1065
      %v2442 = vpop.f32.mrb[0].mxu0
      %v2443 = vadd.f32 %v2282, %v2442
      %v2444 = vpop.f32.mrb[0].mxu0
      %v2445 = vpop.f32.mrb[0].mxu0
      %v2446 = vadd.f32 %v2285, %v2445
      %v2447 = vpop.f32.mrb[0].mxu0
      %2448 = vmatprep.mubr.bf16.mxu0 0
      %2449 = vmatmul.mubr.bf16.gmra.mrb[0].mxu0 %v1074
      %v2450 = vpop.f32.mrb[0].mxu0
      %v2451 = vadd.f32 %v2290, %v2450
      %v2452 = vpop.f32.mrb[0].mxu0
      %v2453 = vpop.f32.mrb[0].mxu0
      %v2454 = vadd.f32 %v2293, %v2453
      %v2455 = vpop.f32.mrb[0].mxu0
      %2456 = vmatprep.mubr.bf16.mxu0 0
      %2457 = vmatmul.mubr.bf16.gmra.mrb[0].mxu0 %v1083
      %v2458 = vpop.f32.mrb[0].mxu0
      %v2459 = vadd.f32 %v2298, %v2458
      %v2460 = vpop.f32.mrb[0].mxu0
      %v2461 = vpop.f32.mrb[0].mxu0
      %v2462 = vadd.f32 %v2301, %v2461
      %v2463 = vpop.f32.mrb[0].mxu0
      %2464 = vdwg.mxu0
      %vm2465 = vcmask 523264
      %2466 = vst.msk [vmem:[%s185] sm:$0xff] %vm2465, %v2339
      %2467 = vst.msk [vmem:[%s185 + $0x8] sm:$0xff] %vm2465, %v2342
      %2468 = vst.msk [vmem:[%s185 + $0x10] sm:$0xff] %vm2465, %v2347
      %2469 = vst.msk [vmem:[%s185 + $0x18] sm:$0xff] %vm2465, %v2350
      %2470 = vst.msk [vmem:[%s185 + $0x20] sm:$0xff] %vm2465, %v2355
      %2471 = vst.msk [vmem:[%s185 + $0x28] sm:$0xff] %vm2465, %v2358
      %2472 = vst.msk [vmem:[%s185 + $0x30] sm:$0xff] %vm2465, %v2363
      %2473 = vst.msk [vmem:[%s185 + $0x38] sm:$0xff] %vm2465, %v2366
      %2474 = vst.msk [vmem:[%s185 + $0x40] sm:$0xff] %vm2465, %v2371
      %2475 = vst.msk [vmem:[%s185 + $0x48] sm:$0xff] %vm2465, %v2374
      %2476 = vst.msk [vmem:[%s185 + $0x50] sm:$0xff] %vm2465, %v2379
      %2477 = vst.msk [vmem:[%s185 + $0x58] sm:$0xff] %vm2465, %v2382
      %2478 = vst.msk [vmem:[%s185 + $0x60] sm:$0xff] %vm2465, %v2387
      %2479 = vst.msk [vmem:[%s185 + $0x68] sm:$0xff] %vm2465, %v2390
      %2480 = vst.msk [vmem:[%s185 + $0x70] sm:$0xff] %vm2465, %v2395
      %2481 = vst.msk [vmem:[%s185 + $0x78] sm:$0xff] %vm2465, %v2398
      %2482 = vst.msk [vmem:[%s185 + $0x80] sm:$0xff] %vm2465, %v2403
      %2483 = vst.msk [vmem:[%s185 + $0x88] sm:$0xff] %vm2465, %v2406
      %2484 = vst.msk [vmem:[%s185 + $0x90] sm:$0xff] %vm2465, %v2411
      %2485 = vst.msk [vmem:[%s185 + $0x98] sm:$0xff] %vm2465, %v2414
      %2486 = vst.msk [vmem:[%s185 + $0xa0] sm:$0xff] %vm2465, %v2419
      %2487 = vst.msk [vmem:[%s185 + $0xa8] sm:$0xff] %vm2465, %v2422
      %2488 = vst.msk [vmem:[%s185 + $0xb0] sm:$0xff] %vm2465, %v2427
      %2489 = vst.msk [vmem:[%s185 + $0xb8] sm:$0xff] %vm2465, %v2430
      %2490 = vst.msk [vmem:[%s185 + $0xc0] sm:$0xff] %vm2465, %v2435
      %2491 = vst.msk [vmem:[%s185 + $0xc8] sm:$0xff] %vm2465, %v2438
      %2492 = vst.msk [vmem:[%s185 + $0xd0] sm:$0xff] %vm2465, %v2443
      %2493 = vst.msk [vmem:[%s185 + $0xd8] sm:$0xff] %vm2465, %v2446
      %2494 = vst.msk [vmem:[%s185 + $0xe0] sm:$0xff] %vm2465, %v2451
      %2495 = vst.msk [vmem:[%s185 + $0xe8] sm:$0xff] %vm2465, %v2454
      %2496 = vst.msk [vmem:[%s185 + $0xf0] sm:$0xff] %vm2465, %v2459
      %2497 = vst.msk [vmem:[%s185 + $0xf8] sm:$0xff] %vm2465, %v2462
      %s2498 = smul.u32 32, %s17
      %p2499 = scmp.lt.s32.totalorder %s2498, 127
      %s2500 = scalar_select %p2499, %s2498, 127
      %p2501 = scmp.lt.s32.totalorder %s18, 0
      %s2502 = scalar_select %p2501, %s18, 0
      %s2503 = sadd.s32 %s2502, %s2500
      %s2504 = smul.addr %s2503, 8
      %s2505 = scalar_lea.vmem %s2, %s2504
      // Predicated region
      $region29: #{mmpeptide_forward.3} parent=27 // pred_check
        %p2506 = pneg %p97
      $region30: #{mmpeptide_forward.3} parent=27 // pred_check_branch
        %2508 = sbr.rel (%p2506) target = $region32
      $region31: #{mmpeptide_forward.3} parent=27 // pred_region
        %s2509 = smul.u32 32, %s17
      $region32: #{mmpeptide_forward.3} parent=27 // pred_fallthru
        _
    $region28: #{mmpeptide_forward.3} parent=5 // pred_fallthru
      _
    %p2510 = scmp.le.s32.totalorder 2, %s8
    // Predicated region
    $region33: #{mmpeptide_forward.3} parent=5 // pred_check
      %p2511 = pneg %p2510
    $region34: #{mmpeptide_forward.3} parent=5 // pred_check_branch
      %2513 = sbr.rel (%p2511) target = $region36
    $region35: #{mmpeptide_forward.3} parent=5 // pred_region
      %s2514 = ssub.s32 %s8, 2
      // Predicated region
      $region37: #{mmpeptide_forward.3} parent=35 // pred_check
        %p2515 = pneg %p103
      $region38: #{mmpeptide_forward.3} parent=35 // pred_check_branch
        %2517 = sbr.rel (%p2515) target = $region40
      $region39: #{mmpeptide_forward.3} parent=35 // pred_region
        %s2518 = smul.u32 32, %s19
        %p2519 = scmp.lt.s32.totalorder %s2518, 127
        %s2520 = scalar_select %p2519, %s2518, 127
        %p2521 = scmp.lt.s32.totalorder %s20, 0
        %s2522 = scalar_select %p2521, %s20, 0
        %s2523 = sadd.s32 %s2522, %s2520
        %s2524 = smul.addr %s2523, 8
        %s2525 = scalar_lea.vmem %s2, %s2524
      $region40: #{mmpeptide_forward.3} parent=35 // pred_fallthru
        _
    $region36: #{mmpeptide_forward.3} parent=5 // pred_fallthru
      _
  $region6: #{mmpeptide_forward.3} parent=0 // loop_footer
    %s12 = sadd.s32 1, %s8
  $region7: #{mmpeptide_forward.3} parent=0 // loop_footer_branch
    %7 = sbr.rel target = $region3
  $region8: #{mmpeptide_forward.3} parent=0 // loop_exit
    _

// kernel: mmpeptide_forward.4
$region0: #{mmpeptide_forward.4}
  #allocation0 [shape = 'u32[]', space=smem, size = 0x4, offset = 0x4, fixed_abs, tag = 'smem constant byte address 0x4 - core index']
  #allocation1 [shape = 'u32[144,128]{1,0:T(1,128)}', space=vmem, size = 0x12000, scoped, tag = 'internal scratch']
  %s0 = inlined_call_operand.vmem [shape: bf16[128,1792], index: 0, kind: input, shape index: {}]
  %s1 = inlined_call_operand.vmem [shape: bf16[1792,64], index: 1, kind: input, shape index: {}]
  %s2 = inlined_call_operand.vmem [shape: f32[128,64], index: 2, kind: output, shape index: {}]
  %s3 = sld [smem:[#allocation0]]
  $region18: #{mmpeptide_forward.4} parent=0
    _
  %s5 = ssub.s32 1, %s3
  %s6 = scalar_select 0, %s5, %s3
  // Predicated region
  $region2: #{mmpeptide_forward.4} parent=0 // pred_check
    _
  $region3: #{mmpeptide_forward.4} parent=0 // pred_check_branch
    %8 = sbr.rel (0) target = $region5
  $region4: #{mmpeptide_forward.4} parent=0 // pred_region
    _
  $region5: #{mmpeptide_forward.4} parent=0 // pred_fallthru
    _
  // Predicated region
  $region6: #{mmpeptide_forward.4} parent=0 // pred_check
    _
  $region7: #{mmpeptide_forward.4} parent=0 // pred_check_branch
    %10 = sbr.rel (0) target = $region9
  $region8: #{mmpeptide_forward.4} parent=0 // pred_region
    _
  $region9: #{mmpeptide_forward.4} parent=0 // pred_fallthru
    _
  %v12 = vld [vmem:[%s0] sm:$0xff]
  %v13 = vld [vmem:[%s0 + $0x8] sm:$0xff]
  %v14 = vld [vmem:[%s0 + $0x10] sm:$0xff]
  %v15 = vld [vmem:[%s0 + $0x18] sm:$0xff]
  %v16 = vld [vmem:[%s0 + $0x20] sm:$0xff]
  %v17 = vld [vmem:[%s0 + $0x28] sm:$0xff]
  %v18 = vld [vmem:[%s0 + $0x30] sm:$0xff]
  %v19 = vld [vmem:[%s0 + $0x38] sm:$0xff]
  %v20 = vld [vmem:[%s0 + $0x40] sm:$0xff]
  %v21 = vld [vmem:[%s0 + $0x48] sm:$0xff]
  %v22 = vld [vmem:[%s0 + $0x50] sm:$0xff]
  %v23 = vld [vmem:[%s0 + $0x58] sm:$0xff]
  %v24 = vld [vmem:[%s0 + $0x60] sm:$0xff]
  %v25 = vld [vmem:[%s0 + $0x68] sm:$0xff]
  %v26 = vld [vmem:[%s0 + $0x70] sm:$0xff]
  %v27 = vld [vmem:[%s0 + $0x78] sm:$0xff]
  %v28 = vld [vmem:[%s0 + $0x80] sm:$0xff]
  %v29 = vld [vmem:[%s0 + $0x88] sm:$0xff]
  %v30 = vld [vmem:[%s0 + $0x90] sm:$0xff]
  %v31 = vld [vmem:[%s0 + $0x98] sm:$0xff]
  %v32 = vld [vmem:[%s0 + $0xa0] sm:$0xff]
  %v33 = vld [vmem:[%s0 + $0xa8] sm:$0xff]
  %v34 = vld [vmem:[%s0 + $0xb0] sm:$0xff]
  %v35 = vld [vmem:[%s0 + $0xb8] sm:$0xff]
  %v36 = vld [vmem:[%s0 + $0xc0] sm:$0xff]
  %v37 = vld [vmem:[%s0 + $0xc8] sm:$0xff]
  %v38 = vld [vmem:[%s0 + $0xd0] sm:$0xff]
  %v39 = vld [vmem:[%s0 + $0xd8] sm:$0xff]
  %v40 = vld [vmem:[%s0 + $0xe0] sm:$0xff]
  %v41 = vld [vmem:[%s0 + $0xe8] sm:$0xff]
  %v42 = vld [vmem:[%s0 + $0xf0] sm:$0xff]
  %v43 = vld [vmem:[%s0 + $0xf8] sm:$0xff]
  %v44 = vld [vmem:[%s0 + $0x100] sm:$0xff]
  %v45 = vld [vmem:[%s0 + $0x108] sm:$0xff]
  %v46 = vld [vmem:[%s0 + $0x110] sm:$0xff]
  %v47 = vld [vmem:[%s0 + $0x118] sm:$0xff]
  %v48 = vld [vmem:[%s0 + $0x120] sm:$0xff]
  %v49 = vld [vmem:[%s0 + $0x128] sm:$0xff]
  %v50 = vld [vmem:[%s0 + $0x130] sm:$0xff]
  %v51 = vld [vmem:[%s0 + $0x138] sm:$0xff]
  %v52 = vld [vmem:[%s0 + $0x140] sm:$0xff]
  %v53 = vld [vmem:[%s0 + $0x148] sm:$0xff]
  %v54 = vld [vmem:[%s0 + $0x150] sm:$0xff]
  %v55 = vld [vmem:[%s0 + $0x158] sm:$0xff]
  %v56 = vld [vmem:[%s0 + $0x160] sm:$0xff]
  %v57 = vld [vmem:[%s0 + $0x168] sm:$0xff]
  %v58 = vld [vmem:[%s0 + $0x170] sm:$0xff]
  %v59 = vld [vmem:[%s0 + $0x178] sm:$0xff]
  %v60 = vld [vmem:[%s0 + $0x180] sm:$0xff]
  %v61 = vld [vmem:[%s0 + $0x188] sm:$0xff]
  %v62 = vld [vmem:[%s0 + $0x190] sm:$0xff]
  %v63 = vld [vmem:[%s0 + $0x198] sm:$0xff]
  %v64 = vld [vmem:[%s0 + $0x1a0] sm:$0xff]
  %v65 = vld [vmem:[%s0 + $0x1a8] sm:$0xff]
  %v66 = vld [vmem:[%s0 + $0x1b0] sm:$0xff]
  %v67 = vld [vmem:[%s0 + $0x1b8] sm:$0xff]
  %v68 = vld [vmem:[%s0 + $0x1c0] sm:$0xff]
  %v69 = vld [vmem:[%s0 + $0x1c8] sm:$0xff]
  %v70 = vld [vmem:[%s0 + $0x1d0] sm:$0xff]
  %v71 = vld [vmem:[%s0 + $0x1d8] sm:$0xff]
  %v72 = vld [vmem:[%s0 + $0x1e0] sm:$0xff]
  %v73 = vld [vmem:[%s0 + $0x1e8] sm:$0xff]
  %v74 = vld [vmem:[%s0 + $0x1f0] sm:$0xff]
  %v75 = vld [vmem:[%s0 + $0x1f8] sm:$0xff]
  %v76 = vld [vmem:[%s0 + $0x200] sm:$0xff]
  %v77 = vld [vmem:[%s0 + $0x208] sm:$0xff]
  %v78 = vld [vmem:[%s0 + $0x210] sm:$0xff]
  %v79 = vld [vmem:[%s0 + $0x218] sm:$0xff]
  %v80 = vld [vmem:[%s0 + $0x220] sm:$0xff]
  %v81 = vld [vmem:[%s0 + $0x228] sm:$0xff]
  %v82 = vld [vmem:[%s0 + $0x230] sm:$0xff]
  %v83 = vld [vmem:[%s0 + $0x238] sm:$0xff]
  %v84 = vld [vmem:[%s0 + $0x240] sm:$0xff]
  %v85 = vld [vmem:[%s0 + $0x248] sm:$0xff]
  %v86 = vld [vmem:[%s0 + $0x250] sm:$0xff]
  %v87 = vld [vmem:[%s0 + $0x258] sm:$0xff]
  %v88 = vld [vmem:[%s0 + $0x260] sm:$0xff]
  %v89 = vld [vmem:[%s0 + $0x268] sm:$0xff]
  %v90 = vld [vmem:[%s0 + $0x270] sm:$0xff]
  %v91 = vld [vmem:[%s0 + $0x278] sm:$0xff]
  %v92 = vld [vmem:[%s0 + $0x280] sm:$0xff]
  %v93 = vld [vmem:[%s0 + $0x288] sm:$0xff]
  %v94 = vld [vmem:[%s0 + $0x290] sm:$0xff]
  %v95 = vld [vmem:[%s0 + $0x298] sm:$0xff]
  %v96 = vld [vmem:[%s0 + $0x2a0] sm:$0xff]
  %v97 = vld [vmem:[%s0 + $0x2a8] sm:$0xff]
  %v98 = vld [vmem:[%s0 + $0x2b0] sm:$0xff]
  %v99 = vld [vmem:[%s0 + $0x2b8] sm:$0xff]
  %v100 = vld [vmem:[%s0 + $0x2c0] sm:$0xff]
  %v101 = vld [vmem:[%s0 + $0x2c8] sm:$0xff]
  %v102 = vld [vmem:[%s0 + $0x2d0] sm:$0xff]
  %v103 = vld [vmem:[%s0 + $0x2d8] sm:$0xff]
  %v104 = vld [vmem:[%s0 + $0x2e0] sm:$0xff]
  %v105 = vld [vmem:[%s0 + $0x2e8] sm:$0xff]
  %v106 = vld [vmem:[%s0 + $0x2f0] sm:$0xff]
  %v107 = vld [vmem:[%s0 + $0x2f8] sm:$0xff]
  %v108 = vld [vmem:[%s0 + $0x300] sm:$0xff]
  %v109 = vld [vmem:[%s0 + $0x308] sm:$0xff]
  %v110 = vld [vmem:[%s0 + $0x310] sm:$0xff]
  %v111 = vld [vmem:[%s0 + $0x318] sm:$0xff]
  %v112 = vld [vmem:[%s0 + $0x320] sm:$0xff]
  %v113 = vld [vmem:[%s0 + $0x328] sm:$0xff]
  %v114 = vld [vmem:[%s0 + $0x330] sm:$0xff]
  %v115 = vld [vmem:[%s0 + $0x338] sm:$0xff]
  %v116 = vld [vmem:[%s0 + $0x340] sm:$0xff]
  %v117 = vld [vmem:[%s0 + $0x348] sm:$0xff]
  %v118 = vld [vmem:[%s0 + $0x350] sm:$0xff]
  %v119 = vld [vmem:[%s0 + $0x358] sm:$0xff]
  %v120 = vld [vmem:[%s0 + $0x360] sm:$0xff]
  %v121 = vld [vmem:[%s0 + $0x368] sm:$0xff]
  %v122 = vld [vmem:[%s0 + $0x370] sm:$0xff]
  %v123 = vld [vmem:[%s0 + $0x378] sm:$0xff]
  %v124 = vld [vmem:[%s1] sm:$0xf]
  %v125 = vld [vmem:[%s1 + $0x4] sm:$0xf]
  %v126 = vld [vmem:[%s1 + $0x8] sm:$0xf]
  %v127 = vld [vmem:[%s1 + $0xc] sm:$0xf]
  %v128 = vld [vmem:[%s1 + $0x10] sm:$0xf]
  %v129 = vld [vmem:[%s1 + $0x14] sm:$0xf]
  %v130 = vld [vmem:[%s1 + $0x18] sm:$0xf]
  %v131 = vld [vmem:[%s1 + $0x1c] sm:$0xf]
  %v132 = vld [vmem:[%s1 + $0x20] sm:$0xf]
  %v133 = vld [vmem:[%s1 + $0x24] sm:$0xf]
  %v134 = vld [vmem:[%s1 + $0x28] sm:$0xf]
  %v135 = vld [vmem:[%s1 + $0x2c] sm:$0xf]
  %v136 = vld [vmem:[%s1 + $0x30] sm:$0xf]
  %v137 = vld [vmem:[%s1 + $0x34] sm:$0xf]
  %v138 = vld [vmem:[%s1 + $0x38] sm:$0xf]
  %v139 = vld [vmem:[%s1 + $0x3c] sm:$0xf]
  %v140 = vld [vmem:[%s1 + $0x40] sm:$0xf]
  %v141 = vld [vmem:[%s1 + $0x44] sm:$0xf]
  %v142 = vld [vmem:[%s1 + $0x48] sm:$0xf]
  %v143 = vld [vmem:[%s1 + $0x4c] sm:$0xf]
  %v144 = vld [vmem:[%s1 + $0x50] sm:$0xf]
  %v145 = vld [vmem:[%s1 + $0x54] sm:$0xf]
  %v146 = vld [vmem:[%s1 + $0x58] sm:$0xf]
  %v147 = vld [vmem:[%s1 + $0x5c] sm:$0xf]
  %v148 = vld [vmem:[%s1 + $0x60] sm:$0xf]
  %v149 = vld [vmem:[%s1 + $0x64] sm:$0xf]
  %v150 = vld [vmem:[%s1 + $0x68] sm:$0xf]
  %v151 = vld [vmem:[%s1 + $0x6c] sm:$0xf]
  %v152 = vld [vmem:[%s1 + $0x70] sm:$0xf]
  %v153 = vld [vmem:[%s1 + $0x74] sm:$0xf]
  %v154 = vld [vmem:[%s1 + $0x78] sm:$0xf]
  %v155 = vld [vmem:[%s1 + $0x7c] sm:$0xf]
  %v156 = vld [vmem:[%s1 + $0x80] sm:$0xf]
  %v157 = vld [vmem:[%s1 + $0x84] sm:$0xf]
  %v158 = vld [vmem:[%s1 + $0x88] sm:$0xf]
  %v159 = vld [vmem:[%s1 + $0x8c] sm:$0xf]
  %v160 = vld [vmem:[%s1 + $0x90] sm:$0xf]
  %v161 = vld [vmem:[%s1 + $0x94] sm:$0xf]
  %v162 = vld [vmem:[%s1 + $0x98] sm:$0xf]
  %v163 = vld [vmem:[%s1 + $0x9c] sm:$0xf]
  %v164 = vld [vmem:[%s1 + $0xa0] sm:$0xf]
  %v165 = vld [vmem:[%s1 + $0xa4] sm:$0xf]
  %v166 = vld [vmem:[%s1 + $0xa8] sm:$0xf]
  %v167 = vld [vmem:[%s1 + $0xac] sm:$0xf]
  %v168 = vld [vmem:[%s1 + $0xb0] sm:$0xf]
  %v169 = vld [vmem:[%s1 + $0xb4] sm:$0xf]
  %v170 = vld [vmem:[%s1 + $0xb8] sm:$0xf]
  %v171 = vld [vmem:[%s1 + $0xbc] sm:$0xf]
  %v172 = vld [vmem:[%s1 + $0xc0] sm:$0xf]
  %v173 = vld [vmem:[%s1 + $0xc4] sm:$0xf]
  %v174 = vld [vmem:[%s1 + $0xc8] sm:$0xf]
  %v175 = vld [vmem:[%s1 + $0xcc] sm:$0xf]
  %v176 = vld [vmem:[%s1 + $0xd0] sm:$0xf]
  %v177 = vld [vmem:[%s1 + $0xd4] sm:$0xf]
  %v178 = vld [vmem:[%s1 + $0xd8] sm:$0xf]
  %v179 = vld [vmem:[%s1 + $0xdc] sm:$0xf]
  %v180 = vld [vmem:[%s1 + $0xe0] sm:$0xf]
  %v181 = vld [vmem:[%s1 + $0xe4] sm:$0xf]
  %v182 = vld [vmem:[%s1 + $0xe8] sm:$0xf]
  %v183 = vld [vmem:[%s1 + $0xec] sm:$0xf]
  %v184 = vld [vmem:[%s1 + $0xf0] sm:$0xf]
  %v185 = vld [vmem:[%s1 + $0xf4] sm:$0xf]
  %v186 = vld [vmem:[%s1 + $0xf8] sm:$0xf]
  %v187 = vld [vmem:[%s1 + $0xfc] sm:$0xf]
  %v188 = vld [vmem:[%s1 + $0x100] sm:$0xf]
  %v189 = vld [vmem:[%s1 + $0x104] sm:$0xf]
  %v190 = vld [vmem:[%s1 + $0x108] sm:$0xf]
  %v191 = vld [vmem:[%s1 + $0x10c] sm:$0xf]
  %v192 = vld [vmem:[%s1 + $0x110] sm:$0xf]
  %v193 = vld [vmem:[%s1 + $0x114] sm:$0xf]
  %v194 = vld [vmem:[%s1 + $0x118] sm:$0xf]
  %v195 = vld [vmem:[%s1 + $0x11c] sm:$0xf]
  %v196 = vld [vmem:[%s1 + $0x120] sm:$0xf]
  %v197 = vld [vmem:[%s1 + $0x124] sm:$0xf]
  %v198 = vld [vmem:[%s1 + $0x128] sm:$0xf]
  %v199 = vld [vmem:[%s1 + $0x12c] sm:$0xf]
  %v200 = vld [vmem:[%s1 + $0x130] sm:$0xf]
  %v201 = vld [vmem:[%s1 + $0x134] sm:$0xf]
  %v202 = vld [vmem:[%s1 + $0x138] sm:$0xf]
  %v203 = vld [vmem:[%s1 + $0x13c] sm:$0xf]
  %v204 = vld [vmem:[%s1 + $0x140] sm:$0xf]
  %v205 = vld [vmem:[%s1 + $0x144] sm:$0xf]
  %v206 = vld [vmem:[%s1 + $0x148] sm:$0xf]
  %v207 = vld [vmem:[%s1 + $0x14c] sm:$0xf]
  %v208 = vld [vmem:[%s1 + $0x150] sm:$0xf]
  %v209 = vld [vmem:[%s1 + $0x154] sm:$0xf]
  %v210 = vld [vmem:[%s1 + $0x158] sm:$0xf]
  %v211 = vld [vmem:[%s1 + $0x15c] sm:$0xf]
  %v212 = vld [vmem:[%s1 + $0x160] sm:$0xf]
  %v213 = vld [vmem:[%s1 + $0x164] sm:$0xf]
  %v214 = vld [vmem:[%s1 + $0x168] sm:$0xf]
  %v215 = vld [vmem:[%s1 + $0x16c] sm:$0xf]
  %v216 = vld [vmem:[%s1 + $0x170] sm:$0xf]
  %v217 = vld [vmem:[%s1 + $0x174] sm:$0xf]
  %v218 = vld [vmem:[%s1 + $0x178] sm:$0xf]
  %v219 = vld [vmem:[%s1 + $0x17c] sm:$0xf]
  %v220 = vld [vmem:[%s1 + $0x180] sm:$0xf]
  %v221 = vld [vmem:[%s1 + $0x184] sm:$0xf]
  %v222 = vld [vmem:[%s1 + $0x188] sm:$0xf]
  %v223 = vld [vmem:[%s1 + $0x18c] sm:$0xf]
  %v224 = vld [vmem:[%s1 + $0x190] sm:$0xf]
  %v225 = vld [vmem:[%s1 + $0x194] sm:$0xf]
  %v226 = vld [vmem:[%s1 + $0x198] sm:$0xf]
  %v227 = vld [vmem:[%s1 + $0x19c] sm:$0xf]
  %v228 = vld [vmem:[%s1 + $0x1a0] sm:$0xf]
  %v229 = vld [vmem:[%s1 + $0x1a4] sm:$0xf]
  %v230 = vld [vmem:[%s1 + $0x1a8] sm:$0xf]
  %v231 = vld [vmem:[%s1 + $0x1ac] sm:$0xf]
  %v232 = vld [vmem:[%s1 + $0x1b0] sm:$0xf]
  %v233 = vld [vmem:[%s1 + $0x1b4] sm:$0xf]
  %v234 = vld [vmem:[%s1 + $0x1b8] sm:$0xf]
  %v235 = vld [vmem:[%s1 + $0x1bc] sm:$0xf]
  %v236 = vld [vmem:[%s1 + $0x1c0] sm:$0xf]
  %v237 = vld [vmem:[%s1 + $0x1c4] sm:$0xf]
  %v238 = vld [vmem:[%s1 + $0x1c8] sm:$0xf]
  %v239 = vld [vmem:[%s1 + $0x1cc] sm:$0xf]
  %v240 = vld [vmem:[%s1 + $0x1d0] sm:$0xf]
  %v241 = vld [vmem:[%s1 + $0x1d4] sm:$0xf]
  %v242 = vld [vmem:[%s1 + $0x1d8] sm:$0xf]
  %v243 = vld [vmem:[%s1 + $0x1dc] sm:$0xf]
  %v244 = vld [vmem:[%s1 + $0x1e0] sm:$0xf]
  %v245 = vld [vmem:[%s1 + $0x1e4] sm:$0xf]
  %v246 = vld [vmem:[%s1 + $0x1e8] sm:$0xf]
  %v247 = vld [vmem:[%s1 + $0x1ec] sm:$0xf]
  %v248 = vld [vmem:[%s1 + $0x1f0] sm:$0xf]
  %v249 = vld [vmem:[%s1 + $0x1f4] sm:$0xf]
  %v250 = vld [vmem:[%s1 + $0x1f8] sm:$0xf]
  %v251 = vld [vmem:[%s1 + $0x1fc] sm:$0xf]
  %v252 = vld [vmem:[%s1 + $0x200] sm:$0xf]
  %v253 = vld [vmem:[%s1 + $0x204] sm:$0xf]
  %v254 = vld [vmem:[%s1 + $0x208] sm:$0xf]
  %v255 = vld [vmem:[%s1 + $0x20c] sm:$0xf]
  %v256 = vld [vmem:[%s1 + $0x210] sm:$0xf]
  %v257 = vld [vmem:[%s1 + $0x214] sm:$0xf]
  %v258 = vld [vmem:[%s1 + $0x218] sm:$0xf]
  %v259 = vld [vmem:[%s1 + $0x21c] sm:$0xf]
  %v260 = vld [vmem:[%s1 + $0x220] sm:$0xf]
  %v261 = vld [vmem:[%s1 + $0x224] sm:$0xf]
  %v262 = vld [vmem:[%s1 + $0x228] sm:$0xf]
  %v263 = vld [vmem:[%s1 + $0x22c] sm:$0xf]
  %v264 = vld [vmem:[%s1 + $0x230] sm:$0xf]
  %v265 = vld [vmem:[%s1 + $0x234] sm:$0xf]
  %v266 = vld [vmem:[%s1 + $0x238] sm:$0xf]
  %v267 = vld [vmem:[%s1 + $0x23c] sm:$0xf]
  %v268 = vld [vmem:[%s1 + $0x240] sm:$0xf]
  %v269 = vld [vmem:[%s1 + $0x244] sm:$0xf]
  %v270 = vld [vmem:[%s1 + $0x248] sm:$0xf]
  %v271 = vld [vmem:[%s1 + $0x24c] sm:$0xf]
  %v272 = vld [vmem:[%s1 + $0x250] sm:$0xf]
  %v273 = vld [vmem:[%s1 + $0x254] sm:$0xf]
  %v274 = vld [vmem:[%s1 + $0x258] sm:$0xf]
  %v275 = vld [vmem:[%s1 + $0x25c] sm:$0xf]
  %v276 = vld [vmem:[%s1 + $0x260] sm:$0xf]
  %v277 = vld [vmem:[%s1 + $0x264] sm:$0xf]
  %v278 = vld [vmem:[%s1 + $0x268] sm:$0xf]
  %v279 = vld [vmem:[%s1 + $0x26c] sm:$0xf]
  %v280 = vld [vmem:[%s1 + $0x270] sm:$0xf]
  %v281 = vld [vmem:[%s1 + $0x274] sm:$0xf]
  %v282 = vld [vmem:[%s1 + $0x278] sm:$0xf]
  %v283 = vld [vmem:[%s1 + $0x27c] sm:$0xf]
  %v284 = vld [vmem:[%s1 + $0x280] sm:$0xf]
  %v285 = vld [vmem:[%s1 + $0x284] sm:$0xf]
  %v286 = vld [vmem:[%s1 + $0x288] sm:$0xf]
  %v287 = vld [vmem:[%s1 + $0x28c] sm:$0xf]
  %v288 = vld [vmem:[%s1 + $0x290] sm:$0xf]
  %v289 = vld [vmem:[%s1 + $0x294] sm:$0xf]
  %v290 = vld [vmem:[%s1 + $0x298] sm:$0xf]
  %v291 = vld [vmem:[%s1 + $0x29c] sm:$0xf]
  %v292 = vld [vmem:[%s1 + $0x2a0] sm:$0xf]
  %v293 = vld [vmem:[%s1 + $0x2a4] sm:$0xf]
  %v294 = vld [vmem:[%s1 + $0x2a8] sm:$0xf]
  %v295 = vld [vmem:[%s1 + $0x2ac] sm:$0xf]
  %v296 = vld [vmem:[%s1 + $0x2b0] sm:$0xf]
  %v297 = vld [vmem:[%s1 + $0x2b4] sm:$0xf]
  %v298 = vld [vmem:[%s1 + $0x2b8] sm:$0xf]
  %v299 = vld [vmem:[%s1 + $0x2bc] sm:$0xf]
  %v300 = vld [vmem:[%s1 + $0x2c0] sm:$0xf]
  %v301 = vld [vmem:[%s1 + $0x2c4] sm:$0xf]
  %v302 = vld [vmem:[%s1 + $0x2c8] sm:$0xf]
  %v303 = vld [vmem:[%s1 + $0x2cc] sm:$0xf]
  %v304 = vld [vmem:[%s1 + $0x2d0] sm:$0xf]
  %v305 = vld [vmem:[%s1 + $0x2d4] sm:$0xf]
  %v306 = vld [vmem:[%s1 + $0x2d8] sm:$0xf]
  %v307 = vld [vmem:[%s1 + $0x2dc] sm:$0xf]
  %v308 = vld [vmem:[%s1 + $0x2e0] sm:$0xf]
  %v309 = vld [vmem:[%s1 + $0x2e4] sm:$0xf]
  %v310 = vld [vmem:[%s1 + $0x2e8] sm:$0xf]
  %v311 = vld [vmem:[%s1 + $0x2ec] sm:$0xf]
  %v312 = vld [vmem:[%s1 + $0x2f0] sm:$0xf]
  %v313 = vld [vmem:[%s1 + $0x2f4] sm:$0xf]
  %v314 = vld [vmem:[%s1 + $0x2f8] sm:$0xf]
  %v315 = vld [vmem:[%s1 + $0x2fc] sm:$0xf]
  %v316 = vld [vmem:[%s1 + $0x300] sm:$0xf]
  %v317 = vld [vmem:[%s1 + $0x304] sm:$0xf]
  %v318 = vld [vmem:[%s1 + $0x308] sm:$0xf]
  %v319 = vld [vmem:[%s1 + $0x30c] sm:$0xf]
  %v320 = vld [vmem:[%s1 + $0x310] sm:$0xf]
  %v321 = vld [vmem:[%s1 + $0x314] sm:$0xf]
  %v322 = vld [vmem:[%s1 + $0x318] sm:$0xf]
  %v323 = vld [vmem:[%s1 + $0x31c] sm:$0xf]
  %v324 = vld [vmem:[%s1 + $0x320] sm:$0xf]
  %v325 = vld [vmem:[%s1 + $0x324] sm:$0xf]
  %v326 = vld [vmem:[%s1 + $0x328] sm:$0xf]
  %v327 = vld [vmem:[%s1 + $0x32c] sm:$0xf]
  %v328 = vld [vmem:[%s1 + $0x330] sm:$0xf]
  %v329 = vld [vmem:[%s1 + $0x334] sm:$0xf]
  %v330 = vld [vmem:[%s1 + $0x338] sm:$0xf]
  %v331 = vld [vmem:[%s1 + $0x33c] sm:$0xf]
  %v332 = vld [vmem:[%s1 + $0x340] sm:$0xf]
  %v333 = vld [vmem:[%s1 + $0x344] sm:$0xf]
  %v334 = vld [vmem:[%s1 + $0x348] sm:$0xf]
  %v335 = vld [vmem:[%s1 + $0x34c] sm:$0xf]
  %v336 = vld [vmem:[%s1 + $0x350] sm:$0xf]
  %v337 = vld [vmem:[%s1 + $0x354] sm:$0xf]
  %v338 = vld [vmem:[%s1 + $0x358] sm:$0xf]
  %v339 = vld [vmem:[%s1 + $0x35c] sm:$0xf]
  %v340 = vld [vmem:[%s1 + $0x360] sm:$0xf]
  %v341 = vld [vmem:[%s1 + $0x364] sm:$0xf]
  %v342 = vld [vmem:[%s1 + $0x368] sm:$0xf]
  %v343 = vld [vmem:[%s1 + $0x36c] sm:$0xf]
  %v344 = vld [vmem:[%s1 + $0x370] sm:$0xf]
  %v345 = vld [vmem:[%s1 + $0x374] sm:$0xf]
  %v346 = vld [vmem:[%s1 + $0x378] sm:$0xf]
  %v347 = vld [vmem:[%s1 + $0x37c] sm:$0xf]
  %v460 = vunpack.c.l.b16 %v12
  %v461 = vunpack.c.h.b16 %v12
  %v462 = vunpack.c.l.b16 %v13
  %v463 = vunpack.c.h.b16 %v13
  %v464 = vunpack.c.l.b16 %v14
  %v465 = vunpack.c.h.b16 %v14
  %v466 = vunpack.c.l.b16 %v15
  %v467 = vunpack.c.h.b16 %v15
  %v468 = vunpack.c.l.b16 %v16
  %v469 = vunpack.c.h.b16 %v16
  %v470 = vunpack.c.l.b16 %v17
  %v471 = vunpack.c.h.b16 %v17
  %v472 = vunpack.c.l.b16 %v18
  %v473 = vunpack.c.h.b16 %v18
  %v474 = vunpack.c.l.b16 %v19
  %v475 = vunpack.c.h.b16 %v19
  %v476 = vunpack.c.l.b16 %v20
  %v477 = vunpack.c.h.b16 %v20
  %v478 = vunpack.c.l.b16 %v21
  %v479 = vunpack.c.h.b16 %v21
  %v480 = vunpack.c.l.b16 %v22
  %v481 = vunpack.c.h.b16 %v22
  %v482 = vunpack.c.l.b16 %v23
  %v483 = vunpack.c.h.b16 %v23
  %v484 = vunpack.c.l.b16 %v24
  %v485 = vunpack.c.h.b16 %v24
  %v486 = vunpack.c.l.b16 %v25
  %v487 = vunpack.c.h.b16 %v25
  %v488 = vunpack.c.l.b16 %v26
  %v489 = vunpack.c.h.b16 %v26
  %v490 = vunpack.c.l.b16 %v27
  %v491 = vunpack.c.h.b16 %v27
  %v492 = vunpack.c.l.b16 %v28
  %v493 = vunpack.c.h.b16 %v28
  %v494 = vunpack.c.l.b16 %v29
  %v495 = vunpack.c.h.b16 %v29
  %v496 = vunpack.c.l.b16 %v30
  %v497 = vunpack.c.h.b16 %v30
  %v498 = vunpack.c.l.b16 %v31
  %v499 = vunpack.c.h.b16 %v31
  %v500 = vunpack.c.l.b16 %v32
  %v501 = vunpack.c.h.b16 %v32
  %v502 = vunpack.c.l.b16 %v33
  %v503 = vunpack.c.h.b16 %v33
  %v504 = vunpack.c.l.b16 %v34
  %v505 = vunpack.c.h.b16 %v34
  %v506 = vunpack.c.l.b16 %v35
  %v507 = vunpack.c.h.b16 %v35
  %v508 = vunpack.c.l.b16 %v36
  %v509 = vunpack.c.h.b16 %v36
  %v510 = vunpack.c.l.b16 %v37
  %v511 = vunpack.c.h.b16 %v37
  %v512 = vunpack.c.l.b16 %v38
  %v513 = vunpack.c.h.b16 %v38
  %v514 = vunpack.c.l.b16 %v39
  %v515 = vunpack.c.h.b16 %v39
  %v516 = vunpack.c.l.b16 %v40
  %v517 = vunpack.c.h.b16 %v40
  %v518 = vunpack.c.l.b16 %v41
  %v519 = vunpack.c.h.b16 %v41
  %v520 = vunpack.c.l.b16 %v42
  %v521 = vunpack.c.h.b16 %v42
  %v522 = vunpack.c.l.b16 %v43
  %v523 = vunpack.c.h.b16 %v43
  %v524 = vunpack.c.l.b16 %v44
  %v525 = vunpack.c.h.b16 %v44
  %v526 = vunpack.c.l.b16 %v45
  %v527 = vunpack.c.h.b16 %v45
  %v528 = vunpack.c.l.b16 %v46
  %v529 = vunpack.c.h.b16 %v46
  %v530 = vunpack.c.l.b16 %v47
  %v531 = vunpack.c.h.b16 %v47
  %v532 = vunpack.c.l.b16 %v48
  %v533 = vunpack.c.h.b16 %v48
  %v534 = vunpack.c.l.b16 %v49
  %v535 = vunpack.c.h.b16 %v49
  %v536 = vunpack.c.l.b16 %v50
  %v537 = vunpack.c.h.b16 %v50
  %v538 = vunpack.c.l.b16 %v51
  %v539 = vunpack.c.h.b16 %v51
  %v540 = vunpack.c.l.b16 %v52
  %v541 = vunpack.c.h.b16 %v52
  %v542 = vunpack.c.l.b16 %v53
  %v543 = vunpack.c.h.b16 %v53
  %v544 = vunpack.c.l.b16 %v54
  %v545 = vunpack.c.h.b16 %v54
  %v546 = vunpack.c.l.b16 %v55
  %v547 = vunpack.c.h.b16 %v55
  %v548 = vunpack.c.l.b16 %v56
  %v549 = vunpack.c.h.b16 %v56
  %v550 = vunpack.c.l.b16 %v57
  %v551 = vunpack.c.h.b16 %v57
  %v552 = vunpack.c.l.b16 %v58
  %v553 = vunpack.c.h.b16 %v58
  %v554 = vunpack.c.l.b16 %v59
  %v555 = vunpack.c.h.b16 %v59
  %v556 = vunpack.c.l.b16 %v60
  %v557 = vunpack.c.h.b16 %v60
  %v558 = vunpack.c.l.b16 %v61
  %v559 = vunpack.c.h.b16 %v61
  %v560 = vunpack.c.l.b16 %v62
  %v561 = vunpack.c.h.b16 %v62
  %v562 = vunpack.c.l.b16 %v63
  %v563 = vunpack.c.h.b16 %v63
  %v564 = vunpack.c.l.b16 %v64
  %v565 = vunpack.c.h.b16 %v64
  %v566 = vunpack.c.l.b16 %v65
  %v567 = vunpack.c.h.b16 %v65
  %v568 = vunpack.c.l.b16 %v66
  %v569 = vunpack.c.h.b16 %v66
  %v570 = vunpack.c.l.b16 %v67
  %v571 = vunpack.c.h.b16 %v67
  %v572 = vunpack.c.l.b16 %v68
  %v573 = vunpack.c.h.b16 %v68
  %v574 = vunpack.c.l.b16 %v69
  %v575 = vunpack.c.h.b16 %v69
  %v576 = vunpack.c.l.b16 %v70
  %v577 = vunpack.c.h.b16 %v70
  %v578 = vunpack.c.l.b16 %v71
  %v579 = vunpack.c.h.b16 %v71
  %v580 = vunpack.c.l.b16 %v72
  %v581 = vunpack.c.h.b16 %v72
  %v582 = vunpack.c.l.b16 %v73
  %v583 = vunpack.c.h.b16 %v73
  %v584 = vunpack.c.l.b16 %v74
  %v585 = vunpack.c.h.b16 %v74
  %v586 = vunpack.c.l.b16 %v75
  %v587 = vunpack.c.h.b16 %v75
  %v588 = vunpack.c.l.b16 %v76
  %v589 = vunpack.c.h.b16 %v76
  %v590 = vunpack.c.l.b16 %v77
  %v591 = vunpack.c.h.b16 %v77
  %v592 = vunpack.c.l.b16 %v78
  %v593 = vunpack.c.h.b16 %v78
  %v594 = vunpack.c.l.b16 %v79
  %v595 = vunpack.c.h.b16 %v79
  %v596 = vunpack.c.l.b16 %v80
  %v597 = vunpack.c.h.b16 %v80
  %v598 = vunpack.c.l.b16 %v81
  %v599 = vunpack.c.h.b16 %v81
  %v600 = vunpack.c.l.b16 %v82
  %v601 = vunpack.c.h.b16 %v82
  %v602 = vunpack.c.l.b16 %v83
  %v603 = vunpack.c.h.b16 %v83
  %v604 = vunpack.c.l.b16 %v84
  %v605 = vunpack.c.h.b16 %v84
  %v606 = vunpack.c.l.b16 %v85
  %v607 = vunpack.c.h.b16 %v85
  %v608 = vunpack.c.l.b16 %v86
  %v609 = vunpack.c.h.b16 %v86
  %v610 = vunpack.c.l.b16 %v87
  %v611 = vunpack.c.h.b16 %v87
  %v612 = vunpack.c.l.b16 %v88
  %v613 = vunpack.c.h.b16 %v88
  %v614 = vunpack.c.l.b16 %v89
  %v615 = vunpack.c.h.b16 %v89
  %v616 = vunpack.c.l.b16 %v90
  %v617 = vunpack.c.h.b16 %v90
  %v618 = vunpack.c.l.b16 %v91
  %v619 = vunpack.c.h.b16 %v91
  %v620 = vunpack.c.l.b16 %v92
  %v621 = vunpack.c.h.b16 %v92
  %v622 = vunpack.c.l.b16 %v93
  %v623 = vunpack.c.h.b16 %v93
  %v624 = vunpack.c.l.b16 %v94
  %v625 = vunpack.c.h.b16 %v94
  %v626 = vunpack.c.l.b16 %v95
  %v627 = vunpack.c.h.b16 %v95
  %v628 = vunpack.c.l.b16 %v96
  %v629 = vunpack.c.h.b16 %v96
  %v630 = vunpack.c.l.b16 %v97
  %v631 = vunpack.c.h.b16 %v97
  %v632 = vunpack.c.l.b16 %v98
  %v633 = vunpack.c.h.b16 %v98
  %v634 = vunpack.c.l.b16 %v99
  %v635 = vunpack.c.h.b16 %v99
  %v636 = vunpack.c.l.b16 %v100
  %v637 = vunpack.c.h.b16 %v100
  %v638 = vunpack.c.l.b16 %v101
  %v639 = vunpack.c.h.b16 %v101
  %v640 = vunpack.c.l.b16 %v102
  %v641 = vunpack.c.h.b16 %v102
  %v642 = vunpack.c.l.b16 %v103
  %v643 = vunpack.c.h.b16 %v103
  %v644 = vunpack.c.l.b16 %v104
  %v645 = vunpack.c.h.b16 %v104
  %v646 = vunpack.c.l.b16 %v105
  %v647 = vunpack.c.h.b16 %v105
  %v648 = vunpack.c.l.b16 %v106
  %v649 = vunpack.c.h.b16 %v106
  %v650 = vunpack.c.l.b16 %v107
  %v651 = vunpack.c.h.b16 %v107
  %v652 = vunpack.c.l.b16 %v108
  %v653 = vunpack.c.h.b16 %v108
  %v654 = vunpack.c.l.b16 %v109
  %v655 = vunpack.c.h.b16 %v109
  %v656 = vunpack.c.l.b16 %v110
  %v657 = vunpack.c.h.b16 %v110
  %v658 = vunpack.c.l.b16 %v111
  %v659 = vunpack.c.h.b16 %v111
  %v660 = vunpack.c.l.b16 %v112
  %v661 = vunpack.c.h.b16 %v112
  %v662 = vunpack.c.l.b16 %v113
  %v663 = vunpack.c.h.b16 %v113
  %v664 = vunpack.c.l.b16 %v114
  %v665 = vunpack.c.h.b16 %v114
  %v666 = vunpack.c.l.b16 %v115
  %v667 = vunpack.c.h.b16 %v115
  %v668 = vunpack.c.l.b16 %v116
  %v669 = vunpack.c.h.b16 %v116
  %v670 = vunpack.c.l.b16 %v117
  %v671 = vunpack.c.h.b16 %v117
  %v672 = vunpack.c.l.b16 %v118
  %v673 = vunpack.c.h.b16 %v118
  %v674 = vunpack.c.l.b16 %v119
  %v675 = vunpack.c.h.b16 %v119
  %v676 = vunpack.c.l.b16 %v120
  %v677 = vunpack.c.h.b16 %v120
  %v678 = vunpack.c.l.b16 %v121
  %v679 = vunpack.c.h.b16 %v121
  %v680 = vunpack.c.l.b16 %v122
  %v681 = vunpack.c.h.b16 %v122
  %v682 = vunpack.c.l.b16 %v123
  %v683 = vunpack.c.h.b16 %v123
  %v684 = vpack.c.b16 %v474, %v460
  %v685 = vpack.c.b16 %v475, %v461
  %v686 = vpack.c.b16 %v476, %v462
  %v687 = vpack.c.b16 %v477, %v463
  %v688 = vpack.c.b16 %v478, %v464
  %v689 = vpack.c.b16 %v479, %v465
  %v690 = vpack.c.b16 %v480, %v466
  %v691 = vpack.c.b16 %v481, %v467
  %v692 = vpack.c.b16 %v482, %v468
  %v693 = vpack.c.b16 %v483, %v469
  %v694 = vpack.c.b16 %v484, %v470
  %v695 = vpack.c.b16 %v485, %v471
  %v696 = vpack.c.b16 %v486, %v472
  %v697 = vpack.c.b16 %v487, %v473
  %v698 = vpack.c.b16 %v502, %v488
  %v699 = vpack.c.b16 %v503, %v489
  %v700 = vpack.c.b16 %v504, %v490
  %v701 = vpack.c.b16 %v505, %v491
  %v702 = vpack.c.b16 %v506, %v492
  %v703 = vpack.c.b16 %v507, %v493
  %v704 = vpack.c.b16 %v508, %v494
  %v705 = vpack.c.b16 %v509, %v495
  %v706 = vpack.c.b16 %v510, %v496
  %v707 = vpack.c.b16 %v511, %v497
  %v708 = vpack.c.b16 %v512, %v498
  %v709 = vpack.c.b16 %v513, %v499
  %v710 = vpack.c.b16 %v514, %v500
  %v711 = vpack.c.b16 %v515, %v501
  %v712 = vpack.c.b16 %v530, %v516
  %v713 = vpack.c.b16 %v531, %v517
  %v714 = vpack.c.b16 %v532, %v518
  %v715 = vpack.c.b16 %v533, %v519
  %v716 = vpack.c.b16 %v534, %v520
  %v717 = vpack.c.b16 %v535, %v521
  %v718 = vpack.c.b16 %v536, %v522
  %v719 = vpack.c.b16 %v537, %v523
  %v720 = vpack.c.b16 %v538, %v524
  %v721 = vpack.c.b16 %v539, %v525
  %v722 = vpack.c.b16 %v540, %v526
  %v723 = vpack.c.b16 %v541, %v527
  %v724 = vpack.c.b16 %v542, %v528
  %v725 = vpack.c.b16 %v543, %v529
  %v726 = vpack.c.b16 %v558, %v544
  %v727 = vpack.c.b16 %v559, %v545
  %v728 = vpack.c.b16 %v560, %v546
  %v729 = vpack.c.b16 %v561, %v547
  %v730 = vpack.c.b16 %v562, %v548
  %v731 = vpack.c.b16 %v563, %v549
  %v732 = vpack.c.b16 %v564, %v550
  %v733 = vpack.c.b16 %v565, %v551
  %v734 = vpack.c.b16 %v566, %v552
  %v735 = vpack.c.b16 %v567, %v553
  %v736 = vpack.c.b16 %v568, %v554
  %v737 = vpack.c.b16 %v569, %v555
  %v738 = vpack.c.b16 %v570, %v556
  %v739 = vpack.c.b16 %v571, %v557
  %v740 = vpack.c.b16 %v586, %v572
  %v741 = vpack.c.b16 %v587, %v573
  %v742 = vpack.c.b16 %v588, %v574
  %v743 = vpack.c.b16 %v589, %v575
  %v744 = vpack.c.b16 %v590, %v576
  %v745 = vpack.c.b16 %v591, %v577
  %v746 = vpack.c.b16 %v592, %v578
  %v747 = vpack.c.b16 %v593, %v579
  %v748 = vpack.c.b16 %v594, %v580
  %v749 = vpack.c.b16 %v595, %v581
  %v750 = vpack.c.b16 %v596, %v582
  %v751 = vpack.c.b16 %v597, %v583
  %v752 = vpack.c.b16 %v598, %v584
  %v753 = vpack.c.b16 %v599, %v585
  %v754 = vpack.c.b16 %v614, %v600
  %v755 = vpack.c.b16 %v615, %v601
  %v756 = vpack.c.b16 %v616, %v602
  %v757 = vpack.c.b16 %v617, %v603
  %v758 = vpack.c.b16 %v618, %v604
  %v759 = vpack.c.b16 %v619, %v605
  %v760 = vpack.c.b16 %v620, %v606
  %v761 = vpack.c.b16 %v621, %v607
  %v762 = vpack.c.b16 %v622, %v608
  %v763 = vpack.c.b16 %v623, %v609
  %v764 = vpack.c.b16 %v624, %v610
  %v765 = vpack.c.b16 %v625, %v611
  %v766 = vpack.c.b16 %v626, %v612
  %v767 = vpack.c.b16 %v627, %v613
  %v768 = vpack.c.b16 %v642, %v628
  %v769 = vpack.c.b16 %v643, %v629
  %v770 = vpack.c.b16 %v644, %v630
  %v771 = vpack.c.b16 %v645, %v631
  %v772 = vpack.c.b16 %v646, %v632
  %v773 = vpack.c.b16 %v647, %v633
  %v774 = vpack.c.b16 %v648, %v634
  %v775 = vpack.c.b16 %v649, %v635
  %v776 = vpack.c.b16 %v650, %v636
  %v777 = vpack.c.b16 %v651, %v637
  %v778 = vpack.c.b16 %v652, %v638
  %v779 = vpack.c.b16 %v653, %v639
  %v780 = vpack.c.b16 %v654, %v640
  %v781 = vpack.c.b16 %v655, %v641
  %v782 = vpack.c.b16 %v670, %v656
  %v783 = vpack.c.b16 %v671, %v657
  %v784 = vpack.c.b16 %v672, %v658
  %v785 = vpack.c.b16 %v673, %v659
  %v786 = vpack.c.b16 %v674, %v660
  %v787 = vpack.c.b16 %v675, %v661
  %v788 = vpack.c.b16 %v676, %v662
  %v789 = vpack.c.b16 %v677, %v663
  %v790 = vpack.c.b16 %v678, %v664
  %v791 = vpack.c.b16 %v679, %v665
  %v792 = vpack.c.b16 %v680, %v666
  %v793 = vpack.c.b16 %v681, %v667
  %v794 = vpack.c.b16 %v682, %v668
  %v795 = vpack.c.b16 %v683, %v669
  %v1132 = vunpack.c.l.b16 %v124
  %v1133 = vunpack.c.l.b16 %v125
  %v1134 = vunpack.c.l.b16 %v126
  %v1135 = vunpack.c.l.b16 %v127
  %v1136 = vunpack.c.l.b16 %v128
  %v1137 = vunpack.c.l.b16 %v129
  %v1138 = vunpack.c.l.b16 %v130
  %v1139 = vunpack.c.l.b16 %v131
  %v1140 = vunpack.c.l.b16 %v132
  %v1141 = vunpack.c.l.b16 %v133
  %v1142 = vunpack.c.l.b16 %v134
  %v1143 = vunpack.c.l.b16 %v135
  %v1144 = vunpack.c.l.b16 %v136
  %v1145 = vunpack.c.l.b16 %v137
  %v1146 = vunpack.c.l.b16 %v138
  %v1147 = vunpack.c.l.b16 %v139
  %v1148 = vunpack.c.l.b16 %v140
  %v1149 = vunpack.c.l.b16 %v141
  %v1150 = vunpack.c.l.b16 %v142
  %v1151 = vunpack.c.l.b16 %v143
  %v1152 = vunpack.c.l.b16 %v144
  %v1153 = vunpack.c.l.b16 %v145
  %v1154 = vunpack.c.l.b16 %v146
  %v1155 = vunpack.c.l.b16 %v147
  %v1156 = vunpack.c.l.b16 %v148
  %v1157 = vunpack.c.l.b16 %v149
  %v1158 = vunpack.c.l.b16 %v150
  %v1159 = vunpack.c.l.b16 %v151
  %v1160 = vunpack.c.l.b16 %v152
  %v1161 = vunpack.c.l.b16 %v153
  %v1162 = vunpack.c.l.b16 %v154
  %v1163 = vunpack.c.l.b16 %v155
  %v1164 = vunpack.c.l.b16 %v156
  %v1165 = vunpack.c.l.b16 %v157
  %v1166 = vunpack.c.l.b16 %v158
  %v1167 = vunpack.c.l.b16 %v159
  %v1168 = vunpack.c.l.b16 %v160
  %v1169 = vunpack.c.l.b16 %v161
  %v1170 = vunpack.c.l.b16 %v162
  %v1171 = vunpack.c.l.b16 %v163
  %v1172 = vunpack.c.l.b16 %v164
  %v1173 = vunpack.c.l.b16 %v165
  %v1174 = vunpack.c.l.b16 %v166
  %v1175 = vunpack.c.l.b16 %v167
  %v1176 = vunpack.c.l.b16 %v168
  %v1177 = vunpack.c.l.b16 %v169
  %v1178 = vunpack.c.l.b16 %v170
  %v1179 = vunpack.c.l.b16 %v171
  %v1180 = vunpack.c.l.b16 %v172
  %v1181 = vunpack.c.l.b16 %v173
  %v1182 = vunpack.c.l.b16 %v174
  %v1183 = vunpack.c.l.b16 %v175
  %v1184 = vunpack.c.l.b16 %v176
  %v1185 = vunpack.c.l.b16 %v177
  %v1186 = vunpack.c.l.b16 %v178
  %v1187 = vunpack.c.l.b16 %v179
  %v1188 = vunpack.c.l.b16 %v180
  %v1189 = vunpack.c.l.b16 %v181
  %v1190 = vunpack.c.l.b16 %v182
  %v1191 = vunpack.c.l.b16 %v183
  %v1192 = vunpack.c.l.b16 %v184
  %v1193 = vunpack.c.l.b16 %v185
  %v1194 = vunpack.c.l.b16 %v186
  %v1195 = vunpack.c.l.b16 %v187
  %v1196 = vunpack.c.l.b16 %v188
  %v1197 = vunpack.c.l.b16 %v189
  %v1198 = vunpack.c.l.b16 %v190
  %v1199 = vunpack.c.l.b16 %v191
  %v1200 = vunpack.c.l.b16 %v192
  %v1201 = vunpack.c.l.b16 %v193
  %v1202 = vunpack.c.l.b16 %v194
  %v1203 = vunpack.c.l.b16 %v195
  %v1204 = vunpack.c.l.b16 %v196
  %v1205 = vunpack.c.l.b16 %v197
  %v1206 = vunpack.c.l.b16 %v198
  %v1207 = vunpack.c.l.b16 %v199
  %v1208 = vunpack.c.l.b16 %v200
  %v1209 = vunpack.c.l.b16 %v201
  %v1210 = vunpack.c.l.b16 %v202
  %v1211 = vunpack.c.l.b16 %v203
  %v1212 = vunpack.c.l.b16 %v204
  %v1213 = vunpack.c.l.b16 %v205
  %v1214 = vunpack.c.l.b16 %v206
  %v1215 = vunpack.c.l.b16 %v207
  %v1216 = vunpack.c.l.b16 %v208
  %v1217 = vunpack.c.l.b16 %v209
  %v1218 = vunpack.c.l.b16 %v210
  %v1219 = vunpack.c.l.b16 %v211
  %v1220 = vunpack.c.l.b16 %v212
  %v1221 = vunpack.c.l.b16 %v213
  %v1222 = vunpack.c.l.b16 %v214
  %v1223 = vunpack.c.l.b16 %v215
  %v1224 = vunpack.c.l.b16 %v216
  %v1225 = vunpack.c.l.b16 %v217
  %v1226 = vunpack.c.l.b16 %v218
  %v1227 = vunpack.c.l.b16 %v219
  %v1228 = vunpack.c.l.b16 %v220
  %v1229 = vunpack.c.l.b16 %v221
  %v1230 = vunpack.c.l.b16 %v222
  %v1231 = vunpack.c.l.b16 %v223
  %v1232 = vunpack.c.l.b16 %v224
  %v1233 = vunpack.c.l.b16 %v225
  %v1234 = vunpack.c.l.b16 %v226
  %v1235 = vunpack.c.l.b16 %v227
  %v1236 = vunpack.c.l.b16 %v228
  %v1237 = vunpack.c.l.b16 %v229
  %v1238 = vunpack.c.l.b16 %v230
  %v1239 = vunpack.c.l.b16 %v231
  %v1240 = vunpack.c.l.b16 %v232
  %v1241 = vunpack.c.l.b16 %v233
  %v1242 = vunpack.c.l.b16 %v234
  %v1243 = vunpack.c.l.b16 %v235
  %v1244 = vunpack.c.l.b16 %v236
  %v1245 = vunpack.c.l.b16 %v237
  %v1246 = vunpack.c.l.b16 %v238
  %v1247 = vunpack.c.l.b16 %v239
  %v1248 = vunpack.c.l.b16 %v240
  %v1249 = vunpack.c.l.b16 %v241
  %v1250 = vunpack.c.l.b16 %v242
  %v1251 = vunpack.c.l.b16 %v243
  %v1252 = vunpack.c.l.b16 %v244
  %v1253 = vunpack.c.l.b16 %v245
  %v1254 = vunpack.c.l.b16 %v246
  %v1255 = vunpack.c.l.b16 %v247
  %v1256 = vunpack.c.l.b16 %v248
  %v1257 = vunpack.c.l.b16 %v249
  %v1258 = vunpack.c.l.b16 %v250
  %v1259 = vunpack.c.l.b16 %v251
  %v1260 = vunpack.c.l.b16 %v252
  %v1261 = vunpack.c.l.b16 %v253
  %v1262 = vunpack.c.l.b16 %v254
  %v1263 = vunpack.c.l.b16 %v255
  %v1264 = vunpack.c.l.b16 %v256
  %v1265 = vunpack.c.l.b16 %v257
  %v1266 = vunpack.c.l.b16 %v258
  %v1267 = vunpack.c.l.b16 %v259
  %v1268 = vunpack.c.l.b16 %v260
  %v1269 = vunpack.c.l.b16 %v261
  %v1270 = vunpack.c.l.b16 %v262
  %v1271 = vunpack.c.l.b16 %v263
  %v1272 = vunpack.c.l.b16 %v264
  %v1273 = vunpack.c.l.b16 %v265
  %v1274 = vunpack.c.l.b16 %v266
  %v1275 = vunpack.c.l.b16 %v267
  %v1276 = vunpack.c.l.b16 %v268
  %v1277 = vunpack.c.l.b16 %v269
  %v1278 = vunpack.c.l.b16 %v270
  %v1279 = vunpack.c.l.b16 %v271
  %v1280 = vunpack.c.l.b16 %v272
  %v1281 = vunpack.c.l.b16 %v273
  %v1282 = vunpack.c.l.b16 %v274
  %v1283 = vunpack.c.l.b16 %v275
  %v1284 = vunpack.c.l.b16 %v276
  %v1285 = vunpack.c.l.b16 %v277
  %v1286 = vunpack.c.l.b16 %v278
  %v1287 = vunpack.c.l.b16 %v279
  %v1288 = vunpack.c.l.b16 %v280
  %v1289 = vunpack.c.l.b16 %v281
  %v1290 = vunpack.c.l.b16 %v282
  %v1291 = vunpack.c.l.b16 %v283
  %v1292 = vunpack.c.l.b16 %v284
  %v1293 = vunpack.c.l.b16 %v285
  %v1294 = vunpack.c.l.b16 %v286
  %v1295 = vunpack.c.l.b16 %v287
  %v1296 = vunpack.c.l.b16 %v288
  %v1297 = vunpack.c.l.b16 %v289
  %v1298 = vunpack.c.l.b16 %v290
  %v1299 = vunpack.c.l.b16 %v291
  %v1300 = vunpack.c.l.b16 %v292
  %v1301 = vunpack.c.l.b16 %v293
  %v1302 = vunpack.c.l.b16 %v294
  %v1303 = vunpack.c.l.b16 %v295
  %v1304 = vunpack.c.l.b16 %v296
  %v1305 = vunpack.c.l.b16 %v297
  %v1306 = vunpack.c.l.b16 %v298
  %v1307 = vunpack.c.l.b16 %v299
  %v1308 = vunpack.c.l.b16 %v300
  %v1309 = vunpack.c.l.b16 %v301
  %v1310 = vunpack.c.l.b16 %v302
  %v1311 = vunpack.c.l.b16 %v303
  %v1312 = vunpack.c.l.b16 %v304
  %v1313 = vunpack.c.l.b16 %v305
  %v1314 = vunpack.c.l.b16 %v306
  %v1315 = vunpack.c.l.b16 %v307
  %v1316 = vunpack.c.l.b16 %v308
  %v1317 = vunpack.c.l.b16 %v309
  %v1318 = vunpack.c.l.b16 %v310
  %v1319 = vunpack.c.l.b16 %v311
  %v1320 = vunpack.c.l.b16 %v312
  %v1321 = vunpack.c.l.b16 %v313
  %v1322 = vunpack.c.l.b16 %v314
  %v1323 = vunpack.c.l.b16 %v315
  %v1324 = vunpack.c.l.b16 %v316
  %v1325 = vunpack.c.l.b16 %v317
  %v1326 = vunpack.c.l.b16 %v318
  %v1327 = vunpack.c.l.b16 %v319
  %v1328 = vunpack.c.l.b16 %v320
  %v1329 = vunpack.c.l.b16 %v321
  %v1330 = vunpack.c.l.b16 %v322
  %v1331 = vunpack.c.l.b16 %v323
  %v1332 = vunpack.c.l.b16 %v324
  %v1333 = vunpack.c.l.b16 %v325
  %v1334 = vunpack.c.l.b16 %v326
  %v1335 = vunpack.c.l.b16 %v327
  %v1336 = vunpack.c.l.b16 %v328
  %v1337 = vunpack.c.l.b16 %v329
  %v1338 = vunpack.c.l.b16 %v330
  %v1339 = vunpack.c.l.b16 %v331
  %v1340 = vunpack.c.l.b16 %v332
  %v1341 = vunpack.c.l.b16 %v333
  %v1342 = vunpack.c.l.b16 %v334
  %v1343 = vunpack.c.l.b16 %v335
  %v1344 = vunpack.c.l.b16 %v336
  %v1345 = vunpack.c.l.b16 %v337
  %v1346 = vunpack.c.l.b16 %v338
  %v1347 = vunpack.c.l.b16 %v339
  %v1348 = vunpack.c.l.b16 %v340
  %v1349 = vunpack.c.l.b16 %v341
  %v1350 = vunpack.c.l.b16 %v342
  %v1351 = vunpack.c.l.b16 %v343
  %v1352 = vunpack.c.l.b16 %v344
  %v1353 = vunpack.c.l.b16 %v345
  %v1354 = vunpack.c.l.b16 %v346
  %v1355 = vunpack.c.l.b16 %v347
  %v1356 = vpack.c.b16 %v1133, %v1132
  %v1357 = vpack.c.b16 %v1135, %v1134
  %v1358 = vpack.c.b16 %v1137, %v1136
  %v1359 = vpack.c.b16 %v1139, %v1138
  %v1360 = vpack.c.b16 %v1141, %v1140
  %v1361 = vpack.c.b16 %v1143, %v1142
  %v1362 = vpack.c.b16 %v1145, %v1144
  %v1363 = vpack.c.b16 %v1147, %v1146
  %v1364 = vpack.c.b16 %v1149, %v1148
  %v1365 = vpack.c.b16 %v1151, %v1150
  %v1366 = vpack.c.b16 %v1153, %v1152
  %v1367 = vpack.c.b16 %v1155, %v1154
  %v1368 = vpack.c.b16 %v1157, %v1156
  %v1369 = vpack.c.b16 %v1159, %v1158
  %v1370 = vpack.c.b16 %v1161, %v1160
  %v1371 = vpack.c.b16 %v1163, %v1162
  %v1372 = vpack.c.b16 %v1165, %v1164
  %v1373 = vpack.c.b16 %v1167, %v1166
  %v1374 = vpack.c.b16 %v1169, %v1168
  %v1375 = vpack.c.b16 %v1171, %v1170
  %v1376 = vpack.c.b16 %v1173, %v1172
  %v1377 = vpack.c.b16 %v1175, %v1174
  %v1378 = vpack.c.b16 %v1177, %v1176
  %v1379 = vpack.c.b16 %v1179, %v1178
  %v1380 = vpack.c.b16 %v1181, %v1180
  %v1381 = vpack.c.b16 %v1183, %v1182
  %v1382 = vpack.c.b16 %v1185, %v1184
  %v1383 = vpack.c.b16 %v1187, %v1186
  %v1384 = vpack.c.b16 %v1189, %v1188
  %v1385 = vpack.c.b16 %v1191, %v1190
  %v1386 = vpack.c.b16 %v1193, %v1192
  %v1387 = vpack.c.b16 %v1195, %v1194
  %v1388 = vpack.c.b16 %v1197, %v1196
  %v1389 = vpack.c.b16 %v1199, %v1198
  %v1390 = vpack.c.b16 %v1201, %v1200
  %v1391 = vpack.c.b16 %v1203, %v1202
  %v1392 = vpack.c.b16 %v1205, %v1204
  %v1393 = vpack.c.b16 %v1207, %v1206
  %v1394 = vpack.c.b16 %v1209, %v1208
  %v1395 = vpack.c.b16 %v1211, %v1210
  %v1396 = vpack.c.b16 %v1213, %v1212
  %v1397 = vpack.c.b16 %v1215, %v1214
  %v1398 = vpack.c.b16 %v1217, %v1216
  %v1399 = vpack.c.b16 %v1219, %v1218
  %v1400 = vpack.c.b16 %v1221, %v1220
  %v1401 = vpack.c.b16 %v1223, %v1222
  %v1402 = vpack.c.b16 %v1225, %v1224
  %v1403 = vpack.c.b16 %v1227, %v1226
  %v1404 = vpack.c.b16 %v1229, %v1228
  %v1405 = vpack.c.b16 %v1231, %v1230
  %v1406 = vpack.c.b16 %v1233, %v1232
  %v1407 = vpack.c.b16 %v1235, %v1234
  %v1408 = vpack.c.b16 %v1237, %v1236
  %v1409 = vpack.c.b16 %v1239, %v1238
  %v1410 = vpack.c.b16 %v1241, %v1240
  %v1411 = vpack.c.b16 %v1243, %v1242
  %v1412 = vpack.c.b16 %v1245, %v1244
  %v1413 = vpack.c.b16 %v1247, %v1246
  %v1414 = vpack.c.b16 %v1249, %v1248
  %v1415 = vpack.c.b16 %v1251, %v1250
  %v1416 = vpack.c.b16 %v1253, %v1252
  %v1417 = vpack.c.b16 %v1255, %v1254
  %v1418 = vpack.c.b16 %v1257, %v1256
  %v1419 = vpack.c.b16 %v1259, %v1258
  %v1420 = vpack.c.b16 %v1261, %v1260
  %v1421 = vpack.c.b16 %v1263, %v1262
  %v1422 = vpack.c.b16 %v1265, %v1264
  %v1423 = vpack.c.b16 %v1267, %v1266
  %v1424 = vpack.c.b16 %v1269, %v1268
  %v1425 = vpack.c.b16 %v1271, %v1270
  %v1426 = vpack.c.b16 %v1273, %v1272
  %v1427 = vpack.c.b16 %v1275, %v1274
  %v1428 = vpack.c.b16 %v1277, %v1276
  %v1429 = vpack.c.b16 %v1279, %v1278
  %v1430 = vpack.c.b16 %v1281, %v1280
  %v1431 = vpack.c.b16 %v1283, %v1282
  %v1432 = vpack.c.b16 %v1285, %v1284
  %v1433 = vpack.c.b16 %v1287, %v1286
  %v1434 = vpack.c.b16 %v1289, %v1288
  %v1435 = vpack.c.b16 %v1291, %v1290
  %v1436 = vpack.c.b16 %v1293, %v1292
  %v1437 = vpack.c.b16 %v1295, %v1294
  %v1438 = vpack.c.b16 %v1297, %v1296
  %v1439 = vpack.c.b16 %v1299, %v1298
  %v1440 = vpack.c.b16 %v1301, %v1300
  %v1441 = vpack.c.b16 %v1303, %v1302
  %v1442 = vpack.c.b16 %v1305, %v1304
  %v1443 = vpack.c.b16 %v1307, %v1306
  %v1444 = vpack.c.b16 %v1309, %v1308
  %v1445 = vpack.c.b16 %v1311, %v1310
  %v1446 = vpack.c.b16 %v1313, %v1312
  %v1447 = vpack.c.b16 %v1315, %v1314
  %v1448 = vpack.c.b16 %v1317, %v1316
  %v1449 = vpack.c.b16 %v1319, %v1318
  %v1450 = vpack.c.b16 %v1321, %v1320
  %v1451 = vpack.c.b16 %v1323, %v1322
  %v1452 = vpack.c.b16 %v1325, %v1324
  %v1453 = vpack.c.b16 %v1327, %v1326
  %v1454 = vpack.c.b16 %v1329, %v1328
  %v1455 = vpack.c.b16 %v1331, %v1330
  %v1456 = vpack.c.b16 %v1333, %v1332
  %v1457 = vpack.c.b16 %v1335, %v1334
  %v1458 = vpack.c.b16 %v1337, %v1336
  %v1459 = vpack.c.b16 %v1339, %v1338
  %v1460 = vpack.c.b16 %v1341, %v1340
  %v1461 = vpack.c.b16 %v1343, %v1342
  %v1462 = vpack.c.b16 %v1345, %v1344
  %v1463 = vpack.c.b16 %v1347, %v1346
  %v1464 = vpack.c.b16 %v1349, %v1348
  %v1465 = vpack.c.b16 %v1351, %v1350
  %v1466 = vpack.c.b16 %v1353, %v1352
  %v1467 = vpack.c.b16 %v1355, %v1354
  %1580 = vmatprep.subr.bf16.mxu0 0
  %1581 = vmatpush1.bf16.msra.mxu0 %v1356
  %1582 = vmatprep.subr.bf16.mxu0 0
  %1583 = vmatpush1.bf16.msra.mxu0 %v1357
  %1584 = vmatprep.subr.bf16.mxu0 0
  %1585 = vmatpush1.bf16.msra.mxu0 %v1358
  %1586 = vmatprep.subr.bf16.mxu0 0
  %1587 = vmatpush1.bf16.msra.mxu0 %v1359
  %1588 = vmatprep.subr.bf16.mxu0 0
  %1589 = vmatpush1.bf16.msra.mxu0 %v1360
  %1590 = vmatprep.subr.bf16.mxu0 0
  %1591 = vmatpush1.bf16.msra.mxu0 %v1361
  %1592 = vmatprep.subr.bf16.mxu0 0
  %1593 = vmatpush1.bf16.msra.mxu0 %v1362
  %1594 = vmatprep.subr.bf16.mxu0 0
  %1595 = vmatpush1.bf16.msra.mxu0 %v1363
  %1596 = vmatprep.subr.bf16.mxu0 0
  %1597 = vmatpush1.bf16.msra.mxu0 %v1364
  %1598 = vmatprep.subr.bf16.mxu0 0
  %1599 = vmatpush1.bf16.msra.mxu0 %v1365
  %1600 = vmatprep.subr.bf16.mxu0 0
  %1601 = vmatpush1.bf16.msra.mxu0 %v1366
  %1602 = vmatprep.subr.bf16.mxu0 0
  %1603 = vmatpush1.bf16.msra.mxu0 %v1367
  %1604 = vmatprep.subr.bf16.mxu0 0
  %1605 = vmatpush1.bf16.msra.mxu0 %v1368
  %1606 = vmatprep.subr.bf16.mxu0 0
  %1607 = vmatpush1.bf16.msra.mxu0 %v1369
  %1608 = vmatprep.subr.bf16.mxu0 0
  %1609 = vmatpush1.bf16.msra.mxu0 %v1370
  %1610 = vmatprep.subr.bf16.mxu0 0
  %1611 = vmatpush1.bf16.msra.mxu0 %v1371
  %1612 = vmatprep.mubr.bf16.mxu0 %v685
  %1613 = vmatmul.mubr.bf16.gmra.mrb[0].mxu0 %v684
  %v1614 = vpop.f32.mrb[0].mxu0
  %v1615 = vadd.f32 0.0, %v1614
  %v1616 = vpop.f32.mrb[0].mxu0
  %v1617 = vpop.f32.mrb[0].mxu0
  %v1618 = vadd.f32 0.0, %v1617
  %v1619 = vpop.f32.mrb[0].mxu0
  %1620 = vmatprep.mubr.bf16.mxu0 %v699
  %1621 = vmatmul.mubr.bf16.gmra.mrb[0].mxu0 %v698
  %v1622 = vpop.f32.mrb[0].mxu0
  %v1623 = vadd.f32 0.0, %v1622
  %v1624 = vpop.f32.mrb[0].mxu0
  %v1625 = vpop.f32.mrb[0].mxu0
  %v1626 = vadd.f32 0.0, %v1625
  %v1627 = vpop.f32.mrb[0].mxu0
  %1628 = vmatprep.mubr.bf16.mxu0 %v713
  %1629 = vmatmul.mubr.bf16.gmra.mrb[0].mxu0 %v712
  %v1630 = vpop.f32.mrb[0].mxu0
  %v1631 = vadd.f32 0.0, %v1630
  %v1632 = vpop.f32.mrb[0].mxu0
  %v1633 = vpop.f32.mrb[0].mxu0
  %v1634 = vadd.f32 0.0, %v1633
  %v1635 = vpop.f32.mrb[0].mxu0
  %1636 = vmatprep.mubr.bf16.mxu0 %v727
  %1637 = vmatmul.mubr.bf16.gmra.mrb[0].mxu0 %v726
  %v1638 = vpop.f32.mrb[0].mxu0
  %v1639 = vadd.f32 0.0, %v1638
  %v1640 = vpop.f32.mrb[0].mxu0
  %v1641 = vpop.f32.mrb[0].mxu0
  %v1642 = vadd.f32 0.0, %v1641
  %v1643 = vpop.f32.mrb[0].mxu0
  %1644 = vmatprep.mubr.bf16.mxu0 %v741
  %1645 = vmatmul.mubr.bf16.gmra.mrb[0].mxu0 %v740
  %v1646 = vpop.f32.mrb[0].mxu0
  %v1647 = vadd.f32 0.0, %v1646
  %v1648 = vpop.f32.mrb[0].mxu0
  %v1649 = vpop.f32.mrb[0].mxu0
  %v1650 = vadd.f32 0.0, %v1649
  %v1651 = vpop.f32.mrb[0].mxu0
  %1652 = vmatprep.mubr.bf16.mxu0 %v755
  %1653 = vmatmul.mubr.bf16.gmra.mrb[0].mxu0 %v754
  %v1654 = vpop.f32.mrb[0].mxu0
  %v1655 = vadd.f32 0.0, %v1654
  %v1656 = vpop.f32.mrb[0].mxu0
  %v1657 = vpop.f32.mrb[0].mxu0
  %v1658 = vadd.f32 0.0, %v1657
  %v1659 = vpop.f32.mrb[0].mxu0
  %1660 = vmatprep.mubr.bf16.mxu0 %v769
  %1661 = vmatmul.mubr.bf16.gmra.mrb[0].mxu0 %v768
  %v1662 = vpop.f32.mrb[0].mxu0
  %v1663 = vadd.f32 0.0, %v1662
  %v1664 = vpop.f32.mrb[0].mxu0
  %v1665 = vpop.f32.mrb[0].mxu0
  %v1666 = vadd.f32 0.0, %v1665
  %v1667 = vpop.f32.mrb[0].mxu0
  %1668 = vmatprep.mubr.bf16.mxu0 %v783
  %1669 = vmatmul.mubr.bf16.gmra.mrb[0].mxu0 %v782
  %v1670 = vpop.f32.mrb[0].mxu0
  %v1671 = vadd.f32 0.0, %v1670
  %v1672 = vpop.f32.mrb[0].mxu0
  %v1673 = vpop.f32.mrb[0].mxu0
  %v1674 = vadd.f32 0.0, %v1673
  %v1675 = vpop.f32.mrb[0].mxu0
  %1676 = vdwg.mxu0
  %1677 = vmatprep.subr.bf16.mxu0 0
  %1678 = vmatpush1.bf16.msra.mxu0 %v1372
  %1679 = vmatprep.subr.bf16.mxu0 0
  %1680 = vmatpush1.bf16.msra.mxu0 %v1373
  %1681 = vmatprep.subr.bf16.mxu0 0
  %1682 = vmatpush1.bf16.msra.mxu0 %v1374
  %1683 = vmatprep.subr.bf16.mxu0 0
  %1684 = vmatpush1.bf16.msra.mxu0 %v1375
  %1685 = vmatprep.subr.bf16.mxu0 0
  %1686 = vmatpush1.bf16.msra.mxu0 %v1376
  %1687 = vmatprep.subr.bf16.mxu0 0
  %1688 = vmatpush1.bf16.msra.mxu0 %v1377
  %1689 = vmatprep.subr.bf16.mxu0 0
  %1690 = vmatpush1.bf16.msra.mxu0 %v1378
  %1691 = vmatprep.subr.bf16.mxu0 0
  %1692 = vmatpush1.bf16.msra.mxu0 %v1379
  %1693 = vmatprep.subr.bf16.mxu0 0
  %1694 = vmatpush1.bf16.msra.mxu0 %v1380
  %1695 = vmatprep.subr.bf16.mxu0 0
  %1696 = vmatpush1.bf16.msra.mxu0 %v1381
  %1697 = vmatprep.subr.bf16.mxu0 0
  %1698 = vmatpush1.bf16.msra.mxu0 %v1382
  %1699 = vmatprep.subr.bf16.mxu0 0
  %1700 = vmatpush1.bf16.msra.mxu0 %v1383
  %1701 = vmatprep.subr.bf16.mxu0 0
  %1702 = vmatpush1.bf16.msra.mxu0 %v1384
  %1703 = vmatprep.subr.bf16.mxu0 0
  %1704 = vmatpush1.bf16.msra.mxu0 %v1385
  %1705 = vmatprep.subr.bf16.mxu0 0
  %1706 = vmatpush1.bf16.msra.mxu0 %v1386
  %1707 = vmatprep.subr.bf16.mxu0 0
  %1708 = vmatpush1.bf16.msra.mxu0 %v1387
  %1709 = vmatprep.mubr.bf16.mxu0 %v687
  %1710 = vmatmul.mubr.bf16.gmra.mrb[0].mxu0 %v686
  %v1711 = vpop.f32.mrb[0].mxu0
  %v1712 = vadd.f32 %v1615, %v1711
  %v1713 = vpop.f32.mrb[0].mxu0
  %v1714 = vpop.f32.mrb[0].mxu0
  %v1715 = vadd.f32 %v1618, %v1714
  %v1716 = vpop.f32.mrb[0].mxu0
  %1717 = vmatprep.mubr.bf16.mxu0 %v701
  %1718 = vmatmul.mubr.bf16.gmra.mrb[0].mxu0 %v700
  %v1719 = vpop.f32.mrb[0].mxu0
  %v1720 = vadd.f32 %v1623, %v1719
  %v1721 = vpop.f32.mrb[0].mxu0
  %v1722 = vpop.f32.mrb[0].mxu0
  %v1723 = vadd.f32 %v1626, %v1722
  %v1724 = vpop.f32.mrb[0].mxu0
  %1725 = vmatprep.mubr.bf16.mxu0 %v715
  %1726 = vmatmul.mubr.bf16.gmra.mrb[0].mxu0 %v714
  %v1727 = vpop.f32.mrb[0].mxu0
  %v1728 = vadd.f32 %v1631, %v1727
  %v1729 = vpop.f32.mrb[0].mxu0
  %v1730 = vpop.f32.mrb[0].mxu0
  %v1731 = vadd.f32 %v1634, %v1730
  %v1732 = vpop.f32.mrb[0].mxu0
  %1733 = vmatprep.mubr.bf16.mxu0 %v729
  %1734 = vmatmul.mubr.bf16.gmra.mrb[0].mxu0 %v728
  %v1735 = vpop.f32.mrb[0].mxu0
  %v1736 = vadd.f32 %v1639, %v1735
  %v1737 = vpop.f32.mrb[0].mxu0
  %v1738 = vpop.f32.mrb[0].mxu0
  %v1739 = vadd.f32 %v1642, %v1738
  %v1740 = vpop.f32.mrb[0].mxu0
  %1741 = vmatprep.mubr.bf16.mxu0 %v743
  %1742 = vmatmul.mubr.bf16.gmra.mrb[0].mxu0 %v742
  %v1743 = vpop.f32.mrb[0].mxu0
  %v1744 = vadd.f32 %v1647, %v1743
  %v1745 = vpop.f32.mrb[0].mxu0
  %v1746 = vpop.f32.mrb[0].mxu0
  %v1747 = vadd.f32 %v1650, %v1746
  %v1748 = vpop.f32.mrb[0].mxu0
  %1749 = vmatprep.mubr.bf16.mxu0 %v757
  %1750 = vmatmul.mubr.bf16.gmra.mrb[0].mxu0 %v756
  %v1751 = vpop.f32.mrb[0].mxu0
  %v1752 = vadd.f32 %v1655, %v1751
  %v1753 = vpop.f32.mrb[0].mxu0
  %v1754 = vpop.f32.mrb[0].mxu0
  %v1755 = vadd.f32 %v1658, %v1754
  %v1756 = vpop.f32.mrb[0].mxu0
  %1757 = vmatprep.mubr.bf16.mxu0 %v771
  %1758 = vmatmul.mubr.bf16.gmra.mrb[0].mxu0 %v770
  %v1759 = vpop.f32.mrb[0].mxu0
  %v1760 = vadd.f32 %v1663, %v1759
  %v1761 = vpop.f32.mrb[0].mxu0
  %v1762 = vpop.f32.mrb[0].mxu0
  %v1763 = vadd.f32 %v1666, %v1762
  %v1764 = vpop.f32.mrb[0].mxu0
  %1765 = vmatprep.mubr.bf16.mxu0 %v785
  %1766 = vmatmul.mubr.bf16.gmra.mrb[0].mxu0 %v784
  %v1767 = vpop.f32.mrb[0].mxu0
  %v1768 = vadd.f32 %v1671, %v1767
  %v1769 = vpop.f32.mrb[0].mxu0
  %v1770 = vpop.f32.mrb[0].mxu0
  %v1771 = vadd.f32 %v1674, %v1770
  %v1772 = vpop.f32.mrb[0].mxu0
  %1773 = vdwg.mxu0
  %1774 = vmatprep.subr.bf16.mxu0 0
  %1775 = vmatpush1.bf16.msra.mxu0 %v1388
  %1776 = vmatprep.subr.bf16.mxu0 0
  %1777 = vmatpush1.bf16.msra.mxu0 %v1389
  %1778 = vmatprep.subr.bf16.mxu0 0
  %1779 = vmatpush1.bf16.msra.mxu0 %v1390
  %1780 = vmatprep.subr.bf16.mxu0 0
  %1781 = vmatpush1.bf16.msra.mxu0 %v1391
  %1782 = vmatprep.subr.bf16.mxu0 0
  %1783 = vmatpush1.bf16.msra.mxu0 %v1392
  %1784 = vmatprep.subr.bf16.mxu0 0
  %1785 = vmatpush1.bf16.msra.mxu0 %v1393
  %1786 = vmatprep.subr.bf16.mxu0 0
  %1787 = vmatpush1.bf16.msra.mxu0 %v1394
  %1788 = vmatprep.subr.bf16.mxu0 0
  %1789 = vmatpush1.bf16.msra.mxu0 %v1395
  %1790 = vmatprep.subr.bf16.mxu0 0
  %1791 = vmatpush1.bf16.msra.mxu0 %v1396
  %1792 = vmatprep.subr.bf16.mxu0 0
  %1793 = vmatpush1.bf16.msra.mxu0 %v1397
  %1794 = vmatprep.subr.bf16.mxu0 0
  %1795 = vmatpush1.bf16.msra.mxu0 %v1398
  %1796 = vmatprep.subr.bf16.mxu0 0
  %1797 = vmatpush1.bf16.msra.mxu0 %v1399
  %1798 = vmatprep.subr.bf16.mxu0 0
  %1799 = vmatpush1.bf16.msra.mxu0 %v1400
  %1800 = vmatprep.subr.bf16.mxu0 0
  %1801 = vmatpush1.bf16.msra.mxu0 %v1401
  %1802 = vmatprep.subr.bf16.mxu0 0
  %1803 = vmatpush1.bf16.msra.mxu0 %v1402
  %1804 = vmatprep.subr.bf16.mxu0 0
  %1805 = vmatpush1.bf16.msra.mxu0 %v1403
  %1806 = vmatprep.mubr.bf16.mxu0 %v689
  %1807 = vmatmul.mubr.bf16.gmra.mrb[0].mxu0 %v688
  %v1808 = vpop.f32.mrb[0].mxu0
  %v1809 = vadd.f32 %v1712, %v1808
  %v1810 = vpop.f32.mrb[0].mxu0
  %v1811 = vpop.f32.mrb[0].mxu0
  %v1812 = vadd.f32 %v1715, %v1811
  %v1813 = vpop.f32.mrb[0].mxu0
  %1814 = vmatprep.mubr.bf16.mxu0 %v703
  %1815 = vmatmul.mubr.bf16.gmra.mrb[0].mxu0 %v702
  %v1816 = vpop.f32.mrb[0].mxu0
  %v1817 = vadd.f32 %v1720, %v1816
  %v1818 = vpop.f32.mrb[0].mxu0
  %v1819 = vpop.f32.mrb[0].mxu0
  %v1820 = vadd.f32 %v1723, %v1819
  %v1821 = vpop.f32.mrb[0].mxu0
  %1822 = vmatprep.mubr.bf16.mxu0 %v717
  %1823 = vmatmul.mubr.bf16.gmra.mrb[0].mxu0 %v716
  %v1824 = vpop.f32.mrb[0].mxu0
  %v1825 = vadd.f32 %v1728, %v1824
  %v1826 = vpop.f32.mrb[0].mxu0
  %v1827 = vpop.f32.mrb[0].mxu0
  %v1828 = vadd.f32 %v1731, %v1827
  %v1829 = vpop.f32.mrb[0].mxu0
  %1830 = vmatprep.mubr.bf16.mxu0 %v731
  %1831 = vmatmul.mubr.bf16.gmra.mrb[0].mxu0 %v730
  %v1832 = vpop.f32.mrb[0].mxu0
  %v1833 = vadd.f32 %v1736, %v1832
  %v1834 = vpop.f32.mrb[0].mxu0
  %v1835 = vpop.f32.mrb[0].mxu0
  %v1836 = vadd.f32 %v1739, %v1835
  %v1837 = vpop.f32.mrb[0].mxu0
  %1838 = vmatprep.mubr.bf16.mxu0 %v745
  %1839 = vmatmul.mubr.bf16.gmra.mrb[0].mxu0 %v744
  %v1840 = vpop.f32.mrb[0].mxu0
  %v1841 = vadd.f32 %v1744, %v1840
  %v1842 = vpop.f32.mrb[0].mxu0
  %v1843 = vpop.f32.mrb[0].mxu0
  %v1844 = vadd.f32 %v1747, %v1843
  %v1845 = vpop.f32.mrb[0].mxu0
  %1846 = vmatprep.mubr.bf16.mxu0 %v759
  %1847 = vmatmul.mubr.bf16.gmra.mrb[0].mxu0 %v758
  %v1848 = vpop.f32.mrb[0].mxu0
  %v1849 = vadd.f32 %v1752, %v1848
  %v1850 = vpop.f32.mrb[0].mxu0
  %v1851 = vpop.f32.mrb[0].mxu0
  %v1852 = vadd.f32 %v1755, %v1851
  %v1853 = vpop.f32.mrb[0].mxu0
  %1854 = vmatprep.mubr.bf16.mxu0 %v773
  %1855 = vmatmul.mubr.bf16.gmra.mrb[0].mxu0 %v772
  %v1856 = vpop.f32.mrb[0].mxu0
  %v1857 = vadd.f32 %v1760, %v1856
  %v1858 = vpop.f32.mrb[0].mxu0
  %v1859 = vpop.f32.mrb[0].mxu0
  %v1860 = vadd.f32 %v1763, %v1859
  %v1861 = vpop.f32.mrb[0].mxu0
  %1862 = vmatprep.mubr.bf16.mxu0 %v787
  %1863 = vmatmul.mubr.bf16.gmra.mrb[0].mxu0 %v786
  %v1864 = vpop.f32.mrb[0].mxu0
  %v1865 = vadd.f32 %v1768, %v1864
  %v1866 = vpop.f32.mrb[0].mxu0
  %v1867 = vpop.f32.mrb[0].mxu0
  %v1868 = vadd.f32 %v1771, %v1867
  %v1869 = vpop.f32.mrb[0].mxu0
  %1870 = vdwg.mxu0
  %1871 = vmatprep.subr.bf16.mxu0 0
  %1872 = vmatpush1.bf16.msra.mxu0 %v1404
  %1873 = vmatprep.subr.bf16.mxu0 0
  %1874 = vmatpush1.bf16.msra.mxu0 %v1405
  %1875 = vmatprep.subr.bf16.mxu0 0
  %1876 = vmatpush1.bf16.msra.mxu0 %v1406
  %1877 = vmatprep.subr.bf16.mxu0 0
  %1878 = vmatpush1.bf16.msra.mxu0 %v1407
  %1879 = vmatprep.subr.bf16.mxu0 0
  %1880 = vmatpush1.bf16.msra.mxu0 %v1408
  %1881 = vmatprep.subr.bf16.mxu0 0
  %1882 = vmatpush1.bf16.msra.mxu0 %v1409
  %1883 = vmatprep.subr.bf16.mxu0 0
  %1884 = vmatpush1.bf16.msra.mxu0 %v1410
  %1885 = vmatprep.subr.bf16.mxu0 0
  %1886 = vmatpush1.bf16.msra.mxu0 %v1411
  %1887 = vmatprep.subr.bf16.mxu0 0
  %1888 = vmatpush1.bf16.msra.mxu0 %v1412
  %1889 = vmatprep.subr.bf16.mxu0 0
  %1890 = vmatpush1.bf16.msra.mxu0 %v1413
  %1891 = vmatprep.subr.bf16.mxu0 0
  %1892 = vmatpush1.bf16.msra.mxu0 %v1414
  %1893 = vmatprep.subr.bf16.mxu0 0
  %1894 = vmatpush1.bf16.msra.mxu0 %v1415
  %1895 = vmatprep.subr.bf16.mxu0 0
  %1896 = vmatpush1.bf16.msra.mxu0 %v1416
  %1897 = vmatprep.subr.bf16.mxu0 0
  %1898 = vmatpush1.bf16.msra.mxu0 %v1417
  %1899 = vmatprep.subr.bf16.mxu0 0
  %1900 = vmatpush1.bf16.msra.mxu0 %v1418
  %1901 = vmatprep.subr.bf16.mxu0 0
  %1902 = vmatpush1.bf16.msra.mxu0 %v1419
  %1903 = vmatprep.mubr.bf16.mxu0 %v691
  %1904 = vmatmul.mubr.bf16.gmra.mrb[0].mxu0 %v690
  %v1905 = vpop.f32.mrb[0].mxu0
  %v1906 = vadd.f32 %v1809, %v1905
  %v1907 = vpop.f32.mrb[0].mxu0
  %v1908 = vpop.f32.mrb[0].mxu0
  %v1909 = vadd.f32 %v1812, %v1908
  %v1910 = vpop.f32.mrb[0].mxu0
  %1911 = vmatprep.mubr.bf16.mxu0 %v705
  %1912 = vmatmul.mubr.bf16.gmra.mrb[0].mxu0 %v704
  %v1913 = vpop.f32.mrb[0].mxu0
  %v1914 = vadd.f32 %v1817, %v1913
  %v1915 = vpop.f32.mrb[0].mxu0
  %v1916 = vpop.f32.mrb[0].mxu0
  %v1917 = vadd.f32 %v1820, %v1916
  %v1918 = vpop.f32.mrb[0].mxu0
  %1919 = vmatprep.mubr.bf16.mxu0 %v719
  %1920 = vmatmul.mubr.bf16.gmra.mrb[0].mxu0 %v718
  %v1921 = vpop.f32.mrb[0].mxu0
  %v1922 = vadd.f32 %v1825, %v1921
  %v1923 = vpop.f32.mrb[0].mxu0
  %v1924 = vpop.f32.mrb[0].mxu0
  %v1925 = vadd.f32 %v1828, %v1924
  %v1926 = vpop.f32.mrb[0].mxu0
  %1927 = vmatprep.mubr.bf16.mxu0 %v733
  %1928 = vmatmul.mubr.bf16.gmra.mrb[0].mxu0 %v732
  %v1929 = vpop.f32.mrb[0].mxu0
  %v1930 = vadd.f32 %v1833, %v1929
  %v1931 = vpop.f32.mrb[0].mxu0
  %v1932 = vpop.f32.mrb[0].mxu0
  %v1933 = vadd.f32 %v1836, %v1932
  %v1934 = vpop.f32.mrb[0].mxu0
  %1935 = vmatprep.mubr.bf16.mxu0 %v747
  %1936 = vmatmul.mubr.bf16.gmra.mrb[0].mxu0 %v746
  %v1937 = vpop.f32.mrb[0].mxu0
  %v1938 = vadd.f32 %v1841, %v1937
  %v1939 = vpop.f32.mrb[0].mxu0
  %v1940 = vpop.f32.mrb[0].mxu0
  %v1941 = vadd.f32 %v1844, %v1940
  %v1942 = vpop.f32.mrb[0].mxu0
  %1943 = vmatprep.mubr.bf16.mxu0 %v761
  %1944 = vmatmul.mubr.bf16.gmra.mrb[0].mxu0 %v760
  %v1945 = vpop.f32.mrb[0].mxu0
  %v1946 = vadd.f32 %v1849, %v1945
  %v1947 = vpop.f32.mrb[0].mxu0
  %v1948 = vpop.f32.mrb[0].mxu0
  %v1949 = vadd.f32 %v1852, %v1948
  %v1950 = vpop.f32.mrb[0].mxu0
  %1951 = vmatprep.mubr.bf16.mxu0 %v775
  %1952 = vmatmul.mubr.bf16.gmra.mrb[0].mxu0 %v774
  %v1953 = vpop.f32.mrb[0].mxu0
  %v1954 = vadd.f32 %v1857, %v1953
  %v1955 = vpop.f32.mrb[0].mxu0
  %v1956 = vpop.f32.mrb[0].mxu0
  %v1957 = vadd.f32 %v1860, %v1956
  %v1958 = vpop.f32.mrb[0].mxu0
  %1959 = vmatprep.mubr.bf16.mxu0 %v789
  %1960 = vmatmul.mubr.bf16.gmra.mrb[0].mxu0 %v788
  %v1961 = vpop.f32.mrb[0].mxu0
  %v1962 = vadd.f32 %v1865, %v1961
  %v1963 = vpop.f32.mrb[0].mxu0
  %v1964 = vpop.f32.mrb[0].mxu0
  %v1965 = vadd.f32 %v1868, %v1964
  %v1966 = vpop.f32.mrb[0].mxu0
  %1967 = vdwg.mxu0
  %1968 = vmatprep.subr.bf16.mxu0 0
  %1969 = vmatpush1.bf16.msra.mxu0 %v1420
  %1970 = vmatprep.subr.bf16.mxu0 0
  %1971 = vmatpush1.bf16.msra.mxu0 %v1421
  %1972 = vmatprep.subr.bf16.mxu0 0
  %1973 = vmatpush1.bf16.msra.mxu0 %v1422
  %1974 = vmatprep.subr.bf16.mxu0 0
  %1975 = vmatpush1.bf16.msra.mxu0 %v1423
  %1976 = vmatprep.subr.bf16.mxu0 0
  %1977 = vmatpush1.bf16.msra.mxu0 %v1424
  %1978 = vmatprep.subr.bf16.mxu0 0
  %1979 = vmatpush1.bf16.msra.mxu0 %v1425
  %1980 = vmatprep.subr.bf16.mxu0 0
  %1981 = vmatpush1.bf16.msra.mxu0 %v1426
  %1982 = vmatprep.subr.bf16.mxu0 0
  %1983 = vmatpush1.bf16.msra.mxu0 %v1427
  %1984 = vmatprep.subr.bf16.mxu0 0
  %1985 = vmatpush1.bf16.msra.mxu0 %v1428
  %1986 = vmatprep.subr.bf16.mxu0 0
  %1987 = vmatpush1.bf16.msra.mxu0 %v1429
  %1988 = vmatprep.subr.bf16.mxu0 0
  %1989 = vmatpush1.bf16.msra.mxu0 %v1430
  %1990 = vmatprep.subr.bf16.mxu0 0
  %1991 = vmatpush1.bf16.msra.mxu0 %v1431
  %1992 = vmatprep.subr.bf16.mxu0 0
  %1993 = vmatpush1.bf16.msra.mxu0 %v1432
  %1994 = vmatprep.subr.bf16.mxu0 0
  %1995 = vmatpush1.bf16.msra.mxu0 %v1433
  %1996 = vmatprep.subr.bf16.mxu0 0
  %1997 = vmatpush1.bf16.msra.mxu0 %v1434
  %1998 = vmatprep.subr.bf16.mxu0 0
  %1999 = vmatpush1.bf16.msra.mxu0 %v1435
  %2000 = vmatprep.mubr.bf16.mxu0 %v693
  %2001 = vmatmul.mubr.bf16.gmra.mrb[0].mxu0 %v692
  %v2002 = vpop.f32.mrb[0].mxu0
  %v2003 = vadd.f32 %v1906, %v2002
  %v2004 = vpop.f32.mrb[0].mxu0
  %v2005 = vpop.f32.mrb[0].mxu0
  %v2006 = vadd.f32 %v1909, %v2005
  %v2007 = vpop.f32.mrb[0].mxu0
  %2008 = vmatprep.mubr.bf16.mxu0 %v707
  %2009 = vmatmul.mubr.bf16.gmra.mrb[0].mxu0 %v706
  %v2010 = vpop.f32.mrb[0].mxu0
  %v2011 = vadd.f32 %v1914, %v2010
  %v2012 = vpop.f32.mrb[0].mxu0
  %v2013 = vpop.f32.mrb[0].mxu0
  %v2014 = vadd.f32 %v1917, %v2013
  %v2015 = vpop.f32.mrb[0].mxu0
  %2016 = vmatprep.mubr.bf16.mxu0 %v721
  %2017 = vmatmul.mubr.bf16.gmra.mrb[0].mxu0 %v720
  %v2018 = vpop.f32.mrb[0].mxu0
  %v2019 = vadd.f32 %v1922, %v2018
  %v2020 = vpop.f32.mrb[0].mxu0
  %v2021 = vpop.f32.mrb[0].mxu0
  %v2022 = vadd.f32 %v1925, %v2021
  %v2023 = vpop.f32.mrb[0].mxu0
  %2024 = vmatprep.mubr.bf16.mxu0 %v735
  %2025 = vmatmul.mubr.bf16.gmra.mrb[0].mxu0 %v734
  %v2026 = vpop.f32.mrb[0].mxu0
  %v2027 = vadd.f32 %v1930, %v2026
  %v2028 = vpop.f32.mrb[0].mxu0
  %v2029 = vpop.f32.mrb[0].mxu0
  %v2030 = vadd.f32 %v1933, %v2029
  %v2031 = vpop.f32.mrb[0].mxu0
  %2032 = vmatprep.mubr.bf16.mxu0 %v749
  %2033 = vmatmul.mubr.bf16.gmra.mrb[0].mxu0 %v748
  %v2034 = vpop.f32.mrb[0].mxu0
  %v2035 = vadd.f32 %v1938, %v2034
  %v2036 = vpop.f32.mrb[0].mxu0
  %v2037 = vpop.f32.mrb[0].mxu0
  %v2038 = vadd.f32 %v1941, %v2037
  %v2039 = vpop.f32.mrb[0].mxu0
  %2040 = vmatprep.mubr.bf16.mxu0 %v763
  %2041 = vmatmul.mubr.bf16.gmra.mrb[0].mxu0 %v762
  %v2042 = vpop.f32.mrb[0].mxu0
  %v2043 = vadd.f32 %v1946, %v2042
  %v2044 = vpop.f32.mrb[0].mxu0
  %v2045 = vpop.f32.mrb[0].mxu0
  %v2046 = vadd.f32 %v1949, %v2045
  %v2047 = vpop.f32.mrb[0].mxu0
  %2048 = vmatprep.mubr.bf16.mxu0 %v777
  %2049 = vmatmul.mubr.bf16.gmra.mrb[0].mxu0 %v776
  %v2050 = vpop.f32.mrb[0].mxu0
  %v2051 = vadd.f32 %v1954, %v2050
  %v2052 = vpop.f32.mrb[0].mxu0
  %v2053 = vpop.f32.mrb[0].mxu0
  %v2054 = vadd.f32 %v1957, %v2053
  %v2055 = vpop.f32.mrb[0].mxu0
  %2056 = vmatprep.mubr.bf16.mxu0 %v791
  %2057 = vmatmul.mubr.bf16.gmra.mrb[0].mxu0 %v790
  %v2058 = vpop.f32.mrb[0].mxu0
  %v2059 = vadd.f32 %v1962, %v2058
  %v2060 = vpop.f32.mrb[0].mxu0
  %v2061 = vpop.f32.mrb[0].mxu0
  %v2062 = vadd.f32 %v1965, %v2061
  %v2063 = vpop.f32.mrb[0].mxu0
  %2064 = vdwg.mxu0
  %2065 = vmatprep.subr.bf16.mxu0 0
  %2066 = vmatpush1.bf16.msra.mxu0 %v1436
  %2067 = vmatprep.subr.bf16.mxu0 0
  %2068 = vmatpush1.bf16.msra.mxu0 %v1437
  %2069 = vmatprep.subr.bf16.mxu0 0
  %2070 = vmatpush1.bf16.msra.mxu0 %v1438
  %2071 = vmatprep.subr.bf16.mxu0 0
  %2072 = vmatpush1.bf16.msra.mxu0 %v1439
  %2073 = vmatprep.subr.bf16.mxu0 0
  %2074 = vmatpush1.bf16.msra.mxu0 %v1440
  %2075 = vmatprep.subr.bf16.mxu0 0
  %2076 = vmatpush1.bf16.msra.mxu0 %v1441
  %2077 = vmatprep.subr.bf16.mxu0 0
  %2078 = vmatpush1.bf16.msra.mxu0 %v1442
  %2079 = vmatprep.subr.bf16.mxu0 0
  %2080 = vmatpush1.bf16.msra.mxu0 %v1443
  %2081 = vmatprep.subr.bf16.mxu0 0
  %2082 = vmatpush1.bf16.msra.mxu0 %v1444
  %2083 = vmatprep.subr.bf16.mxu0 0
  %2084 = vmatpush1.bf16.msra.mxu0 %v1445
  %2085 = vmatprep.subr.bf16.mxu0 0
  %2086 = vmatpush1.bf16.msra.mxu0 %v1446
  %2087 = vmatprep.subr.bf16.mxu0 0
  %2088 = vmatpush1.bf16.msra.mxu0 %v1447
  %2089 = vmatprep.subr.bf16.mxu0 0
  %2090 = vmatpush1.bf16.msra.mxu0 %v1448
  %2091 = vmatprep.subr.bf16.mxu0 0
  %2092 = vmatpush1.bf16.msra.mxu0 %v1449
  %2093 = vmatprep.subr.bf16.mxu0 0
  %2094 = vmatpush1.bf16.msra.mxu0 %v1450
  %2095 = vmatprep.subr.bf16.mxu0 0
  %2096 = vmatpush1.bf16.msra.mxu0 %v1451
  %2097 = vmatprep.mubr.bf16.mxu0 %v695
  %2098 = vmatmul.mubr.bf16.gmra.mrb[0].mxu0 %v694
  %v2099 = vpop.f32.mrb[0].mxu0
  %v2100 = vadd.f32 %v2003, %v2099
  %v2101 = vpop.f32.mrb[0].mxu0
  %v2102 = vpop.f32.mrb[0].mxu0
  %v2103 = vadd.f32 %v2006, %v2102
  %v2104 = vpop.f32.mrb[0].mxu0
  %2105 = vmatprep.mubr.bf16.mxu0 %v709
  %2106 = vmatmul.mubr.bf16.gmra.mrb[0].mxu0 %v708
  %v2107 = vpop.f32.mrb[0].mxu0
  %v2108 = vadd.f32 %v2011, %v2107
  %v2109 = vpop.f32.mrb[0].mxu0
  %v2110 = vpop.f32.mrb[0].mxu0
  %v2111 = vadd.f32 %v2014, %v2110
  %v2112 = vpop.f32.mrb[0].mxu0
  %2113 = vmatprep.mubr.bf16.mxu0 %v723
  %2114 = vmatmul.mubr.bf16.gmra.mrb[0].mxu0 %v722
  %v2115 = vpop.f32.mrb[0].mxu0
  %v2116 = vadd.f32 %v2019, %v2115
  %v2117 = vpop.f32.mrb[0].mxu0
  %v2118 = vpop.f32.mrb[0].mxu0
  %v2119 = vadd.f32 %v2022, %v2118
  %v2120 = vpop.f32.mrb[0].mxu0
  %2121 = vmatprep.mubr.bf16.mxu0 %v737
  %2122 = vmatmul.mubr.bf16.gmra.mrb[0].mxu0 %v736
  %v2123 = vpop.f32.mrb[0].mxu0
  %v2124 = vadd.f32 %v2027, %v2123
  %v2125 = vpop.f32.mrb[0].mxu0
  %v2126 = vpop.f32.mrb[0].mxu0
  %v2127 = vadd.f32 %v2030, %v2126
  %v2128 = vpop.f32.mrb[0].mxu0
  %2129 = vmatprep.mubr.bf16.mxu0 %v751
  %2130 = vmatmul.mubr.bf16.gmra.mrb[0].mxu0 %v750
  %v2131 = vpop.f32.mrb[0].mxu0
  %v2132 = vadd.f32 %v2035, %v2131
  %v2133 = vpop.f32.mrb[0].mxu0
  %v2134 = vpop.f32.mrb[0].mxu0
  %v2135 = vadd.f32 %v2038, %v2134
  %v2136 = vpop.f32.mrb[0].mxu0
  %2137 = vmatprep.mubr.bf16.mxu0 %v765
  %2138 = vmatmul.mubr.bf16.gmra.mrb[0].mxu0 %v764
  %v2139 = vpop.f32.mrb[0].mxu0
  %v2140 = vadd.f32 %v2043, %v2139
  %v2141 = vpop.f32.mrb[0].mxu0
  %v2142 = vpop.f32.mrb[0].mxu0
  %v2143 = vadd.f32 %v2046, %v2142
  %v2144 = vpop.f32.mrb[0].mxu0
  %2145 = vmatprep.mubr.bf16.mxu0 %v779
  %2146 = vmatmul.mubr.bf16.gmra.mrb[0].mxu0 %v778
  %v2147 = vpop.f32.mrb[0].mxu0
  %v2148 = vadd.f32 %v2051, %v2147
  %v2149 = vpop.f32.mrb[0].mxu0
  %v2150 = vpop.f32.mrb[0].mxu0
  %v2151 = vadd.f32 %v2054, %v2150
  %v2152 = vpop.f32.mrb[0].mxu0
  %2153 = vmatprep.mubr.bf16.mxu0 %v793
  %2154 = vmatmul.mubr.bf16.gmra.mrb[0].mxu0 %v792
  %v2155 = vpop.f32.mrb[0].mxu0
  %v2156 = vadd.f32 %v2059, %v2155
  %v2157 = vpop.f32.mrb[0].mxu0
  %v2158 = vpop.f32.mrb[0].mxu0
  %v2159 = vadd.f32 %v2062, %v2158
  %v2160 = vpop.f32.mrb[0].mxu0
  %2161 = vdwg.mxu0
  %2162 = vmatprep.subr.bf16.mxu0 0
  %2163 = vmatpush1.bf16.msra.mxu0 %v1452
  %2164 = vmatprep.subr.bf16.mxu0 0
  %2165 = vmatpush1.bf16.msra.mxu0 %v1453
  %2166 = vmatprep.subr.bf16.mxu0 0
  %2167 = vmatpush1.bf16.msra.mxu0 %v1454
  %2168 = vmatprep.subr.bf16.mxu0 0
  %2169 = vmatpush1.bf16.msra.mxu0 %v1455
  %2170 = vmatprep.subr.bf16.mxu0 0
  %2171 = vmatpush1.bf16.msra.mxu0 %v1456
  %2172 = vmatprep.subr.bf16.mxu0 0
  %2173 = vmatpush1.bf16.msra.mxu0 %v1457
  %2174 = vmatprep.subr.bf16.mxu0 0
  %2175 = vmatpush1.bf16.msra.mxu0 %v1458
  %2176 = vmatprep.subr.bf16.mxu0 0
  %2177 = vmatpush1.bf16.msra.mxu0 %v1459
  %2178 = vmatprep.subr.bf16.mxu0 0
  %2179 = vmatpush1.bf16.msra.mxu0 %v1460
  %2180 = vmatprep.subr.bf16.mxu0 0
  %2181 = vmatpush1.bf16.msra.mxu0 %v1461
  %2182 = vmatprep.subr.bf16.mxu0 0
  %2183 = vmatpush1.bf16.msra.mxu0 %v1462
  %2184 = vmatprep.subr.bf16.mxu0 0
  %2185 = vmatpush1.bf16.msra.mxu0 %v1463
  %2186 = vmatprep.subr.bf16.mxu0 0
  %2187 = vmatpush1.bf16.msra.mxu0 %v1464
  %2188 = vmatprep.subr.bf16.mxu0 0
  %2189 = vmatpush1.bf16.msra.mxu0 %v1465
  %2190 = vmatprep.subr.bf16.mxu0 0
  %2191 = vmatpush1.bf16.msra.mxu0 %v1466
  %2192 = vmatprep.subr.bf16.mxu0 0
  %2193 = vmatpush1.bf16.msra.mxu0 %v1467
  %2194 = vmatprep.mubr.bf16.mxu0 %v697
  %2195 = vmatmul.mubr.bf16.gmra.mrb[0].mxu0 %v696
  %v2196 = vpop.f32.mrb[0].mxu0
  %v2197 = vadd.f32 %v2100, %v2196
  %v2198 = vpop.f32.mrb[0].mxu0
  %v2199 = vpop.f32.mrb[0].mxu0
  %v2200 = vadd.f32 %v2103, %v2199
  %v2201 = vpop.f32.mrb[0].mxu0
  %2202 = vmatprep.mubr.bf16.mxu0 %v711
  %2203 = vmatmul.mubr.bf16.gmra.mrb[0].mxu0 %v710
  %v2204 = vpop.f32.mrb[0].mxu0
  %v2205 = vadd.f32 %v2108, %v2204
  %v2206 = vpop.f32.mrb[0].mxu0
  %v2207 = vpop.f32.mrb[0].mxu0
  %v2208 = vadd.f32 %v2111, %v2207
  %v2209 = vpop.f32.mrb[0].mxu0
  %2210 = vmatprep.mubr.bf16.mxu0 %v725
  %2211 = vmatmul.mubr.bf16.gmra.mrb[0].mxu0 %v724
  %v2212 = vpop.f32.mrb[0].mxu0
  %v2213 = vadd.f32 %v2116, %v2212
  %v2214 = vpop.f32.mrb[0].mxu0
  %v2215 = vpop.f32.mrb[0].mxu0
  %v2216 = vadd.f32 %v2119, %v2215
  %v2217 = vpop.f32.mrb[0].mxu0
  %2218 = vmatprep.mubr.bf16.mxu0 %v739
  %2219 = vmatmul.mubr.bf16.gmra.mrb[0].mxu0 %v738
  %v2220 = vpop.f32.mrb[0].mxu0
  %v2221 = vadd.f32 %v2124, %v2220
  %v2222 = vpop.f32.mrb[0].mxu0
  %v2223 = vpop.f32.mrb[0].mxu0
  %v2224 = vadd.f32 %v2127, %v2223
  %v2225 = vpop.f32.mrb[0].mxu0
  %2226 = vmatprep.mubr.bf16.mxu0 %v753
  %2227 = vmatmul.mubr.bf16.gmra.mrb[0].mxu0 %v752
  %v2228 = vpop.f32.mrb[0].mxu0
  %v2229 = vadd.f32 %v2132, %v2228
  %v2230 = vpop.f32.mrb[0].mxu0
  %v2231 = vpop.f32.mrb[0].mxu0
  %v2232 = vadd.f32 %v2135, %v2231
  %v2233 = vpop.f32.mrb[0].mxu0
  %2234 = vmatprep.mubr.bf16.mxu0 %v767
  %2235 = vmatmul.mubr.bf16.gmra.mrb[0].mxu0 %v766
  %v2236 = vpop.f32.mrb[0].mxu0
  %v2237 = vadd.f32 %v2140, %v2236
  %v2238 = vpop.f32.mrb[0].mxu0
  %v2239 = vpop.f32.mrb[0].mxu0
  %v2240 = vadd.f32 %v2143, %v2239
  %v2241 = vpop.f32.mrb[0].mxu0
  %2242 = vmatprep.mubr.bf16.mxu0 %v781
  %2243 = vmatmul.mubr.bf16.gmra.mrb[0].mxu0 %v780
  %v2244 = vpop.f32.mrb[0].mxu0
  %v2245 = vadd.f32 %v2148, %v2244
  %v2246 = vpop.f32.mrb[0].mxu0
  %v2247 = vpop.f32.mrb[0].mxu0
  %v2248 = vadd.f32 %v2151, %v2247
  %v2249 = vpop.f32.mrb[0].mxu0
  %2250 = vmatprep.mubr.bf16.mxu0 %v795
  %2251 = vmatmul.mubr.bf16.gmra.mrb[0].mxu0 %v794
  %v2252 = vpop.f32.mrb[0].mxu0
  %v2253 = vadd.f32 %v2156, %v2252
  %v2254 = vpop.f32.mrb[0].mxu0
  %v2255 = vpop.f32.mrb[0].mxu0
  %v2256 = vadd.f32 %v2159, %v2255
  %v2257 = vpop.f32.mrb[0].mxu0
  %2258 = vdwg.mxu0
  %vm2259 = vcmask 523264
  %2260 = vst.msk [vmem:[%s2] sm:$0xff] %vm2259, %v2197
  %2261 = vst.msk [vmem:[%s2 + $0x8] sm:$0xff] %vm2259, %v2200
  %2262 = vst.msk [vmem:[%s2 + $0x10] sm:$0xff] %vm2259, %v2205
  %2263 = vst.msk [vmem:[%s2 + $0x18] sm:$0xff] %vm2259, %v2208
  %2264 = vst.msk [vmem:[%s2 + $0x20] sm:$0xff] %vm2259, %v2213
  %2265 = vst.msk [vmem:[%s2 + $0x28] sm:$0xff] %vm2259, %v2216
  %2266 = vst.msk [vmem:[%s2 + $0x30] sm:$0xff] %vm2259, %v2221
  %2267 = vst.msk [vmem:[%s2 + $0x38] sm:$0xff] %vm2259, %v2224
  %2268 = vst.msk [vmem:[%s2 + $0x40] sm:$0xff] %vm2259, %v2229
  %2269 = vst.msk [vmem:[%s2 + $0x48] sm:$0xff] %vm2259, %v2232
  %2270 = vst.msk [vmem:[%s2 + $0x50] sm:$0xff] %vm2259, %v2237
  %2271 = vst.msk [vmem:[%s2 + $0x58] sm:$0xff] %vm2259, %v2240
  %2272 = vst.msk [vmem:[%s2 + $0x60] sm:$0xff] %vm2259, %v2245
  %2273 = vst.msk [vmem:[%s2 + $0x68] sm:$0xff] %vm2259, %v2248
  %2274 = vst.msk [vmem:[%s2 + $0x70] sm:$0xff] %vm2259, %v2253
  %2275 = vst.msk [vmem:[%s2 + $0x78] sm:$0xff] %vm2259, %v2256
  // Predicated region
  $region10: #{mmpeptide_forward.4} parent=0 // pred_check
    _
  $region11: #{mmpeptide_forward.4} parent=0 // pred_check_branch
    %2277 = sbr.rel (0) target = $region13
  $region12: #{mmpeptide_forward.4} parent=0 // pred_region
    _
  $region13: #{mmpeptide_forward.4} parent=0 // pred_fallthru
    _
  // Predicated region
  $region14: #{mmpeptide_forward.4} parent=0 // pred_check
    _
  $region15: #{mmpeptide_forward.4} parent=0 // pred_check_branch
    %2279 = sbr.rel (0) target = $region17
  $region16: #{mmpeptide_forward.4} parent=0 // pred_region
    _
  $region17: #{mmpeptide_forward.4} parent=0 // pred_fallthru
    _

// kernel: mmpeptide_forward.5
$region0: #{mmpeptide_forward.5}
  #allocation0 [shape = 'u32[]', space=smem, size = 0x4, offset = 0x4, fixed_abs, tag = 'smem constant byte address 0x4 - core index']
  #allocation1 [shape = 'u32[144,128]{1,0:T(1,128)}', space=vmem, size = 0x12000, scoped, tag = 'internal scratch']
  %s0 = inlined_call_operand.vmem [shape: bf16[128,256], index: 0, kind: input, shape index: {}]
  %s1 = inlined_call_operand.vmem [shape: bf16[256,128], index: 1, kind: input, shape index: {}]
  %s2 = inlined_call_operand.vmem [shape: f32[128,128], index: 2, kind: output, shape index: {}]
  %s3 = sld [smem:[#allocation0]]
  $region18: #{mmpeptide_forward.5} parent=0
    _
  %s5 = ssub.s32 1, %s3
  %s6 = scalar_select 0, %s5, %s3
  // Predicated region
  $region2: #{mmpeptide_forward.5} parent=0 // pred_check
    _
  $region3: #{mmpeptide_forward.5} parent=0 // pred_check_branch
    %8 = sbr.rel (0) target = $region5
  $region4: #{mmpeptide_forward.5} parent=0 // pred_region
    _
  $region5: #{mmpeptide_forward.5} parent=0 // pred_fallthru
    _
  // Predicated region
  $region6: #{mmpeptide_forward.5} parent=0 // pred_check
    _
  $region7: #{mmpeptide_forward.5} parent=0 // pred_check_branch
    %10 = sbr.rel (0) target = $region9
  $region8: #{mmpeptide_forward.5} parent=0 // pred_region
    _
  $region9: #{mmpeptide_forward.5} parent=0 // pred_fallthru
    _
  %v12 = vld [vmem:[%s0] sm:$0xff]
  %v13 = vld [vmem:[%s0 + $0x8] sm:$0xff]
  %v14 = vld [vmem:[%s0 + $0x10] sm:$0xff]
  %v15 = vld [vmem:[%s0 + $0x18] sm:$0xff]
  %v16 = vld [vmem:[%s0 + $0x20] sm:$0xff]
  %v17 = vld [vmem:[%s0 + $0x28] sm:$0xff]
  %v18 = vld [vmem:[%s0 + $0x30] sm:$0xff]
  %v19 = vld [vmem:[%s0 + $0x38] sm:$0xff]
  %v20 = vld [vmem:[%s0 + $0x40] sm:$0xff]
  %v21 = vld [vmem:[%s0 + $0x48] sm:$0xff]
  %v22 = vld [vmem:[%s0 + $0x50] sm:$0xff]
  %v23 = vld [vmem:[%s0 + $0x58] sm:$0xff]
  %v24 = vld [vmem:[%s0 + $0x60] sm:$0xff]
  %v25 = vld [vmem:[%s0 + $0x68] sm:$0xff]
  %v26 = vld [vmem:[%s0 + $0x70] sm:$0xff]
  %v27 = vld [vmem:[%s0 + $0x78] sm:$0xff]
  %v28 = vld [vmem:[%s1] sm:$0xf]
  %v29 = vld [vmem:[%s1 + $0x4] sm:$0xf]
  %v30 = vld [vmem:[%s1 + $0x8] sm:$0xf]
  %v31 = vld [vmem:[%s1 + $0xc] sm:$0xf]
  %v32 = vld [vmem:[%s1 + $0x10] sm:$0xf]
  %v33 = vld [vmem:[%s1 + $0x14] sm:$0xf]
  %v34 = vld [vmem:[%s1 + $0x18] sm:$0xf]
  %v35 = vld [vmem:[%s1 + $0x1c] sm:$0xf]
  %v36 = vld [vmem:[%s1 + $0x20] sm:$0xf]
  %v37 = vld [vmem:[%s1 + $0x24] sm:$0xf]
  %v38 = vld [vmem:[%s1 + $0x28] sm:$0xf]
  %v39 = vld [vmem:[%s1 + $0x2c] sm:$0xf]
  %v40 = vld [vmem:[%s1 + $0x30] sm:$0xf]
  %v41 = vld [vmem:[%s1 + $0x34] sm:$0xf]
  %v42 = vld [vmem:[%s1 + $0x38] sm:$0xf]
  %v43 = vld [vmem:[%s1 + $0x3c] sm:$0xf]
  %v44 = vld [vmem:[%s1 + $0x40] sm:$0xf]
  %v45 = vld [vmem:[%s1 + $0x44] sm:$0xf]
  %v46 = vld [vmem:[%s1 + $0x48] sm:$0xf]
  %v47 = vld [vmem:[%s1 + $0x4c] sm:$0xf]
  %v48 = vld [vmem:[%s1 + $0x50] sm:$0xf]
  %v49 = vld [vmem:[%s1 + $0x54] sm:$0xf]
  %v50 = vld [vmem:[%s1 + $0x58] sm:$0xf]
  %v51 = vld [vmem:[%s1 + $0x5c] sm:$0xf]
  %v52 = vld [vmem:[%s1 + $0x60] sm:$0xf]
  %v53 = vld [vmem:[%s1 + $0x64] sm:$0xf]
  %v54 = vld [vmem:[%s1 + $0x68] sm:$0xf]
  %v55 = vld [vmem:[%s1 + $0x6c] sm:$0xf]
  %v56 = vld [vmem:[%s1 + $0x70] sm:$0xf]
  %v57 = vld [vmem:[%s1 + $0x74] sm:$0xf]
  %v58 = vld [vmem:[%s1 + $0x78] sm:$0xf]
  %v59 = vld [vmem:[%s1 + $0x7c] sm:$0xf]
  %v76 = vunpack.c.l.b16 %v12
  %v77 = vunpack.c.h.b16 %v12
  %v78 = vunpack.c.l.b16 %v13
  %v79 = vunpack.c.h.b16 %v13
  %v80 = vunpack.c.l.b16 %v14
  %v81 = vunpack.c.h.b16 %v14
  %v82 = vunpack.c.l.b16 %v15
  %v83 = vunpack.c.h.b16 %v15
  %v84 = vunpack.c.l.b16 %v16
  %v85 = vunpack.c.h.b16 %v16
  %v86 = vunpack.c.l.b16 %v17
  %v87 = vunpack.c.h.b16 %v17
  %v88 = vunpack.c.l.b16 %v18
  %v89 = vunpack.c.h.b16 %v18
  %v90 = vunpack.c.l.b16 %v19
  %v91 = vunpack.c.h.b16 %v19
  %v92 = vunpack.c.l.b16 %v20
  %v93 = vunpack.c.h.b16 %v20
  %v94 = vunpack.c.l.b16 %v21
  %v95 = vunpack.c.h.b16 %v21
  %v96 = vunpack.c.l.b16 %v22
  %v97 = vunpack.c.h.b16 %v22
  %v98 = vunpack.c.l.b16 %v23
  %v99 = vunpack.c.h.b16 %v23
  %v100 = vunpack.c.l.b16 %v24
  %v101 = vunpack.c.h.b16 %v24
  %v102 = vunpack.c.l.b16 %v25
  %v103 = vunpack.c.h.b16 %v25
  %v104 = vunpack.c.l.b16 %v26
  %v105 = vunpack.c.h.b16 %v26
  %v106 = vunpack.c.l.b16 %v27
  %v107 = vunpack.c.h.b16 %v27
  %v108 = vpack.c.b16 %v78, %v76
  %v109 = vpack.c.b16 %v79, %v77
  %v110 = vpack.c.b16 %v82, %v80
  %v111 = vpack.c.b16 %v83, %v81
  %v112 = vpack.c.b16 %v86, %v84
  %v113 = vpack.c.b16 %v87, %v85
  %v114 = vpack.c.b16 %v90, %v88
  %v115 = vpack.c.b16 %v91, %v89
  %v116 = vpack.c.b16 %v94, %v92
  %v117 = vpack.c.b16 %v95, %v93
  %v118 = vpack.c.b16 %v98, %v96
  %v119 = vpack.c.b16 %v99, %v97
  %v120 = vpack.c.b16 %v102, %v100
  %v121 = vpack.c.b16 %v103, %v101
  %v122 = vpack.c.b16 %v106, %v104
  %v123 = vpack.c.b16 %v107, %v105
  %v172 = vunpack.c.l.b16 %v28
  %v173 = vunpack.c.l.b16 %v29
  %v174 = vunpack.c.l.b16 %v30
  %v175 = vunpack.c.l.b16 %v31
  %v176 = vunpack.c.l.b16 %v32
  %v177 = vunpack.c.l.b16 %v33
  %v178 = vunpack.c.l.b16 %v34
  %v179 = vunpack.c.l.b16 %v35
  %v180 = vunpack.c.l.b16 %v36
  %v181 = vunpack.c.l.b16 %v37
  %v182 = vunpack.c.l.b16 %v38
  %v183 = vunpack.c.l.b16 %v39
  %v184 = vunpack.c.l.b16 %v40
  %v185 = vunpack.c.l.b16 %v41
  %v186 = vunpack.c.l.b16 %v42
  %v187 = vunpack.c.l.b16 %v43
  %v188 = vunpack.c.l.b16 %v44
  %v189 = vunpack.c.l.b16 %v45
  %v190 = vunpack.c.l.b16 %v46
  %v191 = vunpack.c.l.b16 %v47
  %v192 = vunpack.c.l.b16 %v48
  %v193 = vunpack.c.l.b16 %v49
  %v194 = vunpack.c.l.b16 %v50
  %v195 = vunpack.c.l.b16 %v51
  %v196 = vunpack.c.l.b16 %v52
  %v197 = vunpack.c.l.b16 %v53
  %v198 = vunpack.c.l.b16 %v54
  %v199 = vunpack.c.l.b16 %v55
  %v200 = vunpack.c.l.b16 %v56
  %v201 = vunpack.c.l.b16 %v57
  %v202 = vunpack.c.l.b16 %v58
  %v203 = vunpack.c.l.b16 %v59
  %v204 = vpack.c.b16 %v173, %v172
  %v205 = vpack.c.b16 %v175, %v174
  %v206 = vpack.c.b16 %v177, %v176
  %v207 = vpack.c.b16 %v179, %v178
  %v208 = vpack.c.b16 %v181, %v180
  %v209 = vpack.c.b16 %v183, %v182
  %v210 = vpack.c.b16 %v185, %v184
  %v211 = vpack.c.b16 %v187, %v186
  %v212 = vpack.c.b16 %v189, %v188
  %v213 = vpack.c.b16 %v191, %v190
  %v214 = vpack.c.b16 %v193, %v192
  %v215 = vpack.c.b16 %v195, %v194
  %v216 = vpack.c.b16 %v197, %v196
  %v217 = vpack.c.b16 %v199, %v198
  %v218 = vpack.c.b16 %v201, %v200
  %v219 = vpack.c.b16 %v203, %v202
  %236 = vmatprep.subr.bf16.mxu0 0
  %237 = vmatpush1.bf16.msra.mxu0 %v204
  %238 = vmatprep.subr.bf16.mxu0 0
  %239 = vmatpush1.bf16.msra.mxu0 %v205
  %240 = vmatprep.subr.bf16.mxu0 0
  %241 = vmatpush1.bf16.msra.mxu0 %v206
  %242 = vmatprep.subr.bf16.mxu0 0
  %243 = vmatpush1.bf16.msra.mxu0 %v207
  %244 = vmatprep.subr.bf16.mxu0 0
  %245 = vmatpush1.bf16.msra.mxu0 %v208
  %246 = vmatprep.subr.bf16.mxu0 0
  %247 = vmatpush1.bf16.msra.mxu0 %v209
  %248 = vmatprep.subr.bf16.mxu0 0
  %249 = vmatpush1.bf16.msra.mxu0 %v210
  %250 = vmatprep.subr.bf16.mxu0 0
  %251 = vmatpush1.bf16.msra.mxu0 %v211
  %252 = vmatprep.subr.bf16.mxu0 0
  %253 = vmatpush1.bf16.msra.mxu0 %v212
  %254 = vmatprep.subr.bf16.mxu0 0
  %255 = vmatpush1.bf16.msra.mxu0 %v213
  %256 = vmatprep.subr.bf16.mxu0 0
  %257 = vmatpush1.bf16.msra.mxu0 %v214
  %258 = vmatprep.subr.bf16.mxu0 0
  %259 = vmatpush1.bf16.msra.mxu0 %v215
  %260 = vmatprep.subr.bf16.mxu0 0
  %261 = vmatpush1.bf16.msra.mxu0 %v216
  %262 = vmatprep.subr.bf16.mxu0 0
  %263 = vmatpush1.bf16.msra.mxu0 %v217
  %264 = vmatprep.subr.bf16.mxu0 0
  %265 = vmatpush1.bf16.msra.mxu0 %v218
  %266 = vmatprep.subr.bf16.mxu0 0
  %267 = vmatpush1.bf16.msra.mxu0 %v219
  %268 = vmatprep.mubr.bf16.mxu0 %v109
  %269 = vmatmul.mubr.bf16.gmra.mrb[0].mxu0 %v108
  %v270 = vpop.f32.mrb[0].mxu0
  %v271 = vadd.f32 0.0, %v270
  %v272 = vpop.f32.mrb[0].mxu0
  %v273 = vpop.f32.mrb[0].mxu0
  %v274 = vadd.f32 0.0, %v273
  %v275 = vpop.f32.mrb[0].mxu0
  %276 = vmatprep.mubr.bf16.mxu0 %v111
  %277 = vmatmul.mubr.bf16.gmra.mrb[0].mxu0 %v110
  %v278 = vpop.f32.mrb[0].mxu0
  %v279 = vadd.f32 0.0, %v278
  %v280 = vpop.f32.mrb[0].mxu0
  %v281 = vpop.f32.mrb[0].mxu0
  %v282 = vadd.f32 0.0, %v281
  %v283 = vpop.f32.mrb[0].mxu0
  %284 = vmatprep.mubr.bf16.mxu0 %v113
  %285 = vmatmul.mubr.bf16.gmra.mrb[0].mxu0 %v112
  %v286 = vpop.f32.mrb[0].mxu0
  %v287 = vadd.f32 0.0, %v286
  %v288 = vpop.f32.mrb[0].mxu0
  %v289 = vpop.f32.mrb[0].mxu0
  %v290 = vadd.f32 0.0, %v289
  %v291 = vpop.f32.mrb[0].mxu0
  %292 = vmatprep.mubr.bf16.mxu0 %v115
  %293 = vmatmul.mubr.bf16.gmra.mrb[0].mxu0 %v114
  %v294 = vpop.f32.mrb[0].mxu0
  %v295 = vadd.f32 0.0, %v294
  %v296 = vpop.f32.mrb[0].mxu0
  %v297 = vpop.f32.mrb[0].mxu0
  %v298 = vadd.f32 0.0, %v297
  %v299 = vpop.f32.mrb[0].mxu0
  %300 = vmatprep.mubr.bf16.mxu0 %v117
  %301 = vmatmul.mubr.bf16.gmra.mrb[0].mxu0 %v116
  %v302 = vpop.f32.mrb[0].mxu0
  %v303 = vadd.f32 0.0, %v302
  %v304 = vpop.f32.mrb[0].mxu0
  %v305 = vpop.f32.mrb[0].mxu0
  %v306 = vadd.f32 0.0, %v305
  %v307 = vpop.f32.mrb[0].mxu0
  %308 = vmatprep.mubr.bf16.mxu0 %v119
  %309 = vmatmul.mubr.bf16.gmra.mrb[0].mxu0 %v118
  %v310 = vpop.f32.mrb[0].mxu0
  %v311 = vadd.f32 0.0, %v310
  %v312 = vpop.f32.mrb[0].mxu0
  %v313 = vpop.f32.mrb[0].mxu0
  %v314 = vadd.f32 0.0, %v313
  %v315 = vpop.f32.mrb[0].mxu0
  %316 = vmatprep.mubr.bf16.mxu0 %v121
  %317 = vmatmul.mubr.bf16.gmra.mrb[0].mxu0 %v120
  %v318 = vpop.f32.mrb[0].mxu0
  %v319 = vadd.f32 0.0, %v318
  %v320 = vpop.f32.mrb[0].mxu0
  %v321 = vpop.f32.mrb[0].mxu0
  %v322 = vadd.f32 0.0, %v321
  %v323 = vpop.f32.mrb[0].mxu0
  %324 = vmatprep.mubr.bf16.mxu0 %v123
  %325 = vmatmul.mubr.bf16.gmra.mrb[0].mxu0 %v122
  %v326 = vpop.f32.mrb[0].mxu0
  %v327 = vadd.f32 0.0, %v326
  %v328 = vpop.f32.mrb[0].mxu0
  %v329 = vpop.f32.mrb[0].mxu0
  %v330 = vadd.f32 0.0, %v329
  %v331 = vpop.f32.mrb[0].mxu0
  %332 = vdwg.mxu0
  %333 = vst [vmem:[%s2] sm:$0xff] %v271
  %334 = vst [vmem:[%s2 + $0x8] sm:$0xff] %v274
  %335 = vst [vmem:[%s2 + $0x10] sm:$0xff] %v279
  %336 = vst [vmem:[%s2 + $0x18] sm:$0xff] %v282
  %337 = vst [vmem:[%s2 + $0x20] sm:$0xff] %v287
  %338 = vst [vmem:[%s2 + $0x28] sm:$0xff] %v290
  %339 = vst [vmem:[%s2 + $0x30] sm:$0xff] %v295
  %340 = vst [vmem:[%s2 + $0x38] sm:$0xff] %v298
  %341 = vst [vmem:[%s2 + $0x40] sm:$0xff] %v303
  %342 = vst [vmem:[%s2 + $0x48] sm:$0xff] %v306
  %343 = vst [vmem:[%s2 + $0x50] sm:$0xff] %v311
  %344 = vst [vmem:[%s2 + $0x58] sm:$0xff] %v314
  %345 = vst [vmem:[%s2 + $0x60] sm:$0xff] %v319
  %346 = vst [vmem:[%s2 + $0x68] sm:$0xff] %v322
  %347 = vst [vmem:[%s2 + $0x70] sm:$0xff] %v327
  %348 = vst [vmem:[%s2 + $0x78] sm:$0xff] %v330
  // Predicated region
  $region10: #{mmpeptide_forward.5} parent=0 // pred_check
    _
  $region11: #{mmpeptide_forward.5} parent=0 // pred_check_branch
    %350 = sbr.rel (0) target = $region13
  $region12: #{mmpeptide_forward.5} parent=0 // pred_region
    _
  $region13: #{mmpeptide_forward.5} parent=0 // pred_fallthru
    _
  // Predicated region
  $region14: #{mmpeptide_forward.5} parent=0 // pred_check
    _
  $region15: #{mmpeptide_forward.5} parent=0 // pred_check_branch
    %352 = sbr.rel (0) target = $region17
  $region16: #{mmpeptide_forward.5} parent=0 // pred_region
    _
  $region17: #{mmpeptide_forward.5} parent=0 // pred_fallthru
    _

</llo_original>
